<compile_context>
chip_gen: v6e
topology: v6e:2x2x1
jax: 0.10.0
libtpu: 0.0.40
codegen_flags: <defaults>
</compile_context>

<pallas_src>
import jax
import jax.numpy as jnp
from jax import lax
from jax.experimental import pallas as pl
from jax.experimental.pallas import tpu as pltpu

D = 128       # embed dim (lane friendly)
F = 256       # MLP hidden
V = 128       # vocab size (lane dense output head)
PATCH = 4     # patch size
C_IN = 3      # image channels
P_DIM = C_IN * PATCH * PATCH   # 48
P_PAD = 128                    # lane-aligned padded patch feature dim


# ----------------------------- kernel helpers -----------------------------

def _ln(x, g, b, eps=1e-5):
    mu = jnp.mean(x, axis=-1, keepdims=True)
    var = jnp.mean((x - mu) ** 2, axis=-1, keepdims=True)
    return (x - mu) * lax.rsqrt(var + eps) * g + b


def _attn(x, wqkv, wo, bias=None):
    """x: (T, D) f32 residual; wqkv: (D, 3D) bf16, q columns pre-scaled by 1/sqrt(D)."""
    qkv = jnp.dot(x.astype(jnp.bfloat16), wqkv,
                  preferred_element_type=jnp.float32)          # (T, 3D)
    q = qkv[:, 0:D]
    k = qkv[:, D:2 * D]
    v = qkv[:, 2 * D:3 * D]
    # contract last dims directly (no explicit transpose of k)
    s = lax.dot_general(q.astype(jnp.bfloat16), k.astype(jnp.bfloat16),
                        (((1,), (1,)), ((), ())),
                        preferred_element_type=jnp.float32)    # (T, T)
    if bias is not None:
        s = s + bias
    s = s - jnp.max(s, axis=-1, keepdims=True)
    p = jnp.exp(s)
    p = p * pl.reciprocal(jnp.sum(p, axis=-1, keepdims=True), approx=True)
    o = jnp.dot(p.astype(jnp.bfloat16), v.astype(jnp.bfloat16),
                preferred_element_type=jnp.float32)
    return jnp.dot(o.astype(jnp.bfloat16), wo, preferred_element_type=jnp.float32)


def _mlp(x, w1, w2):
    h = jnp.dot(x.astype(jnp.bfloat16), w1, preferred_element_type=jnp.float32)
    # TODO(synk): torch nn.GELU default is exact erf-GELU; tanh approximation used.
    h = jax.nn.gelu(h, approximate=True)
    return jnp.dot(h.astype(jnp.bfloat16), w2, preferred_element_type=jnp.float32)


# ----------------------------- fused kernel --------------------------------

def make_fused_kernel(BPS, N, S):
    """One grid step processes BPS batch elements, folded into the row dim."""
    TN, TS = BPS * N, BPS * S

    def kernel(patch_ref, tok_ref, mask_ref,
               w_patch, s_ln, s_wqkv, s_wo, s_w1, s_w2,
               t_wimg, t_ln, t_wqkv, t_wo, t_w1, t_w2, w_out,
               out_ref):
        # ------------------ swin stand-in ------------------
        sln = s_ln[...]                                        # (8, D) f32
        x = jnp.dot(patch_ref[0], w_patch[...],
                    preferred_element_type=jnp.float32) + sln[0:1, :]  # +b_patch

        if BPS > 1:   # block-diagonal mask so batches don't attend to each other
            rb = lax.broadcasted_iota(jnp.int32, (TN, TN), 0) // N
            cb = lax.broadcasted_iota(jnp.int32, (TN, TN), 1) // N
            swin_bias = jnp.where(rb == cb, 0.0, -1e9).astype(jnp.float32)
        else:
            swin_bias = None

        h = _ln(x, sln[1:2, :], sln[2:3, :])
        x = x + _attn(h, s_wqkv[...], s_wo[...], bias=swin_bias)
        h = _ln(x, sln[3:4, :], sln[4:5, :])
        x = x + _mlp(h, s_w1[...], s_w2[...])
        x = _ln(x, sln[5:6, :], sln[6:7, :])

        # features.mean(dim=1)  -> (BPS, D), kept on-chip (no HBM round trip)
        if BPS == 1:
            pooled = jnp.mean(x, axis=0, keepdims=True)
        else:
            rb = lax.broadcasted_iota(jnp.int32, (BPS, TN), 0)
            cb = lax.broadcasted_iota(jnp.int32, (BPS, TN), 1)
            pool = jnp.where(cb // N == rb, 1.0 / N, 0.0).astype(jnp.bfloat16)
            pooled = jnp.dot(pool, x.astype(jnp.bfloat16),
                             preferred_element_type=jnp.float32)

        # ------------------ text stand-in ------------------
        img = jnp.dot(pooled.astype(jnp.bfloat16), t_wimg[...],
                      preferred_element_type=jnp.float32)      # (BPS, D)
        t = tok_ref[0]                                         # (TS, D) f32
        if BPS == 1:
            t = t + img
        else:
            t = (t.reshape(BPS, S, D) + img.reshape(BPS, 1, D)).reshape(TS, D)

        m = mask_ref[0].astype(jnp.float32)                    # (BPS, S) 1=keep
        keyflat = m.reshape(1, TS)
        if BPS > 1:
            rb = lax.broadcasted_iota(jnp.int32, (TS, TS), 0) // S
            cb = lax.broadcasted_iota(jnp.int32, (TS, TS), 1) // S
            text_bias = jnp.where(rb == cb, (keyflat - 1.0) * 1e9, -1e9)
        else:
            text_bias = (keyflat - 1.0) * 1e9                  # (1, TS)

        tln = t_ln[...]                                        # (8, D) f32
        h = _ln(t, tln[0:1, :], tln[1:2, :])
        t = t + _attn(h, t_wqkv[...], t_wo[...], bias=text_bias)
        h = _ln(t, tln[2:3, :], tln[3:4, :])
        t = t + _mlp(h, t_w1[...], t_w2[...])
        t = _ln(t, tln[4:5, :], tln[5:6, :])

        out_ref[0] = jnp.dot(t.astype(jnp.bfloat16), w_out[...],
                             preferred_element_type=jnp.float32)

    return kernel


# ----------------------------- wrapper --------------------------------------

def _rep_spec(shape):
    """Weight spec: same full block at every grid step."""
    return pl.BlockSpec(shape, lambda g: (0,) * len(shape))


def final_model_forward(params, image, input_ids, attention_mask):
    """image (B,C,H,W) f32 NCHW, input_ids (B,S) i32, attention_mask (B,S)."""
    B, C, H, W = image.shape
    hp, wp = H // PATCH, W // PATCH
    N = hp * wp
    S = input_ids.shape[1]
    NSHARD = 2 if (B % 2 == 0 and B >= 2) else 1   # 2-way parallel axis for v7x
    BPS = B // NSHARD
    TN, TS = BPS * N, BPS * S

    # im2col: stride=patch conv as matmul; zero-pad K 48->128 for aligned lanes
    patches = image.reshape(B, C, hp, PATCH, wp, PATCH)
    patches = patches.transpose(0, 2, 4, 1, 3, 5).reshape(B, N, P_DIM)
    patches = jnp.pad(patches, ((0, 0), (0, 0), (0, P_PAD - P_DIM)))
    patches = patches.reshape(NSHARD, TN, P_PAD).astype(jnp.bfloat16)

    tok = jnp.take(params["embed"], input_ids, axis=0)          # (B,S,D) glue
    tok = tok.reshape(NSHARD, TS, D).astype(jnp.float32)
    mask = attention_mask.astype(jnp.float32).reshape(NSHARD, BPS, S)

    in_specs = [
        pl.BlockSpec((1, TN, P_PAD), lambda g: (g, 0, 0)),   # patches
        pl.BlockSpec((1, TS, D), lambda g: (g, 0, 0)),       # token embeddings
        pl.BlockSpec((1, BPS, S), lambda g: (g, 0, 0)),      # attention mask
        _rep_spec((P_PAD, D)),                               # patch embed weight
        _rep_spec((8, D)),                                   # packed swin ln/bias
        _rep_spec((D, 3 * D)), _rep_spec((D, D)),            # swin qkv, wo
        _rep_spec((D, F)), _rep_spec((F, D)),                # swin mlp
        _rep_spec((D, D)),                                   # image proj
        _rep_spec((8, D)),                                   # packed text ln
        _rep_spec((D, 3 * D)), _rep_spec((D, D)),            # text qkv, wo
        _rep_spec((D, F)), _rep_spec((F, D)),                # text mlp
        _rep_spec((D, V)),                                   # output head
    ]
    logits = pl.pallas_call(
        make_fused_kernel(BPS, N, S),
        out_shape=jax.ShapeDtypeStruct((NSHARD, TS, V), jnp.float32),
        grid=(NSHARD,),
        in_specs=in_specs,
        out_specs=pl.BlockSpec((1, TS, V), lambda g: (g, 0, 0)),
        compiler_params=pltpu.CompilerParams(
            dimension_semantics=("parallel",)),
    )(patches, tok, mask,
      params["w_patch"], params["s_ln"], params["s_wqkv"], params["s_wo"],
      params["s_w1"], params["s_w2"],
      params["t_wimg"], params["t_ln"], params["t_wqkv"], params["t_wo"],
      params["t_w1"], params["t_w2"], params["w_out"])
    return logits.reshape(B, S, V)


# ----------------------------- parameters ----------------------------------

def init_params(key):
    ks = jax.random.split(key, 20)

    def w(k, shape, scale=0.02):
        return jax.random.normal(k, shape, jnp.float32) * scale

    ones = lambda s: jnp.ones(s, jnp.float32)
    zeros = lambda s: jnp.zeros(s, jnp.float32)
    bf = lambda a: a.astype(jnp.bfloat16)
    inv_sqrt_d = 1.0 / jnp.sqrt(jnp.float32(D))

    # swin stand-in: fused qkv (q pre-scaled), packed LN params, padded patch W
    w_patch = jnp.zeros((P_PAD, D), jnp.float32).at[:P_DIM].set(w(ks[0], (P_DIM, D)))
    s_wqkv = jnp.concatenate(
        [w(ks[1], (D, D)) * inv_sqrt_d, w(ks[2], (D, D)), w(ks[3], (D, D))], axis=1)
    s_ln = jnp.stack([zeros((D,)),                 # b_patch
                      ones((D,)), zeros((D,)),     # ln1 g, b
                      ones((D,)), zeros((D,)),     # ln2 g, b
                      ones((D,)), zeros((D,)),     # final ln g, b
                      zeros((D,))], axis=0)        # pad row -> (8, D)

    # text stand-in
    t_wqkv = jnp.concatenate(
        [w(ks[9], (D, D)) * inv_sqrt_d, w(ks[10], (D, D)), w(ks[11], (D, D))], axis=1)
    t_ln = jnp.stack([ones((D,)), zeros((D,)),
                      ones((D,)), zeros((D,)),
                      ones((D,)), zeros((D,)),
                      zeros((D,)), zeros((D,))], axis=0)

    return dict(
        w_patch=bf(w_patch),
        s_ln=s_ln,
        s_wqkv=bf(s_wqkv), s_wo=bf(w(ks[4], (D, D))),
        s_w1=bf(w(ks[5], (D, F))), s_w2=bf(w(ks[6], (F, D))),
        embed=w(ks[7], (V, D)),
        t_wimg=bf(w(ks[8], (D, D))),
        t_ln=t_ln,
        t_wqkv=bf(t_wqkv), t_wo=bf(w(ks[12], (D, D))),
        t_w1=bf(w(ks[13], (D, F))), t_w2=bf(w(ks[14], (F, D))),
        w_out=bf(w(ks[15], (D, V))),
    )


# ----------------------------- main ----------------------------------------

if __name__ == "__main__":
    key = jax.random.PRNGKey(0)
    kp, ki, kd = jax.random.split(key, 3)
    params = init_params(kp)

    B, H, W = 2, 16, 16
    S = 8
    image = jax.random.normal(ki, (B, C_IN, H, W), jnp.float32)       # NCHW
    input_ids = jax.random.randint(kd, (B, S), 0, V, dtype=jnp.int32)
    attention_mask = jnp.ones((B, S), jnp.int32).at[:, 6:].set(0)     # pad tail

    logits = final_model_forward(params, image, input_ids, attention_mask)
    jax.block_until_ready(logits)
    assert logits.shape == (B, S, V)
    print("KERNEL_OK")
</pallas_src>

<mosaic_0001>
module attributes {stable_mosaic.version = 11 : i64} {
  func.func @kernel(%arg0: i32, %arg1: memref<1x16x128xbf16, #tpu.memory_space<vmem>>, %arg2: memref<1x8x128xf32, #tpu.memory_space<vmem>>, %arg3: memref<1x1x8xf32, #tpu.memory_space<vmem>>, %arg4: memref<128x128xbf16, #tpu.memory_space<vmem>>, %arg5: memref<8x128xf32, #tpu.memory_space<vmem>>, %arg6: memref<128x384xbf16, #tpu.memory_space<vmem>>, %arg7: memref<128x128xbf16, #tpu.memory_space<vmem>>, %arg8: memref<128x256xbf16, #tpu.memory_space<vmem>>, %arg9: memref<256x128xbf16, #tpu.memory_space<vmem>>, %arg10: memref<128x128xbf16, #tpu.memory_space<vmem>>, %arg11: memref<8x128xf32, #tpu.memory_space<vmem>>, %arg12: memref<128x384xbf16, #tpu.memory_space<vmem>>, %arg13: memref<128x128xbf16, #tpu.memory_space<vmem>>, %arg14: memref<128x256xbf16, #tpu.memory_space<vmem>>, %arg15: memref<256x128xbf16, #tpu.memory_space<vmem>>, %arg16: memref<128x128xbf16, #tpu.memory_space<vmem>>, %arg17: memref<1x8x128xf32, #tpu.memory_space<vmem>>) attributes {dimension_semantics = [#tpu.dimension_semantics<parallel>], iteration_bounds = array<i64: 2>, scalar_prefetch = 0 : i64, scratch_operands = 0 : i64, tpu.core_type = #tpu.core_type<tc>, window_params = [{transform_indices = @transform_0, window_bounds = array<i64: 1, 16, 128>}, {transform_indices = @transform_1, window_bounds = array<i64: 1, 8, 128>}, {transform_indices = @transform_2, window_bounds = array<i64: 1, 1, 8>}, {pipeline_mode = #tpu.pipeline_mode<synchronous>, transform_indices = @transform_3, window_bounds = array<i64: 128, 128>}, {pipeline_mode = #tpu.pipeline_mode<synchronous>, transform_indices = @transform_4, window_bounds = array<i64: 8, 128>}, {pipeline_mode = #tpu.pipeline_mode<synchronous>, transform_indices = @transform_5, window_bounds = array<i64: 128, 384>}, {pipeline_mode = #tpu.pipeline_mode<synchronous>, transform_indices = @transform_6, window_bounds = array<i64: 128, 128>}, {pipeline_mode = #tpu.pipeline_mode<synchronous>, transform_indices = @transform_7, window_bounds = array<i64: 128, 256>}, {pipeline_mode = #tpu.pipeline_mode<synchronous>, transform_indices = @transform_8, window_bounds = array<i64: 256, 128>}, {pipeline_mode = #tpu.pipeline_mode<synchronous>, transform_indices = @transform_9, window_bounds = array<i64: 128, 128>}, {pipeline_mode = #tpu.pipeline_mode<synchronous>, transform_indices = @transform_10, window_bounds = array<i64: 8, 128>}, {pipeline_mode = #tpu.pipeline_mode<synchronous>, transform_indices = @transform_11, window_bounds = array<i64: 128, 384>}, {pipeline_mode = #tpu.pipeline_mode<synchronous>, transform_indices = @transform_12, window_bounds = array<i64: 128, 128>}, {pipeline_mode = #tpu.pipeline_mode<synchronous>, transform_indices = @transform_13, window_bounds = array<i64: 128, 256>}, {pipeline_mode = #tpu.pipeline_mode<synchronous>, transform_indices = @transform_14, window_bounds = array<i64: 256, 128>}, {pipeline_mode = #tpu.pipeline_mode<synchronous>, transform_indices = @transform_15, window_bounds = array<i64: 128, 128>}, {transform_indices = @transform_16, window_bounds = array<i64: 1, 8, 128>}]} {
    %c0 = arith.constant 0 : index
    %c0_0 = arith.constant 0 : index
    %0 = vector.load %arg5[%c0, %c0_0] : memref<8x128xf32, #tpu.memory_space<vmem>>, vector<8x128xf32>
    %c0_1 = arith.constant 0 : index
    %c0_2 = arith.constant 0 : index
    %c0_3 = arith.constant 0 : index
    %1 = vector.load %arg1[%c0_1, %c0_2, %c0_3] : memref<1x16x128xbf16, #tpu.memory_space<vmem>>, vector<1x16x128xbf16>
    %2 = vector.shape_cast %1 : vector<1x16x128xbf16> to vector<16x128xbf16>
    %c0_4 = arith.constant 0 : index
    %c0_5 = arith.constant 0 : index
    %3 = vector.load %arg4[%c0_4, %c0_5] : memref<128x128xbf16, #tpu.memory_space<vmem>>, vector<128x128xbf16>
    %cst = arith.constant dense<0.000000e+00> : vector<16x128xf32>
    %4 = tpu.matmul %2, %3, %cst {dimension_numbers = #tpu.dot_dimension_numbers<[1], [0], [0], [1], [0, 0, 1, 1], [], []>} : vector<16x128xbf16>, vector<128x128xbf16>, vector<16x128xf32> -> vector<16x128xf32>
    %5 = vector.extract_strided_slice %0 {offsets = [0, 0], sizes = [1, 128], strides = [1, 1]} : vector<8x128xf32> to vector<1x128xf32>
    %6 = vector.broadcast %5 : vector<1x128xf32> to vector<16x128xf32>
    %7 = arith.addf %4, %6 : vector<16x128xf32>
    %8 = vector.extract_strided_slice %0 {offsets = [1, 0], sizes = [1, 128], strides = [1, 1]} : vector<8x128xf32> to vector<1x128xf32>
    %9 = vector.extract_strided_slice %0 {offsets = [2, 0], sizes = [1, 128], strides = [1, 1]} : vector<8x128xf32> to vector<1x128xf32>
    %cst_6 = arith.constant dense<0.000000e+00> : vector<16xf32>
    %10 = vector.multi_reduction <add>, %7, %cst_6 [1] : vector<16x128xf32> to vector<16xf32>
    %11 = vector.shape_cast %10 : vector<16xf32> to vector<16x1xf32>
    %cst_7 = arith.constant 1.280000e+02 : f32
    %12 = vector.broadcast %cst_7 : f32 to vector<16x1xf32>
    %13 = arith.divf %11, %12 : vector<16x1xf32>
    %14 = vector.broadcast %13 : vector<16x1xf32> to vector<16x128xf32>
    %15 = arith.subf %7, %14 : vector<16x128xf32>
    %16 = arith.mulf %15, %15 : vector<16x128xf32>
    %cst_8 = arith.constant dense<0.000000e+00> : vector<16xf32>
    %17 = vector.multi_reduction <add>, %16, %cst_8 [1] : vector<16x128xf32> to vector<16xf32>
    %18 = vector.shape_cast %17 : vector<16xf32> to vector<16x1xf32>
    %cst_9 = arith.constant 1.280000e+02 : f32
    %19 = vector.broadcast %cst_9 : f32 to vector<16x1xf32>
    %20 = arith.divf %18, %19 : vector<16x1xf32>
    %21 = vector.broadcast %13 : vector<16x1xf32> to vector<16x128xf32>
    %22 = arith.subf %7, %21 : vector<16x128xf32>
    %cst_10 = arith.constant 9.99999974E-6 : f32
    %23 = vector.broadcast %cst_10 : f32 to vector<16x1xf32>
    %24 = arith.addf %20, %23 : vector<16x1xf32>
    %25 = math.rsqrt %24 : vector<16x1xf32>
    %26 = vector.broadcast %25 : vector<16x1xf32> to vector<16x128xf32>
    %27 = arith.mulf %22, %26 : vector<16x128xf32>
    %28 = vector.broadcast %8 : vector<1x128xf32> to vector<16x128xf32>
    %29 = arith.mulf %27, %28 : vector<16x128xf32>
    %30 = vector.broadcast %9 : vector<1x128xf32> to vector<16x128xf32>
    %31 = arith.addf %29, %30 : vector<16x128xf32>
    %c0_11 = arith.constant 0 : index
    %c0_12 = arith.constant 0 : index
    %32 = vector.load %arg6[%c0_11, %c0_12] : memref<128x384xbf16, #tpu.memory_space<vmem>>, vector<128x384xbf16>
    %c0_13 = arith.constant 0 : index
    %c0_14 = arith.constant 0 : index
    %33 = vector.load %arg7[%c0_13, %c0_14] : memref<128x128xbf16, #tpu.memory_space<vmem>>, vector<128x128xbf16>
    %34 = arith.truncf %31 : vector<16x128xf32> to vector<16x128xbf16>
    %cst_15 = arith.constant dense<0.000000e+00> : vector<16x384xf32>
    %35 = tpu.matmul %34, %32, %cst_15 {dimension_numbers = #tpu.dot_dimension_numbers<[1], [0], [0], [1], [0, 0, 1, 1], [], []>} : vector<16x128xbf16>, vector<128x384xbf16>, vector<16x384xf32> -> vector<16x384xf32>
    %36 = vector.extract_strided_slice %35 {offsets = [0, 0], sizes = [16, 128], strides = [1, 1]} : vector<16x384xf32> to vector<16x128xf32>
    %37 = vector.extract_strided_slice %35 {offsets = [0, 128], sizes = [16, 128], strides = [1, 1]} : vector<16x384xf32> to vector<16x128xf32>
    %38 = vector.extract_strided_slice %35 {offsets = [0, 256], sizes = [16, 128], strides = [1, 1]} : vector<16x384xf32> to vector<16x128xf32>
    %39 = arith.truncf %36 : vector<16x128xf32> to vector<16x128xbf16>
    %40 = arith.truncf %37 : vector<16x128xf32> to vector<16x128xbf16>
    %cst_16 = arith.constant dense<0.000000e+00> : vector<16x16xf32>
    %41 = tpu.matmul %39, %40, %cst_16 {dimension_numbers = #tpu.dot_dimension_numbers<[1], [1], [0], [0], [0, 0, 1, 0], [], []>} : vector<16x128xbf16>, vector<16x128xbf16>, vector<16x16xf32> -> vector<16x16xf32>
    %cst_17 = arith.constant dense<0xFF800000> : vector<16xf32>
    %42 = vector.multi_reduction <maximumf>, %41, %cst_17 [1] : vector<16x16xf32> to vector<16xf32>
    %43 = vector.shape_cast %42 : vector<16xf32> to vector<16x1xf32>
    %44 = vector.broadcast %43 : vector<16x1xf32> to vector<16x16xf32>
    %45 = arith.subf %41, %44 : vector<16x16xf32>
    %46 = math.exp %45 : vector<16x16xf32>
    %cst_18 = arith.constant dense<0.000000e+00> : vector<16xf32>
    %47 = vector.multi_reduction <add>, %46, %cst_18 [1] : vector<16x16xf32> to vector<16xf32>
    %48 = vector.shape_cast %47 : vector<16xf32> to vector<16x1xf32>
    %49 = tpu.reciprocal %48 {approx = true} : vector<16x1xf32> -> vector<16x1xf32>
    %50 = vector.broadcast %49 : vector<16x1xf32> to vector<16x16xf32>
    %51 = arith.mulf %46, %50 : vector<16x16xf32>
    %52 = arith.truncf %51 : vector<16x16xf32> to vector<16x16xbf16>
    %53 = arith.truncf %38 : vector<16x128xf32> to vector<16x128xbf16>
    %cst_19 = arith.constant dense<0.000000e+00> : vector<16x128xf32>
    %54 = tpu.matmul %52, %53, %cst_19 {dimension_numbers = #tpu.dot_dimension_numbers<[1], [0], [0], [1], [0, 0, 1, 1], [], []>} : vector<16x16xbf16>, vector<16x128xbf16>, vector<16x128xf32> -> vector<16x128xf32>
    %55 = arith.truncf %54 : vector<16x128xf32> to vector<16x128xbf16>
    %cst_20 = arith.constant dense<0.000000e+00> : vector<16x128xf32>
    %56 = tpu.matmul %55, %33, %cst_20 {dimension_numbers = #tpu.dot_dimension_numbers<[1], [0], [0], [1], [0, 0, 1, 1], [], []>} : vector<16x128xbf16>, vector<128x128xbf16>, vector<16x128xf32> -> vector<16x128xf32>
    %57 = arith.addf %7, %56 : vector<16x128xf32>
    %58 = vector.extract_strided_slice %0 {offsets = [3, 0], sizes = [1, 128], strides = [1, 1]} : vector<8x128xf32> to vector<1x128xf32>
    %59 = vector.extract_strided_slice %0 {offsets = [4, 0], sizes = [1, 128], strides = [1, 1]} : vector<8x128xf32> to vector<1x128xf32>
    %cst_21 = arith.constant dense<0.000000e+00> : vector<16xf32>
    %60 = vector.multi_reduction <add>, %57, %cst_21 [1] : vector<16x128xf32> to vector<16xf32>
    %61 = vector.shape_cast %60 : vector<16xf32> to vector<16x1xf32>
    %cst_22 = arith.constant 1.280000e+02 : f32
    %62 = vector.broadcast %cst_22 : f32 to vector<16x1xf32>
    %63 = arith.divf %61, %62 : vector<16x1xf32>
    %64 = vector.broadcast %63 : vector<16x1xf32> to vector<16x128xf32>
    %65 = arith.subf %57, %64 : vector<16x128xf32>
    %66 = arith.mulf %65, %65 : vector<16x128xf32>
    %cst_23 = arith.constant dense<0.000000e+00> : vector<16xf32>
    %67 = vector.multi_reduction <add>, %66, %cst_23 [1] : vector<16x128xf32> to vector<16xf32>
    %68 = vector.shape_cast %67 : vector<16xf32> to vector<16x1xf32>
    %cst_24 = arith.constant 1.280000e+02 : f32
    %69 = vector.broadcast %cst_24 : f32 to vector<16x1xf32>
    %70 = arith.divf %68, %69 : vector<16x1xf32>
    %71 = vector.broadcast %63 : vector<16x1xf32> to vector<16x128xf32>
    %72 = arith.subf %57, %71 : vector<16x128xf32>
    %cst_25 = arith.constant 9.99999974E-6 : f32
    %73 = vector.broadcast %cst_25 : f32 to vector<16x1xf32>
    %74 = arith.addf %70, %73 : vector<16x1xf32>
    %75 = math.rsqrt %74 : vector<16x1xf32>
    %76 = vector.broadcast %75 : vector<16x1xf32> to vector<16x128xf32>
    %77 = arith.mulf %72, %76 : vector<16x128xf32>
    %78 = vector.broadcast %58 : vector<1x128xf32> to vector<16x128xf32>
    %79 = arith.mulf %77, %78 : vector<16x128xf32>
    %80 = vector.broadcast %59 : vector<1x128xf32> to vector<16x128xf32>
    %81 = arith.addf %79, %80 : vector<16x128xf32>
    %c0_26 = arith.constant 0 : index
    %c0_27 = arith.constant 0 : index
    %82 = vector.load %arg8[%c0_26, %c0_27] : memref<128x256xbf16, #tpu.memory_space<vmem>>, vector<128x256xbf16>
    %c0_28 = arith.constant 0 : index
    %c0_29 = arith.constant 0 : index
    %83 = vector.load %arg9[%c0_28, %c0_29] : memref<256x128xbf16, #tpu.memory_space<vmem>>, vector<256x128xbf16>
    %84 = arith.truncf %81 : vector<16x128xf32> to vector<16x128xbf16>
    %cst_30 = arith.constant dense<0.000000e+00> : vector<16x256xf32>
    %85 = tpu.matmul %84, %82, %cst_30 {dimension_numbers = #tpu.dot_dimension_numbers<[1], [0], [0], [1], [0, 0, 1, 1], [], []>} : vector<16x128xbf16>, vector<128x256xbf16>, vector<16x256xf32> -> vector<16x256xf32>
    %86 = arith.mulf %85, %85 : vector<16x256xf32>
    %87 = arith.mulf %85, %86 : vector<16x256xf32>
    %cst_31 = arith.constant 4.471500e-02 : f32
    %88 = vector.broadcast %cst_31 : f32 to vector<16x256xf32>
    %89 = arith.mulf %88, %87 : vector<16x256xf32>
    %90 = arith.addf %85, %89 : vector<16x256xf32>
    %cst_32 = arith.constant 0.797884583 : f32
    %91 = vector.broadcast %cst_32 : f32 to vector<16x256xf32>
    %92 = arith.mulf %91, %90 : vector<16x256xf32>
    %93 = math.tanh %92 : vector<16x256xf32>
    %cst_33 = arith.constant 1.000000e+00 : f32
    %94 = vector.broadcast %cst_33 : f32 to vector<16x256xf32>
    %95 = arith.addf %94, %93 : vector<16x256xf32>
    %cst_34 = arith.constant 5.000000e-01 : f32
    %96 = vector.broadcast %cst_34 : f32 to vector<16x256xf32>
    %97 = arith.mulf %96, %95 : vector<16x256xf32>
    %98 = arith.mulf %85, %97 : vector<16x256xf32>
    %99 = arith.truncf %98 : vector<16x256xf32> to vector<16x256xbf16>
    %cst_35 = arith.constant dense<0.000000e+00> : vector<16x128xf32>
    %100 = tpu.matmul %99, %83, %cst_35 {dimension_numbers = #tpu.dot_dimension_numbers<[1], [0], [0], [1], [0, 0, 1, 1], [], []>} : vector<16x256xbf16>, vector<256x128xbf16>, vector<16x128xf32> -> vector<16x128xf32>
    %101 = arith.addf %57, %100 : vector<16x128xf32>
    %102 = vector.extract_strided_slice %0 {offsets = [5, 0], sizes = [1, 128], strides = [1, 1]} : vector<8x128xf32> to vector<1x128xf32>
    %103 = vector.extract_strided_slice %0 {offsets = [6, 0], sizes = [1, 128], strides = [1, 1]} : vector<8x128xf32> to vector<1x128xf32>
    %cst_36 = arith.constant dense<0.000000e+00> : vector<16xf32>
    %104 = vector.multi_reduction <add>, %101, %cst_36 [1] : vector<16x128xf32> to vector<16xf32>
    %105 = vector.shape_cast %104 : vector<16xf32> to vector<16x1xf32>
    %cst_37 = arith.constant 1.280000e+02 : f32
    %106 = vector.broadcast %cst_37 : f32 to vector<16x1xf32>
    %107 = arith.divf %105, %106 : vector<16x1xf32>
    %108 = vector.broadcast %107 : vector<16x1xf32> to vector<16x128xf32>
    %109 = arith.subf %101, %108 : vector<16x128xf32>
    %110 = arith.mulf %109, %109 : vector<16x128xf32>
    %cst_38 = arith.constant dense<0.000000e+00> : vector<16xf32>
    %111 = vector.multi_reduction <add>, %110, %cst_38 [1] : vector<16x128xf32> to vector<16xf32>
    %112 = vector.shape_cast %111 : vector<16xf32> to vector<16x1xf32>
    %cst_39 = arith.constant 1.280000e+02 : f32
    %113 = vector.broadcast %cst_39 : f32 to vector<16x1xf32>
    %114 = arith.divf %112, %113 : vector<16x1xf32>
    %115 = vector.broadcast %107 : vector<16x1xf32> to vector<16x128xf32>
    %116 = arith.subf %101, %115 : vector<16x128xf32>
    %cst_40 = arith.constant 9.99999974E-6 : f32
    %117 = vector.broadcast %cst_40 : f32 to vector<16x1xf32>
    %118 = arith.addf %114, %117 : vector<16x1xf32>
    %119 = math.rsqrt %118 : vector<16x1xf32>
    %120 = vector.broadcast %119 : vector<16x1xf32> to vector<16x128xf32>
    %121 = arith.mulf %116, %120 : vector<16x128xf32>
    %122 = vector.broadcast %102 : vector<1x128xf32> to vector<16x128xf32>
    %123 = arith.mulf %121, %122 : vector<16x128xf32>
    %124 = vector.broadcast %103 : vector<1x128xf32> to vector<16x128xf32>
    %125 = arith.addf %123, %124 : vector<16x128xf32>
    %cst_41 = arith.constant dense<0.000000e+00> : vector<128xf32>
    %126 = vector.multi_reduction <add>, %125, %cst_41 [0] : vector<16x128xf32> to vector<128xf32>
    %127 = vector.shape_cast %126 : vector<128xf32> to vector<1x128xf32>
    %cst_42 = arith.constant 1.600000e+01 : f32
    %128 = vector.broadcast %cst_42 : f32 to vector<1x128xf32>
    %129 = arith.divf %127, %128 : vector<1x128xf32>
    %130 = arith.truncf %129 : vector<1x128xf32> to vector<1x128xbf16>
    %c0_43 = arith.constant 0 : index
    %c0_44 = arith.constant 0 : index
    %131 = vector.load %arg10[%c0_43, %c0_44] : memref<128x128xbf16, #tpu.memory_space<vmem>>, vector<128x128xbf16>
    %cst_45 = arith.constant dense<0.000000e+00> : vector<1x128xf32>
    %132 = tpu.matmul %130, %131, %cst_45 {dimension_numbers = #tpu.dot_dimension_numbers<[1], [0], [0], [1], [0, 0, 1, 1], [], []>} : vector<1x128xbf16>, vector<128x128xbf16>, vector<1x128xf32> -> vector<1x128xf32>
    %c0_46 = arith.constant 0 : index
    %c0_47 = arith.constant 0 : index
    %c0_48 = arith.constant 0 : index
    %133 = vector.load %arg2[%c0_46, %c0_47, %c0_48] : memref<1x8x128xf32, #tpu.memory_space<vmem>>, vector<1x8x128xf32>
    %134 = vector.shape_cast %133 : vector<1x8x128xf32> to vector<8x128xf32>
    %135 = vector.broadcast %132 : vector<1x128xf32> to vector<8x128xf32>
    %136 = arith.addf %134, %135 : vector<8x128xf32>
    %c0_49 = arith.constant 0 : index
    %c0_50 = arith.constant 0 : index
    %c0_51 = arith.constant 0 : index
    %137 = vector.load %arg3[%c0_49, %c0_50, %c0_51] : memref<1x1x8xf32, #tpu.memory_space<vmem>>, vector<1x1x8xf32>
    %138 = vector.shape_cast %137 : vector<1x1x8xf32> to vector<1x8xf32>
    %cst_52 = arith.constant 1.000000e+00 : f32
    %139 = vector.broadcast %cst_52 : f32 to vector<1x8xf32>
    %140 = arith.subf %138, %139 : vector<1x8xf32>
    %cst_53 = arith.constant 1.000000e+09 : f32
    %141 = vector.broadcast %cst_53 : f32 to vector<1x8xf32>
    %142 = arith.mulf %140, %141 : vector<1x8xf32>
    %c0_54 = arith.constant 0 : index
    %c0_55 = arith.constant 0 : index
    %143 = vector.load %arg11[%c0_54, %c0_55] : memref<8x128xf32, #tpu.memory_space<vmem>>, vector<8x128xf32>
    %144 = vector.extract_strided_slice %143 {offsets = [0, 0], sizes = [1, 128], strides = [1, 1]} : vector<8x128xf32> to vector<1x128xf32>
    %145 = vector.extract_strided_slice %143 {offsets = [1, 0], sizes = [1, 128], strides = [1, 1]} : vector<8x128xf32> to vector<1x128xf32>
    %cst_56 = arith.constant dense<0.000000e+00> : vector<8xf32>
    %146 = vector.multi_reduction <add>, %136, %cst_56 [1] : vector<8x128xf32> to vector<8xf32>
    %147 = vector.shape_cast %146 : vector<8xf32> to vector<8x1xf32>
    %cst_57 = arith.constant 1.280000e+02 : f32
    %148 = vector.broadcast %cst_57 : f32 to vector<8x1xf32>
    %149 = arith.divf %147, %148 : vector<8x1xf32>
    %150 = vector.broadcast %149 : vector<8x1xf32> to vector<8x128xf32>
    %151 = arith.subf %136, %150 : vector<8x128xf32>
    %152 = arith.mulf %151, %151 : vector<8x128xf32>
    %cst_58 = arith.constant dense<0.000000e+00> : vector<8xf32>
    %153 = vector.multi_reduction <add>, %152, %cst_58 [1] : vector<8x128xf32> to vector<8xf32>
    %154 = vector.shape_cast %153 : vector<8xf32> to vector<8x1xf32>
    %cst_59 = arith.constant 1.280000e+02 : f32
    %155 = vector.broadcast %cst_59 : f32 to vector<8x1xf32>
    %156 = arith.divf %154, %155 : vector<8x1xf32>
    %157 = vector.broadcast %149 : vector<8x1xf32> to vector<8x128xf32>
    %158 = arith.subf %136, %157 : vector<8x128xf32>
    %cst_60 = arith.constant 9.99999974E-6 : f32
    %159 = vector.broadcast %cst_60 : f32 to vector<8x1xf32>
    %160 = arith.addf %156, %159 : vector<8x1xf32>
    %161 = math.rsqrt %160 : vector<8x1xf32>
    %162 = vector.broadcast %161 : vector<8x1xf32> to vector<8x128xf32>
    %163 = arith.mulf %158, %162 : vector<8x128xf32>
    %164 = vector.broadcast %144 : vector<1x128xf32> to vector<8x128xf32>
    %165 = arith.mulf %163, %164 : vector<8x128xf32>
    %166 = vector.broadcast %145 : vector<1x128xf32> to vector<8x128xf32>
    %167 = arith.addf %165, %166 : vector<8x128xf32>
    %c0_61 = arith.constant 0 : index
    %c0_62 = arith.constant 0 : index
    %168 = vector.load %arg12[%c0_61, %c0_62] : memref<128x384xbf16, #tpu.memory_space<vmem>>, vector<128x384xbf16>
    %c0_63 = arith.constant 0 : index
    %c0_64 = arith.constant 0 : index
    %169 = vector.load %arg13[%c0_63, %c0_64] : memref<128x128xbf16, #tpu.memory_space<vmem>>, vector<128x128xbf16>
    %170 = arith.truncf %167 : vector<8x128xf32> to vector<8x128xbf16>
    %cst_65 = arith.constant dense<0.000000e+00> : vector<8x384xf32>
    %171 = tpu.matmul %170, %168, %cst_65 {dimension_numbers = #tpu.dot_dimension_numbers<[1], [0], [0], [1], [0, 0, 1, 1], [], []>} : vector<8x128xbf16>, vector<128x384xbf16>, vector<8x384xf32> -> vector<8x384xf32>
    %172 = vector.extract_strided_slice %171 {offsets = [0, 0], sizes = [8, 128], strides = [1, 1]} : vector<8x384xf32> to vector<8x128xf32>
    %173 = vector.extract_strided_slice %171 {offsets = [0, 128], sizes = [8, 128], strides = [1, 1]} : vector<8x384xf32> to vector<8x128xf32>
    %174 = vector.extract_strided_slice %171 {offsets = [0, 256], sizes = [8, 128], strides = [1, 1]} : vector<8x384xf32> to vector<8x128xf32>
    %175 = arith.truncf %172 : vector<8x128xf32> to vector<8x128xbf16>
    %176 = arith.truncf %173 : vector<8x128xf32> to vector<8x128xbf16>
    %cst_66 = arith.constant dense<0.000000e+00> : vector<8x8xf32>
    %177 = tpu.matmul %175, %176, %cst_66 {dimension_numbers = #tpu.dot_dimension_numbers<[1], [1], [0], [0], [0, 0, 1, 0], [], []>} : vector<8x128xbf16>, vector<8x128xbf16>, vector<8x8xf32> -> vector<8x8xf32>
    %178 = vector.broadcast %142 : vector<1x8xf32> to vector<8x8xf32>
    %179 = arith.addf %177, %178 : vector<8x8xf32>
    %cst_67 = arith.constant dense<0xFF800000> : vector<8xf32>
    %180 = vector.multi_reduction <maximumf>, %179, %cst_67 [1] : vector<8x8xf32> to vector<8xf32>
    %181 = vector.shape_cast %180 : vector<8xf32> to vector<8x1xf32>
    %182 = vector.broadcast %181 : vector<8x1xf32> to vector<8x8xf32>
    %183 = arith.subf %179, %182 : vector<8x8xf32>
    %184 = math.exp %183 : vector<8x8xf32>
    %cst_68 = arith.constant dense<0.000000e+00> : vector<8xf32>
    %185 = vector.multi_reduction <add>, %184, %cst_68 [1] : vector<8x8xf32> to vector<8xf32>
    %186 = vector.shape_cast %185 : vector<8xf32> to vector<8x1xf32>
    %187 = tpu.reciprocal %186 {approx = true} : vector<8x1xf32> -> vector<8x1xf32>
    %188 = vector.broadcast %187 : vector<8x1xf32> to vector<8x8xf32>
    %189 = arith.mulf %184, %188 : vector<8x8xf32>
    %190 = arith.truncf %189 : vector<8x8xf32> to vector<8x8xbf16>
    %191 = arith.truncf %174 : vector<8x128xf32> to vector<8x128xbf16>
    %cst_69 = arith.constant dense<0.000000e+00> : vector<8x128xf32>
    %192 = tpu.matmul %190, %191, %cst_69 {dimension_numbers = #tpu.dot_dimension_numbers<[1], [0], [0], [1], [0, 0, 1, 1], [], []>} : vector<8x8xbf16>, vector<8x128xbf16>, vector<8x128xf32> -> vector<8x128xf32>
    %193 = arith.truncf %192 : vector<8x128xf32> to vector<8x128xbf16>
    %cst_70 = arith.constant dense<0.000000e+00> : vector<8x128xf32>
    %194 = tpu.matmul %193, %169, %cst_70 {dimension_numbers = #tpu.dot_dimension_numbers<[1], [0], [0], [1], [0, 0, 1, 1], [], []>} : vector<8x128xbf16>, vector<128x128xbf16>, vector<8x128xf32> -> vector<8x128xf32>
    %195 = arith.addf %136, %194 : vector<8x128xf32>
    %196 = vector.extract_strided_slice %143 {offsets = [2, 0], sizes = [1, 128], strides = [1, 1]} : vector<8x128xf32> to vector<1x128xf32>
    %197 = vector.extract_strided_slice %143 {offsets = [3, 0], sizes = [1, 128], strides = [1, 1]} : vector<8x128xf32> to vector<1x128xf32>
    %cst_71 = arith.constant dense<0.000000e+00> : vector<8xf32>
    %198 = vector.multi_reduction <add>, %195, %cst_71 [1] : vector<8x128xf32> to vector<8xf32>
    %199 = vector.shape_cast %198 : vector<8xf32> to vector<8x1xf32>
    %cst_72 = arith.constant 1.280000e+02 : f32
    %200 = vector.broadcast %cst_72 : f32 to vector<8x1xf32>
    %201 = arith.divf %199, %200 : vector<8x1xf32>
    %202 = vector.broadcast %201 : vector<8x1xf32> to vector<8x128xf32>
    %203 = arith.subf %195, %202 : vector<8x128xf32>
    %204 = arith.mulf %203, %203 : vector<8x128xf32>
    %cst_73 = arith.constant dense<0.000000e+00> : vector<8xf32>
    %205 = vector.multi_reduction <add>, %204, %cst_73 [1] : vector<8x128xf32> to vector<8xf32>
    %206 = vector.shape_cast %205 : vector<8xf32> to vector<8x1xf32>
    %cst_74 = arith.constant 1.280000e+02 : f32
    %207 = vector.broadcast %cst_74 : f32 to vector<8x1xf32>
    %208 = arith.divf %206, %207 : vector<8x1xf32>
    %209 = vector.broadcast %201 : vector<8x1xf32> to vector<8x128xf32>
    %210 = arith.subf %195, %209 : vector<8x128xf32>
    %cst_75 = arith.constant 9.99999974E-6 : f32
    %211 = vector.broadcast %cst_75 : f32 to vector<8x1xf32>
    %212 = arith.addf %208, %211 : vector<8x1xf32>
    %213 = math.rsqrt %212 : vector<8x1xf32>
    %214 = vector.broadcast %213 : vector<8x1xf32> to vector<8x128xf32>
    %215 = arith.mulf %210, %214 : vector<8x128xf32>
    %216 = vector.broadcast %196 : vector<1x128xf32> to vector<8x128xf32>
    %217 = arith.mulf %215, %216 : vector<8x128xf32>
    %218 = vector.broadcast %197 : vector<1x128xf32> to vector<8x128xf32>
    %219 = arith.addf %217, %218 : vector<8x128xf32>
    %c0_76 = arith.constant 0 : index
    %c0_77 = arith.constant 0 : index
    %220 = vector.load %arg14[%c0_76, %c0_77] : memref<128x256xbf16, #tpu.memory_space<vmem>>, vector<128x256xbf16>
    %c0_78 = arith.constant 0 : index
    %c0_79 = arith.constant 0 : index
    %221 = vector.load %arg15[%c0_78, %c0_79] : memref<256x128xbf16, #tpu.memory_space<vmem>>, vector<256x128xbf16>
    %222 = arith.truncf %219 : vector<8x128xf32> to vector<8x128xbf16>
    %cst_80 = arith.constant dense<0.000000e+00> : vector<8x256xf32>
    %223 = tpu.matmul %222, %220, %cst_80 {dimension_numbers = #tpu.dot_dimension_numbers<[1], [0], [0], [1], [0, 0, 1, 1], [], []>} : vector<8x128xbf16>, vector<128x256xbf16>, vector<8x256xf32> -> vector<8x256xf32>
    %224 = arith.mulf %223, %223 : vector<8x256xf32>
    %225 = arith.mulf %223, %224 : vector<8x256xf32>
    %cst_81 = arith.constant 4.471500e-02 : f32
    %226 = vector.broadcast %cst_81 : f32 to vector<8x256xf32>
    %227 = arith.mulf %226, %225 : vector<8x256xf32>
    %228 = arith.addf %223, %227 : vector<8x256xf32>
    %cst_82 = arith.constant 0.797884583 : f32
    %229 = vector.broadcast %cst_82 : f32 to vector<8x256xf32>
    %230 = arith.mulf %229, %228 : vector<8x256xf32>
    %231 = math.tanh %230 : vector<8x256xf32>
    %cst_83 = arith.constant 1.000000e+00 : f32
    %232 = vector.broadcast %cst_83 : f32 to vector<8x256xf32>
    %233 = arith.addf %232, %231 : vector<8x256xf32>
    %cst_84 = arith.constant 5.000000e-01 : f32
    %234 = vector.broadcast %cst_84 : f32 to vector<8x256xf32>
    %235 = arith.mulf %234, %233 : vector<8x256xf32>
    %236 = arith.mulf %223, %235 : vector<8x256xf32>
    %237 = arith.truncf %236 : vector<8x256xf32> to vector<8x256xbf16>
    %cst_85 = arith.constant dense<0.000000e+00> : vector<8x128xf32>
    %238 = tpu.matmul %237, %221, %cst_85 {dimension_numbers = #tpu.dot_dimension_numbers<[1], [0], [0], [1], [0, 0, 1, 1], [], []>} : vector<8x256xbf16>, vector<256x128xbf16>, vector<8x128xf32> -> vector<8x128xf32>
    %239 = arith.addf %195, %238 : vector<8x128xf32>
    %240 = vector.extract_strided_slice %143 {offsets = [4, 0], sizes = [1, 128], strides = [1, 1]} : vector<8x128xf32> to vector<1x128xf32>
    %241 = vector.extract_strided_slice %143 {offsets = [5, 0], sizes = [1, 128], strides = [1, 1]} : vector<8x128xf32> to vector<1x128xf32>
    %cst_86 = arith.constant dense<0.000000e+00> : vector<8xf32>
    %242 = vector.multi_reduction <add>, %239, %cst_86 [1] : vector<8x128xf32> to vector<8xf32>
    %243 = vector.shape_cast %242 : vector<8xf32> to vector<8x1xf32>
    %cst_87 = arith.constant 1.280000e+02 : f32
    %244 = vector.broadcast %cst_87 : f32 to vector<8x1xf32>
    %245 = arith.divf %243, %244 : vector<8x1xf32>
    %246 = vector.broadcast %245 : vector<8x1xf32> to vector<8x128xf32>
    %247 = arith.subf %239, %246 : vector<8x128xf32>
    %248 = arith.mulf %247, %247 : vector<8x128xf32>
    %cst_88 = arith.constant dense<0.000000e+00> : vector<8xf32>
    %249 = vector.multi_reduction <add>, %248, %cst_88 [1] : vector<8x128xf32> to vector<8xf32>
    %250 = vector.shape_cast %249 : vector<8xf32> to vector<8x1xf32>
    %cst_89 = arith.constant 1.280000e+02 : f32
    %251 = vector.broadcast %cst_89 : f32 to vector<8x1xf32>
    %252 = arith.divf %250, %251 : vector<8x1xf32>
    %253 = vector.broadcast %245 : vector<8x1xf32> to vector<8x128xf32>
    %254 = arith.subf %239, %253 : vector<8x128xf32>
    %cst_90 = arith.constant 9.99999974E-6 : f32
    %255 = vector.broadcast %cst_90 : f32 to vector<8x1xf32>
    %256 = arith.addf %252, %255 : vector<8x1xf32>
    %257 = math.rsqrt %256 : vector<8x1xf32>
    %258 = vector.broadcast %257 : vector<8x1xf32> to vector<8x128xf32>
    %259 = arith.mulf %254, %258 : vector<8x128xf32>
    %260 = vector.broadcast %240 : vector<1x128xf32> to vector<8x128xf32>
    %261 = arith.mulf %259, %260 : vector<8x128xf32>
    %262 = vector.broadcast %241 : vector<1x128xf32> to vector<8x128xf32>
    %263 = arith.addf %261, %262 : vector<8x128xf32>
    %264 = arith.truncf %263 : vector<8x128xf32> to vector<8x128xbf16>
    %c0_91 = arith.constant 0 : index
    %c0_92 = arith.constant 0 : index
    %265 = vector.load %arg16[%c0_91, %c0_92] : memref<128x128xbf16, #tpu.memory_space<vmem>>, vector<128x128xbf16>
    %cst_93 = arith.constant dense<0.000000e+00> : vector<8x128xf32>
    %266 = tpu.matmul %264, %265, %cst_93 {dimension_numbers = #tpu.dot_dimension_numbers<[1], [0], [0], [1], [0, 0, 1, 1], [], []>} : vector<8x128xbf16>, vector<128x128xbf16>, vector<8x128xf32> -> vector<8x128xf32>
    %c0_94 = arith.constant 0 : index
    %c0_95 = arith.constant 0 : index
    %c0_96 = arith.constant 0 : index
    %267 = vector.load %arg17[%c0_94, %c0_95, %c0_96] : memref<1x8x128xf32, #tpu.memory_space<vmem>>, vector<1x8x128xf32>
    %268 = vector.shape_cast %267 : vector<1x8x128xf32> to vector<8x128xf32>
    %269 = vector.shape_cast %266 : vector<8x128xf32> to vector<1x8x128xf32>
    tpu.vector_store %arg17[%c0_94, %c0_95, %c0_96], %269 {strides = array<i32>} : memref<1x8x128xf32, #tpu.memory_space<vmem>>, vector<1x8x128xf32>,
    return
  }
  func.func @transform_0(%arg0: i32) -> (i32, i32, i32) {
    %c0_i32 = arith.constant 0 : i32
    %c0_i32_0 = arith.constant 0 : i32
    %c0_i32_1 = arith.constant 0 : i32
    return %arg0, %c0_i32, %c0_i32_0 : i32, i32, i32
  }
  func.func @transform_1(%arg0: i32) -> (i32, i32, i32) {
    %c0_i32 = arith.constant 0 : i32
    %c0_i32_0 = arith.constant 0 : i32
    %c0_i32_1 = arith.constant 0 : i32
    return %arg0, %c0_i32, %c0_i32_0 : i32, i32, i32
  }
  func.func @transform_2(%arg0: i32) -> (i32, i32, i32) {
    %c0_i32 = arith.constant 0 : i32
    %c0_i32_0 = arith.constant 0 : i32
    %c0_i32_1 = arith.constant 0 : i32
    return %arg0, %c0_i32, %c0_i32_0 : i32, i32, i32
  }
  func.func @transform_3(%arg0: i32) -> (i32, i32) {
    %c0_i32 = arith.constant 0 : i32
    %c0_i32_0 = arith.constant 0 : i32
    %c0_i32_1 = arith.constant 0 : i32
    return %c0_i32, %c0_i32_0 : i32, i32
  }
  func.func @transform_4(%arg0: i32) -> (i32, i32) {
    %c0_i32 = arith.constant 0 : i32
    %c0_i32_0 = arith.constant 0 : i32
    %c0_i32_1 = arith.constant 0 : i32
    return %c0_i32, %c0_i32_0 : i32, i32
  }
  func.func @transform_5(%arg0: i32) -> (i32, i32) {
    %c0_i32 = arith.constant 0 : i32
    %c0_i32_0 = arith.constant 0 : i32
    %c0_i32_1 = arith.constant 0 : i32
    return %c0_i32, %c0_i32_0 : i32, i32
  }
  func.func @transform_6(%arg0: i32) -> (i32, i32) {
    %c0_i32 = arith.constant 0 : i32
    %c0_i32_0 = arith.constant 0 : i32
    %c0_i32_1 = arith.constant 0 : i32
    return %c0_i32, %c0_i32_0 : i32, i32
  }
  func.func @transform_7(%arg0: i32) -> (i32, i32) {
    %c0_i32 = arith.constant 0 : i32
    %c0_i32_0 = arith.constant 0 : i32
    %c0_i32_1 = arith.constant 0 : i32
    return %c0_i32, %c0_i32_0 : i32, i32
  }
  func.func @transform_8(%arg0: i32) -> (i32, i32) {
    %c0_i32 = arith.constant 0 : i32
    %c0_i32_0 = arith.constant 0 : i32
    %c0_i32_1 = arith.constant 0 : i32
    return %c0_i32, %c0_i32_0 : i32, i32
  }
  func.func @transform_9(%arg0: i32) -> (i32, i32) {
    %c0_i32 = arith.constant 0 : i32
    %c0_i32_0 = arith.constant 0 : i32
    %c0_i32_1 = arith.constant 0 : i32
    return %c0_i32, %c0_i32_0 : i32, i32
  }
  func.func @transform_10(%arg0: i32) -> (i32, i32) {
    %c0_i32 = arith.constant 0 : i32
    %c0_i32_0 = arith.constant 0 : i32
    %c0_i32_1 = arith.constant 0 : i32
    return %c0_i32, %c0_i32_0 : i32, i32
  }
  func.func @transform_11(%arg0: i32) -> (i32, i32) {
    %c0_i32 = arith.constant 0 : i32
    %c0_i32_0 = arith.constant 0 : i32
    %c0_i32_1 = arith.constant 0 : i32
    return %c0_i32, %c0_i32_0 : i32, i32
  }
  func.func @transform_12(%arg0: i32) -> (i32, i32) {
    %c0_i32 = arith.constant 0 : i32
    %c0_i32_0 = arith.constant 0 : i32
    %c0_i32_1 = arith.constant 0 : i32
    return %c0_i32, %c0_i32_0 : i32, i32
  }
  func.func @transform_13(%arg0: i32) -> (i32, i32) {
    %c0_i32 = arith.constant 0 : i32
    %c0_i32_0 = arith.constant 0 : i32
    %c0_i32_1 = arith.constant 0 : i32
    return %c0_i32, %c0_i32_0 : i32, i32
  }
  func.func @transform_14(%arg0: i32) -> (i32, i32) {
    %c0_i32 = arith.constant 0 : i32
    %c0_i32_0 = arith.constant 0 : i32
    %c0_i32_1 = arith.constant 0 : i32
    return %c0_i32, %c0_i32_0 : i32, i32
  }
  func.func @transform_15(%arg0: i32) -> (i32, i32) {
    %c0_i32 = arith.constant 0 : i32
    %c0_i32_0 = arith.constant 0 : i32
    %c0_i32_1 = arith.constant 0 : i32
    return %c0_i32, %c0_i32_0 : i32, i32
  }
  func.func @transform_16(%arg0: i32) -> (i32, i32, i32) {
    %c0_i32 = arith.constant 0 : i32
    %c0_i32_0 = arith.constant 0 : i32
    %c0_i32_1 = arith.constant 0 : i32
    return %arg0, %c0_i32, %c0_i32_0 : i32, i32, i32
  }
}

</mosaic_0001>

<llo_original>
// kernel: tpu_custom_call.1
$region0: #{tpu_custom_call.1}
  #allocation0 [shape = 'u32[]', space=smem, size = 0x4, offset = 0x4, fixed_abs, tag = 'smem constant byte address 0x4 - core index']
  #allocation1 [shape = 'u32[144,128]{1,0:T(1,128)}', space=vmem, size = 0x12000, scoped, tag = 'internal scratch']
  %s0 = inlined_call_operand.hbm [shape: bf16[2,16,128], index: 0, kind: input, shape index: {}]
  %s1 = inlined_call_operand.hbm [shape: f32[2,8,128], index: 1, kind: input, shape index: {}]
  %s2 = inlined_call_operand.vmem [shape: f32[2,1,8], index: 2, kind: input, shape index: {}]
  %s3 = inlined_call_operand.hbm [shape: bf16[128,128], index: 3, kind: input, shape index: {}]
  %s4 = inlined_call_operand.hbm [shape: f32[8,128], index: 4, kind: input, shape index: {}]
  %s5 = inlined_call_operand.hbm [shape: bf16[128,384], index: 5, kind: input, shape index: {}]
  %s6 = inlined_call_operand.hbm [shape: bf16[128,128], index: 6, kind: input, shape index: {}]
  %s7 = inlined_call_operand.hbm [shape: bf16[128,256], index: 7, kind: input, shape index: {}]
  %s8 = inlined_call_operand.hbm [shape: bf16[256,128], index: 8, kind: input, shape index: {}]
  %s9 = inlined_call_operand.hbm [shape: bf16[128,128], index: 9, kind: input, shape index: {}]
  %s10 = inlined_call_operand.vmem [shape: f32[8,128], index: 10, kind: input, shape index: {}]
  %s11 = inlined_call_operand.hbm [shape: bf16[128,384], index: 11, kind: input, shape index: {}]
  %s12 = inlined_call_operand.hbm [shape: bf16[128,128], index: 12, kind: input, shape index: {}]
  %s13 = inlined_call_operand.hbm [shape: bf16[128,256], index: 13, kind: input, shape index: {}]
  %s14 = inlined_call_operand.hbm [shape: bf16[256,128], index: 14, kind: input, shape index: {}]
  %s15 = inlined_call_operand.hbm [shape: bf16[128,128], index: 15, kind: input, shape index: {}]
  %s16 = inlined_call_operand.hbm [shape: f32[2,8,128], index: 16, kind: output, shape index: {}]
  %s17 = sld [smem:[#allocation0]]
  $region153: #{tpu_custom_call.1} parent=0
    _
  %s19 = ssub.s32 1, %s17
  %s20 = scalar_select 0, %s19, %s17
  $region1: #{tpu_custom_call.1} parent=0
    #allocation2 [shape = 'u8[8192]{0}', space=vmem, size = 0x2000, scoped, tag = 'input window, operand 0']
    #allocation3 [shape = 's32[2]{0}', space=sflag, size = 0x8, scoped, tag = 'scoped memory for tpu_custom_call.1']
    #allocation4 [shape = 's32[2]{0}', space=sflag, size = 0x8, scoped, tag = 'scoped memory for tpu_custom_call.1']
    #allocation5 [shape = 'u8[8192]{0}', space=vmem, size = 0x2000, scoped, tag = 'input window, operand 1']
    #allocation6 [shape = 's32[2]{0}', space=sflag, size = 0x8, scoped, tag = 'scoped memory for tpu_custom_call.1']
    #allocation7 [shape = 'u8[32768]{0}', space=vmem, size = 0x8000, scoped, tag = 'input window, operand 3, single buffered']
    #allocation8 [shape = 'u8[4096]{0}', space=vmem, size = 0x1000, scoped, tag = 'input window, operand 4, single buffered']
    #allocation9 [shape = 's32[1]{0}', space=sflag, size = 0x4, scoped, tag = 'scoped memory for tpu_custom_call.1']
    #allocation10 [shape = 'u8[98304]{0}', space=vmem, size = 0x18000, scoped, tag = 'input window, operand 5, single buffered']
    #allocation11 [shape = 'u8[32768]{0}', space=vmem, size = 0x8000, scoped, tag = 'input window, operand 6, single buffered']
    #allocation12 [shape = 's32[1]{0}', space=sflag, size = 0x4, scoped, tag = 'scoped memory for tpu_custom_call.1']
    #allocation13 [shape = 'u8[65536]{0}', space=vmem, size = 0x10000, scoped, tag = 'input window, operand 7, single buffered']
    #allocation14 [shape = 'u8[65536]{0}', space=vmem, size = 0x10000, scoped, tag = 'input window, operand 8, single buffered']
    #allocation15 [shape = 's32[1]{0}', space=sflag, size = 0x4, scoped, tag = 'scoped memory for tpu_custom_call.1']
    #allocation16 [shape = 'u8[32768]{0}', space=vmem, size = 0x8000, scoped, tag = 'input window, operand 9, single buffered']
    #allocation17 [shape = 'u8[98304]{0}', space=vmem, size = 0x18000, scoped, tag = 'input window, operand 11, single buffered']
    #allocation18 [shape = 's32[1]{0}', space=sflag, size = 0x4, scoped, tag = 'scoped memory for tpu_custom_call.1']
    #allocation19 [shape = 'u8[32768]{0}', space=vmem, size = 0x8000, scoped, tag = 'input window, operand 12, single buffered']
    #allocation20 [shape = 'u8[65536]{0}', space=vmem, size = 0x10000, scoped, tag = 'input window, operand 13, single buffered']
    #allocation21 [shape = 's32[1]{0}', space=sflag, size = 0x4, scoped, tag = 'scoped memory for tpu_custom_call.1']
    #allocation22 [shape = 'u8[65536]{0}', space=vmem, size = 0x10000, scoped, tag = 'input window, operand 14, single buffered']
    #allocation23 [shape = 'u8[32768]{0}', space=vmem, size = 0x8000, scoped, tag = 'input window, operand 15, single buffered']
    #allocation24 [shape = 's32[1]{0}', space=sflag, size = 0x4, scoped, tag = 'scoped memory for tpu_custom_call.1']
    #allocation25 [shape = 'u8[8192]{0}', space=vmem, size = 0x2000, scoped, tag = 'output window, operand 0']
    %21 = vsyncpa [#allocation3], 0
    %s22 = scalar_lea.sflag [#allocation3], 1
    %23 = vsyncpa %s22, 0
    %24 = vsyncpa [#allocation6], 0
    %s25 = scalar_lea.sflag [#allocation6], 1
    %26 = vsyncpa %s25, 0
    %27 = vsyncpa [#allocation9], 0
    %28 = vsyncpa [#allocation12], 0
    %29 = vsyncpa [#allocation15], 0
    %30 = vsyncpa [#allocation18], 0
    %31 = vsyncpa [#allocation21], 0
    %32 = vsyncpa [#allocation24], 0
    %33 = vsyncpa [#allocation4], 0
    %s34 = scalar_lea.sflag [#allocation4], 1
    %35 = vsyncpa %s34, 0
    loop: start=0, step=1, limit=4
    $region2: #{tpu_custom_call.1} parent=1 // loop_pre_header
      _
    $region3: #{tpu_custom_call.1} parent=1 // loop_header
      %s37 = sphi 0, %s41
      %p38 = scmp.ge.s32.totalorder %s37, 4
      %s47 = sphi 0, %s49
      %s50 = sphi 0, %s47
      %s51 = sphi 0, %s50
      %s67 = sphi 0, %s51
      %s73 = sphi 0, %s75
      %s76 = sphi 0, %s73
      %s77 = sphi 0, %s76
      %s93 = sphi 0, %s77
      %s99 = sphi 0, %s101
      %s102 = sphi 0, %s99
      %s103 = sphi 0, %s102
      %s119 = sphi 0, %s103
      %s123 = sphi 0, %s123
      %s125 = sphi 0, %s123
      %s126 = sphi 0, %s125
      %s140 = sphi 0, %s126
      %s144 = sphi 0, %s144
      %s146 = sphi 0, %s144
      %s147 = sphi 0, %s146
      %s161 = sphi 0, %s147
      %s165 = sphi 0, %s165
      %s167 = sphi 0, %s165
      %s168 = sphi 0, %s167
      %s182 = sphi 0, %s168
      %s186 = sphi 0, %s186
      %s188 = sphi 0, %s186
      %s189 = sphi 0, %s188
      %s203 = sphi 0, %s189
      %s207 = sphi 0, %s207
      %s209 = sphi 0, %s207
      %s210 = sphi 0, %s209
      %s224 = sphi 0, %s210
      %s228 = sphi 0, %s228
      %s230 = sphi 0, %s228
      %s231 = sphi 0, %s230
      %s245 = sphi 0, %s231
      %s249 = sphi 0, %s249
      %s251 = sphi 0, %s249
      %s252 = sphi 0, %s251
      %s266 = sphi 0, %s252
      %s270 = sphi 0, %s270
      %s272 = sphi 0, %s270
      %s273 = sphi 0, %s272
      %s287 = sphi 0, %s273
      %s291 = sphi 0, %s291
      %s293 = sphi 0, %s291
      %s294 = sphi 0, %s293
      %s308 = sphi 0, %s294
      %s312 = sphi 0, %s312
      %s314 = sphi 0, %s312
      %s315 = sphi 0, %s314
      %s329 = sphi 0, %s315
      %s333 = sphi 0, %s333
      %s335 = sphi 0, %s333
      %s336 = sphi 0, %s335
      %s350 = sphi 0, %s336
      %s354 = sphi 0, %s354
      %s356 = sphi 0, %s354
      %s357 = sphi 0, %s356
      %s371 = sphi 0, %s357
      %s375 = sphi 0, %s375
      %s377 = sphi 0, %s375
      %s378 = sphi 0, %s377
      %s392 = sphi 0, %s378
      %s398 = sphi 0, %s400
      %s401 = sphi 0, %s398
      %s402 = sphi 0, %s401
      %s418 = sphi 0, %s402
    $region4: #{tpu_custom_call.1} parent=1 // loop_header_branch
      %40 = sbr.rel (%p38) target = $region8
    $region5: #{tpu_custom_call.1} parent=1 // loop_body
      %s42 = ssub.s32 %s37, 1
      %s43 = ssub.s32 %s37, 2
      %s44 = sadd.s32 %s37, 1
      %s45 = ssub.s32 %s37, %s44
      %p46 = scmp.eq.s32.totalorder %s45, 0
      %s48 = sadd.s32 %s47, 1
      %s49 = scalar_select %p46, %s47, %s48
      %p52 = pneg %p46
      %p53 = scmp.eq.s32.totalorder %s37, 1
      %p54 = por %p52, %p53
      %p55 = scmp.ne.s32.totalorder %s47, %s50
      %p56 = scmp.eq.s32.totalorder %s37, 0
      %p57 = por %p55, %p56
      %p58 = scmp.ne.s32.totalorder %s47, %s50
      %p59 = scmp.eq.s32.totalorder %s42, 1
      %p60 = por %p58, %p59
      %p61 = scmp.ne.s32.totalorder %s50, %s51
      %p62 = scmp.eq.s32.totalorder %s42, 0
      %p63 = por %p61, %p62
      %p64 = scmp.ne.s32.totalorder %s50, %s51
      %p65 = scmp.eq.s32.totalorder %s43, 1
      %p66 = por %p64, %p65
      %p68 = scmp.ne.s32.totalorder %s51, %s67
      %p69 = scmp.eq.s32.totalorder %s43, 0
      %p70 = por %p68, %p69
      %s71 = ssub.s32 %s37, %s44
      %p72 = scmp.eq.s32.totalorder %s71, 0
      %s74 = sadd.s32 %s73, 1
      %s75 = scalar_select %p72, %s73, %s74
      %p78 = pneg %p72
      %p79 = scmp.eq.s32.totalorder %s37, 1
      %p80 = por %p78, %p79
      %p81 = scmp.ne.s32.totalorder %s73, %s76
      %p82 = scmp.eq.s32.totalorder %s37, 0
      %p83 = por %p81, %p82
      %p84 = scmp.ne.s32.totalorder %s73, %s76
      %p85 = scmp.eq.s32.totalorder %s42, 1
      %p86 = por %p84, %p85
      %p87 = scmp.ne.s32.totalorder %s76, %s77
      %p88 = scmp.eq.s32.totalorder %s42, 0
      %p89 = por %p87, %p88
      %p90 = scmp.ne.s32.totalorder %s76, %s77
      %p91 = scmp.eq.s32.totalorder %s43, 1
      %p92 = por %p90, %p91
      %p94 = scmp.ne.s32.totalorder %s77, %s93
      %p95 = scmp.eq.s32.totalorder %s43, 0
      %p96 = por %p94, %p95
      %s97 = ssub.s32 %s37, %s44
      %p98 = scmp.eq.s32.totalorder %s97, 0
      %s100 = sadd.s32 %s99, 1
      %s101 = scalar_select %p98, %s99, %s100
      %p104 = pneg %p98
      %p105 = scmp.eq.s32.totalorder %s37, 1
      %p106 = por %p104, %p105
      %p107 = scmp.ne.s32.totalorder %s99, %s102
      %p108 = scmp.eq.s32.totalorder %s37, 0
      %p109 = por %p107, %p108
      %p110 = scmp.ne.s32.totalorder %s99, %s102
      %p111 = scmp.eq.s32.totalorder %s42, 1
      %p112 = por %p110, %p111
      %p113 = scmp.ne.s32.totalorder %s102, %s103
      %p114 = scmp.eq.s32.totalorder %s42, 0
      %p115 = por %p113, %p114
      %p116 = scmp.ne.s32.totalorder %s102, %s103
      %p117 = scmp.eq.s32.totalorder %s43, 1
      %p118 = por %p116, %p117
      %p120 = scmp.ne.s32.totalorder %s103, %s119
      %p121 = scmp.eq.s32.totalorder %s43, 0
      %p122 = por %p120, %p121
      %s124 = sadd.s32 %s123, 1
      %p127 = scmp.eq.s32.totalorder %s37, 1
      %p128 = scmp.ne.s32.totalorder %s123, %s125
      %p129 = scmp.eq.s32.totalorder %s37, 0
      %p130 = por %p128, %p129
      %p131 = scmp.ne.s32.totalorder %s123, %s125
      %p132 = scmp.eq.s32.totalorder %s42, 1
      %p133 = por %p131, %p132
      %p134 = scmp.ne.s32.totalorder %s125, %s126
      %p135 = scmp.eq.s32.totalorder %s42, 0
      %p136 = por %p134, %p135
      %p137 = scmp.ne.s32.totalorder %s125, %s126
      %p138 = scmp.eq.s32.totalorder %s43, 1
      %p139 = por %p137, %p138
      %p141 = scmp.ne.s32.totalorder %s126, %s140
      %p142 = scmp.eq.s32.totalorder %s43, 0
      %p143 = por %p141, %p142
      %s145 = sadd.s32 %s144, 1
      %p148 = scmp.eq.s32.totalorder %s37, 1
      %p149 = scmp.ne.s32.totalorder %s144, %s146
      %p150 = scmp.eq.s32.totalorder %s37, 0
      %p151 = por %p149, %p150
      %p152 = scmp.ne.s32.totalorder %s144, %s146
      %p153 = scmp.eq.s32.totalorder %s42, 1
      %p154 = por %p152, %p153
      %p155 = scmp.ne.s32.totalorder %s146, %s147
      %p156 = scmp.eq.s32.totalorder %s42, 0
      %p157 = por %p155, %p156
      %p158 = scmp.ne.s32.totalorder %s146, %s147
      %p159 = scmp.eq.s32.totalorder %s43, 1
      %p160 = por %p158, %p159
      %p162 = scmp.ne.s32.totalorder %s147, %s161
      %p163 = scmp.eq.s32.totalorder %s43, 0
      %p164 = por %p162, %p163
      %s166 = sadd.s32 %s165, 1
      %p169 = scmp.eq.s32.totalorder %s37, 1
      %p170 = scmp.ne.s32.totalorder %s165, %s167
      %p171 = scmp.eq.s32.totalorder %s37, 0
      %p172 = por %p170, %p171
      %p173 = scmp.ne.s32.totalorder %s165, %s167
      %p174 = scmp.eq.s32.totalorder %s42, 1
      %p175 = por %p173, %p174
      %p176 = scmp.ne.s32.totalorder %s167, %s168
      %p177 = scmp.eq.s32.totalorder %s42, 0
      %p178 = por %p176, %p177
      %p179 = scmp.ne.s32.totalorder %s167, %s168
      %p180 = scmp.eq.s32.totalorder %s43, 1
      %p181 = por %p179, %p180
      %p183 = scmp.ne.s32.totalorder %s168, %s182
      %p184 = scmp.eq.s32.totalorder %s43, 0
      %p185 = por %p183, %p184
      %s187 = sadd.s32 %s186, 1
      %p190 = scmp.eq.s32.totalorder %s37, 1
      %p191 = scmp.ne.s32.totalorder %s186, %s188
      %p192 = scmp.eq.s32.totalorder %s37, 0
      %p193 = por %p191, %p192
      %p194 = scmp.ne.s32.totalorder %s186, %s188
      %p195 = scmp.eq.s32.totalorder %s42, 1
      %p196 = por %p194, %p195
      %p197 = scmp.ne.s32.totalorder %s188, %s189
      %p198 = scmp.eq.s32.totalorder %s42, 0
      %p199 = por %p197, %p198
      %p200 = scmp.ne.s32.totalorder %s188, %s189
      %p201 = scmp.eq.s32.totalorder %s43, 1
      %p202 = por %p200, %p201
      %p204 = scmp.ne.s32.totalorder %s189, %s203
      %p205 = scmp.eq.s32.totalorder %s43, 0
      %p206 = por %p204, %p205
      %s208 = sadd.s32 %s207, 1
      %p211 = scmp.eq.s32.totalorder %s37, 1
      %p212 = scmp.ne.s32.totalorder %s207, %s209
      %p213 = scmp.eq.s32.totalorder %s37, 0
      %p214 = por %p212, %p213
      %p215 = scmp.ne.s32.totalorder %s207, %s209
      %p216 = scmp.eq.s32.totalorder %s42, 1
      %p217 = por %p215, %p216
      %p218 = scmp.ne.s32.totalorder %s209, %s210
      %p219 = scmp.eq.s32.totalorder %s42, 0
      %p220 = por %p218, %p219
      %p221 = scmp.ne.s32.totalorder %s209, %s210
      %p222 = scmp.eq.s32.totalorder %s43, 1
      %p223 = por %p221, %p222
      %p225 = scmp.ne.s32.totalorder %s210, %s224
      %p226 = scmp.eq.s32.totalorder %s43, 0
      %p227 = por %p225, %p226
      %s229 = sadd.s32 %s228, 1
      %p232 = scmp.eq.s32.totalorder %s37, 1
      %p233 = scmp.ne.s32.totalorder %s228, %s230
      %p234 = scmp.eq.s32.totalorder %s37, 0
      %p235 = por %p233, %p234
      %p236 = scmp.ne.s32.totalorder %s228, %s230
      %p237 = scmp.eq.s32.totalorder %s42, 1
      %p238 = por %p236, %p237
      %p239 = scmp.ne.s32.totalorder %s230, %s231
      %p240 = scmp.eq.s32.totalorder %s42, 0
      %p241 = por %p239, %p240
      %p242 = scmp.ne.s32.totalorder %s230, %s231
      %p243 = scmp.eq.s32.totalorder %s43, 1
      %p244 = por %p242, %p243
      %p246 = scmp.ne.s32.totalorder %s231, %s245
      %p247 = scmp.eq.s32.totalorder %s43, 0
      %p248 = por %p246, %p247
      %s250 = sadd.s32 %s249, 1
      %p253 = scmp.eq.s32.totalorder %s37, 1
      %p254 = scmp.ne.s32.totalorder %s249, %s251
      %p255 = scmp.eq.s32.totalorder %s37, 0
      %p256 = por %p254, %p255
      %p257 = scmp.ne.s32.totalorder %s249, %s251
      %p258 = scmp.eq.s32.totalorder %s42, 1
      %p259 = por %p257, %p258
      %p260 = scmp.ne.s32.totalorder %s251, %s252
      %p261 = scmp.eq.s32.totalorder %s42, 0
      %p262 = por %p260, %p261
      %p263 = scmp.ne.s32.totalorder %s251, %s252
      %p264 = scmp.eq.s32.totalorder %s43, 1
      %p265 = por %p263, %p264
      %p267 = scmp.ne.s32.totalorder %s252, %s266
      %p268 = scmp.eq.s32.totalorder %s43, 0
      %p269 = por %p267, %p268
      %s271 = sadd.s32 %s270, 1
      %p274 = scmp.eq.s32.totalorder %s37, 1
      %p275 = scmp.ne.s32.totalorder %s270, %s272
      %p276 = scmp.eq.s32.totalorder %s37, 0
      %p277 = por %p275, %p276
      %p278 = scmp.ne.s32.totalorder %s270, %s272
      %p279 = scmp.eq.s32.totalorder %s42, 1
      %p280 = por %p278, %p279
      %p281 = scmp.ne.s32.totalorder %s272, %s273
      %p282 = scmp.eq.s32.totalorder %s42, 0
      %p283 = por %p281, %p282
      %p284 = scmp.ne.s32.totalorder %s272, %s273
      %p285 = scmp.eq.s32.totalorder %s43, 1
      %p286 = por %p284, %p285
      %p288 = scmp.ne.s32.totalorder %s273, %s287
      %p289 = scmp.eq.s32.totalorder %s43, 0
      %p290 = por %p288, %p289
      %s292 = sadd.s32 %s291, 1
      %p295 = scmp.eq.s32.totalorder %s37, 1
      %p296 = scmp.ne.s32.totalorder %s291, %s293
      %p297 = scmp.eq.s32.totalorder %s37, 0
      %p298 = por %p296, %p297
      %p299 = scmp.ne.s32.totalorder %s291, %s293
      %p300 = scmp.eq.s32.totalorder %s42, 1
      %p301 = por %p299, %p300
      %p302 = scmp.ne.s32.totalorder %s293, %s294
      %p303 = scmp.eq.s32.totalorder %s42, 0
      %p304 = por %p302, %p303
      %p305 = scmp.ne.s32.totalorder %s293, %s294
      %p306 = scmp.eq.s32.totalorder %s43, 1
      %p307 = por %p305, %p306
      %p309 = scmp.ne.s32.totalorder %s294, %s308
      %p310 = scmp.eq.s32.totalorder %s43, 0
      %p311 = por %p309, %p310
      %s313 = sadd.s32 %s312, 1
      %p316 = scmp.eq.s32.totalorder %s37, 1
      %p317 = scmp.ne.s32.totalorder %s312, %s314
      %p318 = scmp.eq.s32.totalorder %s37, 0
      %p319 = por %p317, %p318
      %p320 = scmp.ne.s32.totalorder %s312, %s314
      %p321 = scmp.eq.s32.totalorder %s42, 1
      %p322 = por %p320, %p321
      %p323 = scmp.ne.s32.totalorder %s314, %s315
      %p324 = scmp.eq.s32.totalorder %s42, 0
      %p325 = por %p323, %p324
      %p326 = scmp.ne.s32.totalorder %s314, %s315
      %p327 = scmp.eq.s32.totalorder %s43, 1
      %p328 = por %p326, %p327
      %p330 = scmp.ne.s32.totalorder %s315, %s329
      %p331 = scmp.eq.s32.totalorder %s43, 0
      %p332 = por %p330, %p331
      %s334 = sadd.s32 %s333, 1
      %p337 = scmp.eq.s32.totalorder %s37, 1
      %p338 = scmp.ne.s32.totalorder %s333, %s335
      %p339 = scmp.eq.s32.totalorder %s37, 0
      %p340 = por %p338, %p339
      %p341 = scmp.ne.s32.totalorder %s333, %s335
      %p342 = scmp.eq.s32.totalorder %s42, 1
      %p343 = por %p341, %p342
      %p344 = scmp.ne.s32.totalorder %s335, %s336
      %p345 = scmp.eq.s32.totalorder %s42, 0
      %p346 = por %p344, %p345
      %p347 = scmp.ne.s32.totalorder %s335, %s336
      %p348 = scmp.eq.s32.totalorder %s43, 1
      %p349 = por %p347, %p348
      %p351 = scmp.ne.s32.totalorder %s336, %s350
      %p352 = scmp.eq.s32.totalorder %s43, 0
      %p353 = por %p351, %p352
      %s355 = sadd.s32 %s354, 1
      %p358 = scmp.eq.s32.totalorder %s37, 1
      %p359 = scmp.ne.s32.totalorder %s354, %s356
      %p360 = scmp.eq.s32.totalorder %s37, 0
      %p361 = por %p359, %p360
      %p362 = scmp.ne.s32.totalorder %s354, %s356
      %p363 = scmp.eq.s32.totalorder %s42, 1
      %p364 = por %p362, %p363
      %p365 = scmp.ne.s32.totalorder %s356, %s357
      %p366 = scmp.eq.s32.totalorder %s42, 0
      %p367 = por %p365, %p366
      %p368 = scmp.ne.s32.totalorder %s356, %s357
      %p369 = scmp.eq.s32.totalorder %s43, 1
      %p370 = por %p368, %p369
      %p372 = scmp.ne.s32.totalorder %s357, %s371
      %p373 = scmp.eq.s32.totalorder %s43, 0
      %p374 = por %p372, %p373
      %s376 = sadd.s32 %s375, 1
      %p379 = scmp.eq.s32.totalorder %s37, 1
      %p380 = scmp.ne.s32.totalorder %s375, %s377
      %p381 = scmp.eq.s32.totalorder %s37, 0
      %p382 = por %p380, %p381
      %p383 = scmp.ne.s32.totalorder %s375, %s377
      %p384 = scmp.eq.s32.totalorder %s42, 1
      %p385 = por %p383, %p384
      %p386 = scmp.ne.s32.totalorder %s377, %s378
      %p387 = scmp.eq.s32.totalorder %s42, 0
      %p388 = por %p386, %p387
      %p389 = scmp.ne.s32.totalorder %s377, %s378
      %p390 = scmp.eq.s32.totalorder %s43, 1
      %p391 = por %p389, %p390
      %p393 = scmp.ne.s32.totalorder %s378, %s392
      %p394 = scmp.eq.s32.totalorder %s43, 0
      %p395 = por %p393, %p394
      %s396 = ssub.s32 %s37, %s44
      %p397 = scmp.eq.s32.totalorder %s396, 0
      %s399 = sadd.s32 %s398, 1
      %s400 = scalar_select %p397, %s398, %s399
      %p403 = pneg %p397
      %p404 = scmp.eq.s32.totalorder %s37, 1
      %p405 = por %p403, %p404
      %p406 = scmp.ne.s32.totalorder %s398, %s401
      %p407 = scmp.eq.s32.totalorder %s37, 0
      %p408 = por %p406, %p407
      %p409 = scmp.ne.s32.totalorder %s398, %s401
      %p410 = scmp.eq.s32.totalorder %s42, 1
      %p411 = por %p409, %p410
      %p412 = scmp.ne.s32.totalorder %s401, %s402
      %p413 = scmp.eq.s32.totalorder %s42, 0
      %p414 = por %p412, %p413
      %p415 = scmp.ne.s32.totalorder %s401, %s402
      %p416 = scmp.eq.s32.totalorder %s43, 1
      %p417 = por %p415, %p416
      %p419 = scmp.ne.s32.totalorder %s402, %s418
      %p420 = scmp.eq.s32.totalorder %s43, 0
      %p421 = por %p419, %p420
      %p422 = scmp.le.s32.totalorder 1, %s37
      %p423 = scmp.lt.s32.totalorder %s37, 3
      %p424 = pnand %p422, %p423
      %p425 = pneg %p424
      // Predicated region
      $region9: #{tpu_custom_call.1} parent=5 // pred_check
        _
      $region10: #{tpu_custom_call.1} parent=5 // pred_check_branch
        %427 = sbr.rel (%p424) target = $region12
      $region11: #{tpu_custom_call.1} parent=5 // pred_region
        %s428 = ssub.s32 %s37, 1
        // Predicated region
        $region13: #{tpu_custom_call.1} parent=11 // pred_check
          %p429 = pneg %p136
        $region14: #{tpu_custom_call.1} parent=11 // pred_check_branch
          %431 = sbr.rel (%p429) target = $region16
        $region15: #{tpu_custom_call.1} parent=11 // pred_region
          %s433 = ssub.s32 1024, 1024
          %434 = vsyncadd [#allocation6], %s433
          %s435 = sshll.u32 [#allocation7], 4
          %s436 = int_to_ptr.vmem [resolvable:$true] %s435
          %441 = dma.hbm_to_vmem [thread:$0]  %s3, 1024, %s436, [#allocation6], 64, 64, 4
        $region16: #{tpu_custom_call.1} parent=11 // pred_fallthru
          _
        // Predicated region
        $region17: #{tpu_custom_call.1} parent=11 // pred_check
          %p442 = pneg %p157
        $region18: #{tpu_custom_call.1} parent=11 // pred_check_branch
          %444 = sbr.rel (%p442) target = $region20
        $region19: #{tpu_custom_call.1} parent=11 // pred_region
          %s446 = ssub.s32 128, 128
          %447 = vsyncadd [#allocation9], %s446
          %s449 = sshll.u32 [#allocation8], 4
          %s450 = int_to_ptr.vmem [resolvable:$true] %s449
          %452 = dma.hbm_to_vmem [thread:$0]  %s4, 128, %s450, [#allocation9]
        $region20: #{tpu_custom_call.1} parent=11 // pred_fallthru
          _
        // Predicated region
        $region21: #{tpu_custom_call.1} parent=11 // pred_check
          %p453 = pneg %p178
        $region22: #{tpu_custom_call.1} parent=11 // pred_check_branch
          %455 = sbr.rel (%p453) target = $region24
        $region23: #{tpu_custom_call.1} parent=11 // pred_region
          %s457 = ssub.s32 3072, 3072
          %458 = vsyncadd [#allocation9], %s457
          %s459 = sshll.u32 [#allocation10], 4
          %s460 = int_to_ptr.vmem [resolvable:$true] %s459
          %465 = dma.hbm_to_vmem [thread:$0]  %s5, 3072, %s460, [#allocation9], 192, 192, 12
        $region24: #{tpu_custom_call.1} parent=11 // pred_fallthru
          _
        // Predicated region
        $region25: #{tpu_custom_call.1} parent=11 // pred_check
          %p466 = pneg %p199
        $region26: #{tpu_custom_call.1} parent=11 // pred_check_branch
          %468 = sbr.rel (%p466) target = $region28
        $region27: #{tpu_custom_call.1} parent=11 // pred_region
          %s470 = ssub.s32 1024, 1024
          %471 = vsyncadd [#allocation12], %s470
          %s472 = sshll.u32 [#allocation11], 4
          %s473 = int_to_ptr.vmem [resolvable:$true] %s472
          %478 = dma.hbm_to_vmem [thread:$0]  %s6, 1024, %s473, [#allocation12], 64, 64, 4
        $region28: #{tpu_custom_call.1} parent=11 // pred_fallthru
          _
        // Predicated region
        $region29: #{tpu_custom_call.1} parent=11 // pred_check
          %p479 = pneg %p220
        $region30: #{tpu_custom_call.1} parent=11 // pred_check_branch
          %481 = sbr.rel (%p479) target = $region32
        $region31: #{tpu_custom_call.1} parent=11 // pred_region
          %s483 = ssub.s32 2048, 2048
          %484 = vsyncadd [#allocation12], %s483
          %s485 = sshll.u32 [#allocation13], 4
          %s486 = int_to_ptr.vmem [resolvable:$true] %s485
          %491 = dma.hbm_to_vmem [thread:$0]  %s7, 2048, %s486, [#allocation12], 128, 128, 8
        $region32: #{tpu_custom_call.1} parent=11 // pred_fallthru
          _
        // Predicated region
        $region33: #{tpu_custom_call.1} parent=11 // pred_check
          %p492 = pneg %p241
        $region34: #{tpu_custom_call.1} parent=11 // pred_check_branch
          %494 = sbr.rel (%p492) target = $region36
        $region35: #{tpu_custom_call.1} parent=11 // pred_region
          %s496 = ssub.s32 2048, 2048
          %497 = vsyncadd [#allocation15], %s496
          %s498 = sshll.u32 [#allocation14], 4
          %s499 = int_to_ptr.vmem [resolvable:$true] %s498
          %504 = dma.hbm_to_vmem [thread:$0]  %s8, 2048, %s499, [#allocation15], 64, 64, 4
        $region36: #{tpu_custom_call.1} parent=11 // pred_fallthru
          _
        // Predicated region
        $region37: #{tpu_custom_call.1} parent=11 // pred_check
          %p505 = pneg %p262
        $region38: #{tpu_custom_call.1} parent=11 // pred_check_branch
          %507 = sbr.rel (%p505) target = $region40
        $region39: #{tpu_custom_call.1} parent=11 // pred_region
          %s509 = ssub.s32 1024, 1024
          %510 = vsyncadd [#allocation15], %s509
          %s511 = sshll.u32 [#allocation16], 4
          %s512 = int_to_ptr.vmem [resolvable:$true] %s511
          %517 = dma.hbm_to_vmem [thread:$0]  %s9, 1024, %s512, [#allocation15], 64, 64, 4
        $region40: #{tpu_custom_call.1} parent=11 // pred_fallthru
          _
        // Predicated region
        $region41: #{tpu_custom_call.1} parent=11 // pred_check
          %p518 = pneg %p283
        $region42: #{tpu_custom_call.1} parent=11 // pred_check_branch
          %520 = sbr.rel (%p518) target = $region44
        $region43: #{tpu_custom_call.1} parent=11 // pred_region
          _
        $region44: #{tpu_custom_call.1} parent=11 // pred_fallthru
          _
        // Predicated region
        $region45: #{tpu_custom_call.1} parent=11 // pred_check
          %p521 = pneg %p304
        $region46: #{tpu_custom_call.1} parent=11 // pred_check_branch
          %523 = sbr.rel (%p521) target = $region48
        $region47: #{tpu_custom_call.1} parent=11 // pred_region
          %s525 = ssub.s32 3072, 3072
          %526 = vsyncadd [#allocation18], %s525
          %s527 = sshll.u32 [#allocation17], 4
          %s528 = int_to_ptr.vmem [resolvable:$true] %s527
          %533 = dma.hbm_to_vmem [thread:$0]  %s11, 3072, %s528, [#allocation18], 192, 192, 12
        $region48: #{tpu_custom_call.1} parent=11 // pred_fallthru
          _
        // Predicated region
        $region49: #{tpu_custom_call.1} parent=11 // pred_check
          %p534 = pneg %p325
        $region50: #{tpu_custom_call.1} parent=11 // pred_check_branch
          %536 = sbr.rel (%p534) target = $region52
        $region51: #{tpu_custom_call.1} parent=11 // pred_region
          %s538 = ssub.s32 1024, 1024
          %539 = vsyncadd [#allocation18], %s538
          %s540 = sshll.u32 [#allocation19], 4
          %s541 = int_to_ptr.vmem [resolvable:$true] %s540
          %546 = dma.hbm_to_vmem [thread:$0]  %s12, 1024, %s541, [#allocation18], 64, 64, 4
        $region52: #{tpu_custom_call.1} parent=11 // pred_fallthru
          _
        // Predicated region
        $region53: #{tpu_custom_call.1} parent=11 // pred_check
          %p547 = pneg %p346
        $region54: #{tpu_custom_call.1} parent=11 // pred_check_branch
          %549 = sbr.rel (%p547) target = $region56
        $region55: #{tpu_custom_call.1} parent=11 // pred_region
          %s551 = ssub.s32 2048, 2048
          %552 = vsyncadd [#allocation21], %s551
          %s553 = sshll.u32 [#allocation20], 4
          %s554 = int_to_ptr.vmem [resolvable:$true] %s553
          %559 = dma.hbm_to_vmem [thread:$0]  %s13, 2048, %s554, [#allocation21], 128, 128, 8
        $region56: #{tpu_custom_call.1} parent=11 // pred_fallthru
          _
        // Predicated region
        $region57: #{tpu_custom_call.1} parent=11 // pred_check
          %p560 = pneg %p367
        $region58: #{tpu_custom_call.1} parent=11 // pred_check_branch
          %562 = sbr.rel (%p560) target = $region60
        $region59: #{tpu_custom_call.1} parent=11 // pred_region
          %s564 = ssub.s32 2048, 2048
          %565 = vsyncadd [#allocation21], %s564
          %s566 = sshll.u32 [#allocation22], 4
          %s567 = int_to_ptr.vmem [resolvable:$true] %s566
          %572 = dma.hbm_to_vmem [thread:$0]  %s14, 2048, %s567, [#allocation21], 64, 64, 4
        $region60: #{tpu_custom_call.1} parent=11 // pred_fallthru
          _
        // Predicated region
        $region61: #{tpu_custom_call.1} parent=11 // pred_check
          %p573 = pneg %p388
        $region62: #{tpu_custom_call.1} parent=11 // pred_check_branch
          %575 = sbr.rel (%p573) target = $region64
        $region63: #{tpu_custom_call.1} parent=11 // pred_region
          %s577 = ssub.s32 1024, 1024
          %578 = vsyncadd [#allocation24], %s577
          %s579 = sshll.u32 [#allocation23], 4
          %s580 = int_to_ptr.vmem [resolvable:$true] %s579
          %585 = dma.hbm_to_vmem [thread:$0]  %s15, 1024, %s580, [#allocation24], 64, 64, 4
        $region64: #{tpu_custom_call.1} parent=11 // pred_fallthru
          _
      $region12: #{tpu_custom_call.1} parent=5 // pred_fallthru
        _
      %p586 = scmp.lt.s32.totalorder %s37, 2
      // Predicated region
      $region65: #{tpu_custom_call.1} parent=5 // pred_check
        %p587 = pneg %p586
      $region66: #{tpu_custom_call.1} parent=5 // pred_check_branch
        %589 = sbr.rel (%p587) target = $region68
      $region67: #{tpu_custom_call.1} parent=5 // pred_region
        // Predicated region
        $region69: #{tpu_custom_call.1} parent=67 // pred_check
          %p590 = pneg %p57
        $region70: #{tpu_custom_call.1} parent=67 // pred_check_branch
          %592 = sbr.rel (%p590) target = $region72
        $region71: #{tpu_custom_call.1} parent=67 // pred_region
          %s593 = sand.u32 %s47, 1
          %s594 = scalar_lea.sflag [#allocation3], %s593
          %s595 = sand.u32 %s47, 1
          %s596 = smul.addr %s595, 8
          %s597 = scalar_lea.vmem [#allocation2], %s596
          %s599 = ssub.s32 128, 128
          %600 = vsyncadd %s594, %s599
          %s601 = smul.addr %s37, 2
          %s602 = smul.addr %s601, 64
          %s603 = scalar_lea.hbm %s0, %s602
          %s604 = sshll.u32 %s597, 4
          %s605 = int_to_ptr.vmem [resolvable:$true] %s604
          %610 = dma.hbm_to_vmem [thread:$0]  %s603, 128, %s605, %s594, 64, 64, 4
        $region72: #{tpu_custom_call.1} parent=67 // pred_fallthru
          _
        // Predicated region
        $region73: #{tpu_custom_call.1} parent=67 // pred_check
          %p611 = pneg %p83
        $region74: #{tpu_custom_call.1} parent=67 // pred_check_branch
          %613 = sbr.rel (%p611) target = $region76
        $region75: #{tpu_custom_call.1} parent=67 // pred_region
          %s614 = sand.u32 %s37, 1
          %s615 = scalar_lea.sflag [#allocation6], %s614
          %s616 = sand.u32 %s73, 1
          %s617 = smul.addr %s616, 8
          %s618 = scalar_lea.vmem [#allocation5], %s617
          %s620 = ssub.s32 128, 128
          %621 = vsyncadd %s615, %s620
          %s622 = smul.addr %s37, 128
          %s623 = scalar_lea.hbm %s1, %s622
          %s625 = sshll.u32 %s618, 4
          %s626 = int_to_ptr.vmem [resolvable:$true] %s625
          %628 = dma.hbm_to_vmem [thread:$0]  %s623, 128, %s626, %s615
        $region76: #{tpu_custom_call.1} parent=67 // pred_fallthru
          _
        // Predicated region
        $region77: #{tpu_custom_call.1} parent=67 // pred_check
          %p629 = pneg %p109
        $region78: #{tpu_custom_call.1} parent=67 // pred_check_branch
          %631 = sbr.rel (%p629) target = $region80
        $region79: #{tpu_custom_call.1} parent=67 // pred_region
          %p632 = scmp.lt.s32.totalorder %s37, 1
          %s633 = scalar_select %p632, %s37, 1
          %s634 = scalar_lea.vmem %s2, %s633
        $region80: #{tpu_custom_call.1} parent=67 // pred_fallthru
          _
      $region68: #{tpu_custom_call.1} parent=5 // pred_fallthru
        _
      %p635 = scmp.le.s32.totalorder 1, %s37
      %p636 = scmp.lt.s32.totalorder %s37, 3
      %p637 = pnand %p635, %p636
      %p638 = pneg %p637
      // Predicated region
      $region81: #{tpu_custom_call.1} parent=5 // pred_check
        _
      $region82: #{tpu_custom_call.1} parent=5 // pred_check_branch
        %640 = sbr.rel (%p637) target = $region84
      $region83: #{tpu_custom_call.1} parent=5 // pred_region
        %s641 = ssub.s32 %s37, 1
        %s642 = sand.u32 %s50, 1
        %s643 = scalar_lea.sflag [#allocation3], %s642
        %s644 = sand.u32 %s50, 1
        %s645 = smul.addr %s644, 8
        %s646 = scalar_lea.vmem [#allocation2], %s645
        // Predicated region
        $region85: #{tpu_custom_call.1} parent=83 // pred_check
          %p647 = pneg %p63
        $region86: #{tpu_custom_call.1} parent=83 // pred_check_branch
          %649 = sbr.rel (%p647) target = $region88
        $region87: #{tpu_custom_call.1} parent=83 // pred_region
          %650 = dma.done %s643, 128
        $region88: #{tpu_custom_call.1} parent=83 // pred_fallthru
          _
        %s651 = sand.u32 %s42, 1
        %s652 = scalar_lea.sflag [#allocation6], %s651
        %s653 = sand.u32 %s76, 1
        %s654 = smul.addr %s653, 8
        %s655 = scalar_lea.vmem [#allocation5], %s654
        // Predicated region
        $region89: #{tpu_custom_call.1} parent=83 // pred_check
          %p656 = pneg %p89
        $region90: #{tpu_custom_call.1} parent=83 // pred_check_branch
          %658 = sbr.rel (%p656) target = $region92
        $region91: #{tpu_custom_call.1} parent=83 // pred_region
          %659 = dma.done %s652, 128
        $region92: #{tpu_custom_call.1} parent=83 // pred_fallthru
          _
        // Predicated region
        $region93: #{tpu_custom_call.1} parent=83 // pred_check
          %p660 = pneg %p136
        $region94: #{tpu_custom_call.1} parent=83 // pred_check_branch
          %662 = sbr.rel (%p660) target = $region96
        $region95: #{tpu_custom_call.1} parent=83 // pred_region
          %663 = dma.done [#allocation6], 1024
        $region96: #{tpu_custom_call.1} parent=83 // pred_fallthru
          _
        // Predicated region
        $region97: #{tpu_custom_call.1} parent=83 // pred_check
          %p664 = pneg %p157
        $region98: #{tpu_custom_call.1} parent=83 // pred_check_branch
          %666 = sbr.rel (%p664) target = $region100
        $region99: #{tpu_custom_call.1} parent=83 // pred_region
          %667 = dma.done [#allocation9], 128
        $region100: #{tpu_custom_call.1} parent=83 // pred_fallthru
          _
        // Predicated region
        $region101: #{tpu_custom_call.1} parent=83 // pred_check
          %p668 = pneg %p178
        $region102: #{tpu_custom_call.1} parent=83 // pred_check_branch
          %670 = sbr.rel (%p668) target = $region104
        $region103: #{tpu_custom_call.1} parent=83 // pred_region
          %671 = dma.done [#allocation9], 3072
        $region104: #{tpu_custom_call.1} parent=83 // pred_fallthru
          _
        // Predicated region
        $region105: #{tpu_custom_call.1} parent=83 // pred_check
          %p672 = pneg %p199
        $region106: #{tpu_custom_call.1} parent=83 // pred_check_branch
          %674 = sbr.rel (%p672) target = $region108
        $region107: #{tpu_custom_call.1} parent=83 // pred_region
          %675 = dma.done [#allocation12], 1024
        $region108: #{tpu_custom_call.1} parent=83 // pred_fallthru
          _
        // Predicated region
        $region109: #{tpu_custom_call.1} parent=83 // pred_check
          %p676 = pneg %p220
        $region110: #{tpu_custom_call.1} parent=83 // pred_check_branch
          %678 = sbr.rel (%p676) target = $region112
        $region111: #{tpu_custom_call.1} parent=83 // pred_region
          %679 = dma.done [#allocation12], 2048
        $region112: #{tpu_custom_call.1} parent=83 // pred_fallthru
          _
        // Predicated region
        $region113: #{tpu_custom_call.1} parent=83 // pred_check
          %p680 = pneg %p241
        $region114: #{tpu_custom_call.1} parent=83 // pred_check_branch
          %682 = sbr.rel (%p680) target = $region116
        $region115: #{tpu_custom_call.1} parent=83 // pred_region
          %683 = dma.done [#allocation15], 2048
        $region116: #{tpu_custom_call.1} parent=83 // pred_fallthru
          _
        // Predicated region
        $region117: #{tpu_custom_call.1} parent=83 // pred_check
          %p684 = pneg %p262
        $region118: #{tpu_custom_call.1} parent=83 // pred_check_branch
          %686 = sbr.rel (%p684) target = $region120
        $region119: #{tpu_custom_call.1} parent=83 // pred_region
          %687 = dma.done [#allocation15], 1024
        $region120: #{tpu_custom_call.1} parent=83 // pred_fallthru
          _
        // Predicated region
        $region121: #{tpu_custom_call.1} parent=83 // pred_check
          %p688 = pneg %p304
        $region122: #{tpu_custom_call.1} parent=83 // pred_check_branch
          %690 = sbr.rel (%p688) target = $region124
        $region123: #{tpu_custom_call.1} parent=83 // pred_region
          %691 = dma.done [#allocation18], 3072
        $region124: #{tpu_custom_call.1} parent=83 // pred_fallthru
          _
        // Predicated region
        $region125: #{tpu_custom_call.1} parent=83 // pred_check
          %p692 = pneg %p325
        $region126: #{tpu_custom_call.1} parent=83 // pred_check_branch
          %694 = sbr.rel (%p692) target = $region128
        $region127: #{tpu_custom_call.1} parent=83 // pred_region
          %695 = dma.done [#allocation18], 1024
        $region128: #{tpu_custom_call.1} parent=83 // pred_fallthru
          _
        // Predicated region
        $region129: #{tpu_custom_call.1} parent=83 // pred_check
          %p696 = pneg %p346
        $region130: #{tpu_custom_call.1} parent=83 // pred_check_branch
          %698 = sbr.rel (%p696) target = $region132
        $region131: #{tpu_custom_call.1} parent=83 // pred_region
          %699 = dma.done [#allocation21], 2048
        $region132: #{tpu_custom_call.1} parent=83 // pred_fallthru
          _
        // Predicated region
        $region133: #{tpu_custom_call.1} parent=83 // pred_check
          %p700 = pneg %p367
        $region134: #{tpu_custom_call.1} parent=83 // pred_check_branch
          %702 = sbr.rel (%p700) target = $region136
        $region135: #{tpu_custom_call.1} parent=83 // pred_region
          %703 = dma.done [#allocation21], 2048
        $region136: #{tpu_custom_call.1} parent=83 // pred_fallthru
          _
        // Predicated region
        $region137: #{tpu_custom_call.1} parent=83 // pred_check
          %p704 = pneg %p388
        $region138: #{tpu_custom_call.1} parent=83 // pred_check_branch
          %706 = sbr.rel (%p704) target = $region140
        $region139: #{tpu_custom_call.1} parent=83 // pred_region
          %707 = dma.done [#allocation24], 1024
        $region140: #{tpu_custom_call.1} parent=83 // pred_fallthru
          _
        %s708 = sand.u32 %s50, 1
        %s709 = scalar_lea.sflag [#allocation3], %s708
        %s710 = sand.u32 %s50, 1
        %s711 = smul.addr %s710, 8
        %s712 = scalar_lea.vmem [#allocation2], %s711
        %p713 = pneg %p63
        %p714 = pneg %p60
        %s715 = sand.u32 %s42, 1
        %s716 = scalar_lea.sflag [#allocation6], %s715
        %s717 = sand.u32 %s76, 1
        %s718 = smul.addr %s717, 8
        %s719 = scalar_lea.vmem [#allocation5], %s718
        %p720 = pneg %p89
        %p721 = pneg %p86
        %p722 = scmp.lt.s32.totalorder %s42, 1
        %s723 = scalar_select %p722, %s42, 1
        %s724 = scalar_lea.vmem %s2, %s723
        %p725 = pneg %p115
        %p726 = pneg %p112
        %p727 = pneg %p136
        %p728 = pneg %p133
        %p729 = pneg %p157
        %p730 = pneg %p154
        %p731 = pneg %p178
        %p732 = pneg %p175
        %p733 = pneg %p199
        %p734 = pneg %p196
        %p735 = pneg %p220
        %p736 = pneg %p217
        %p737 = pneg %p241
        %p738 = pneg %p238
        %p739 = pneg %p262
        %p740 = pneg %p259
        %p741 = pneg %p283
        %p742 = pneg %p280
        %p743 = pneg %p304
        %p744 = pneg %p301
        %p745 = pneg %p325
        %p746 = pneg %p322
        %p747 = pneg %p346
        %p748 = pneg %p343
        %p749 = pneg %p367
        %p750 = pneg %p364
        %p751 = pneg %p388
        %p752 = pneg %p385
        %p753 = pneg %p414
        %p754 = pneg %p411
        %s755 = sand.u32 %s401, 1
        %s756 = scalar_lea.sflag [#allocation4], %s755
        %s757 = sand.u32 %s401, 1
        %s758 = smul.addr %s757, 8
        %s759 = scalar_lea.vmem [#allocation25], %s758
        %p760 = scmp.lt.s32.totalorder %s42, 1
        %s761 = scalar_select %p760, %s42, 1
        %s762 = scalar_lea.vmem %s2, %s761
        %v764 = vld [vmem:[#allocation8] sm:$0xff]
        %v765 = vld [vmem:[%s646] sm:$0xf]
        %v766 = vld [vmem:[%s646 + $0x4] sm:$0xf]
        %v767 = vld [vmem:[#allocation7] sm:$0xf]
        %v768 = vld [vmem:[#allocation7 + $0x4] sm:$0xf]
        %v769 = vld [vmem:[#allocation7 + $0x8] sm:$0xf]
        %v770 = vld [vmem:[#allocation7 + $0xc] sm:$0xf]
        %v771 = vld [vmem:[#allocation7 + $0x10] sm:$0xf]
        %v772 = vld [vmem:[#allocation7 + $0x14] sm:$0xf]
        %v773 = vld [vmem:[#allocation7 + $0x18] sm:$0xf]
        %v774 = vld [vmem:[#allocation7 + $0x1c] sm:$0xf]
        %v775 = vld [vmem:[#allocation7 + $0x20] sm:$0xf]
        %v776 = vld [vmem:[#allocation7 + $0x24] sm:$0xf]
        %v777 = vld [vmem:[#allocation7 + $0x28] sm:$0xf]
        %v778 = vld [vmem:[#allocation7 + $0x2c] sm:$0xf]
        %v779 = vld [vmem:[#allocation7 + $0x30] sm:$0xf]
        %v780 = vld [vmem:[#allocation7 + $0x34] sm:$0xf]
        %v781 = vld [vmem:[#allocation7 + $0x38] sm:$0xf]
        %v782 = vld [vmem:[#allocation7 + $0x3c] sm:$0xf]
        %v783 = vlaneseq
        %v784 = vshrl.u32 %v783, 7
        %v785 = vsub.s32 0, %v784
        %v786 = vrot.slane %v764, %v785
        %v789 = vunpack.c.l.b16 %v765
        %v790 = vunpack.c.l.b16 %v766
        %v791 = vpack.c.b16 %v790, %v789
        %v809 = vunpack.c.l.b16 %v767
        %v810 = vunpack.c.l.b16 %v768
        %v811 = vunpack.c.l.b16 %v769
        %v812 = vunpack.c.l.b16 %v770
        %v813 = vunpack.c.l.b16 %v771
        %v814 = vunpack.c.l.b16 %v772
        %v815 = vunpack.c.l.b16 %v773
        %v816 = vunpack.c.l.b16 %v774
        %v817 = vunpack.c.l.b16 %v775
        %v818 = vunpack.c.l.b16 %v776
        %v819 = vunpack.c.l.b16 %v777
        %v820 = vunpack.c.l.b16 %v778
        %v821 = vunpack.c.l.b16 %v779
        %v822 = vunpack.c.l.b16 %v780
        %v823 = vunpack.c.l.b16 %v781
        %v824 = vunpack.c.l.b16 %v782
        %v825 = vpack.c.b16 %v810, %v809
        %v826 = vpack.c.b16 %v812, %v811
        %v827 = vpack.c.b16 %v814, %v813
        %v828 = vpack.c.b16 %v816, %v815
        %v829 = vpack.c.b16 %v818, %v817
        %v830 = vpack.c.b16 %v820, %v819
        %v831 = vpack.c.b16 %v822, %v821
        %v832 = vpack.c.b16 %v824, %v823
        %841 = vmatprep.subr.bf16.mxu0 0
        %842 = vmatpush1.bf16.msra.mxu0 %v832
        %843 = vmatprep.subr.bf16.mxu0 0
        %844 = vmatpush1.bf16.msra.mxu0 %v831
        %845 = vmatprep.subr.bf16.mxu0 0
        %846 = vmatpush1.bf16.msra.mxu0 %v830
        %847 = vmatprep.subr.bf16.mxu0 0
        %848 = vmatpush1.bf16.msra.mxu0 %v829
        %849 = vmatprep.subr.bf16.mxu0 0
        %850 = vmatpush1.bf16.msra.mxu0 %v828
        %851 = vmatprep.subr.bf16.mxu0 0
        %852 = vmatpush1.bf16.msra.mxu0 %v827
        %853 = vmatprep.subr.bf16.mxu0 0
        %854 = vmatpush1.bf16.msra.mxu0 %v826
        %855 = vmatprep.subr.bf16.mxu0 0
        %856 = vmatpush1.bf16.msra.mxu0 %v825
        %857 = vmatprep.subr.bf16.mxu0 0
        %858 = vmatpush2.bf16.msra.mxu0 0
        %859 = vmatprep.subr.bf16.mxu0 0
        %860 = vmatpush2.bf16.msra.mxu0 0
        %861 = vmatprep.subr.bf16.mxu0 0
        %862 = vmatpush2.bf16.msra.mxu0 0
        %863 = vmatprep.subr.bf16.mxu0 0
        %864 = vmatpush2.bf16.msra.mxu0 0
        %865 = vmatprep.subr.bf16.mxu0 0
        %866 = vmatpush2.bf16.msra.mxu0 0
        %867 = vmatprep.subr.bf16.mxu0 0
        %868 = vmatpush2.bf16.msra.mxu0 0
        %869 = vmatprep.subr.bf16.mxu0 0
        %870 = vmatpush2.bf16.msra.mxu0 0
        %871 = vmatprep.subr.bf16.mxu0 0
        %872 = vmatpush2.bf16.msra.mxu0 0
        %873 = vmatprep.mubr.bf16.mxu0 0
        %874 = vmatmul.mubr.bf16.gmra.mxu0 %v791
        %v875 = vpop.f32.mrf.mxu0
        %v876 = vadd.f32 %v786, %v875
        %v877 = vpop.f32.mrf.mxu0
        %v878 = vpop.f32.mrf.mxu0
        %v879 = vadd.f32 %v786, %v878
        %v880 = vpop.f32.mrf.mxu0
        %881 = vdwg.mxu0
        %882 = vadd.xlane.f32.xlu0 %v876
        %v883 = vpop.xlane.xlu0 %882
        %884 = vadd.xlane.f32.xlu0 %v879
        %v885 = vpop.xlane.xlu0 %884
        %v886 = vrcp.pop 128.0
        %v887 = vmul.f32 %v883, %v886
        %v888 = vmul.f32 %v885, %v886
        %v889 = vsub.f32 %v876, %v887
        %v890 = vsub.f32 %v879, %v888
        %v891 = vmul.f32 %v889, %v889
        %v892 = vmul.f32 %v890, %v890
        %893 = vadd.xlane.f32.xlu0 %v891
        %v894 = vpop.xlane.xlu0 %893
        %895 = vadd.xlane.f32.xlu0 %v892
        %v896 = vpop.xlane.xlu0 %895
        %v897 = vmul.f32 %v894, %v886
        %v898 = vmul.f32 %v896, %v886
        %v899 = vadd.f32 %v897, 1e-05
        %v900 = vadd.f32 %v898, 1e-05
        %v901 = vrsqrt.pop %v899
        %v902 = vrsqrt.pop %v900
        %v903 = vmul.f32 %v889, %v901
        %v904 = vmul.f32 %v890, %v902
        %v905 = vlaneseq
        %v906 = vshrl.u32 %v905, 7
        %v907 = vsub.s32 1, %v906
        %v908 = vrot.slane %v764, %v907
        %v909 = vmul.f32 %v903, %v908
        %v910 = vmul.f32 %v904, %v908
        %v911 = vlaneseq
        %v912 = vshrl.u32 %v911, 7
        %v913 = vsub.s32 2, %v912
        %v914 = vrot.slane %v764, %v913
        %v915 = vadd.f32 %v909, %v914
        %v916 = vadd.f32 %v910, %v914
        %v917 = vld [vmem:[#allocation10] sm:$0xff]
        %v918 = vld [vmem:[#allocation10 + $0x8] sm:$0xf]
        %v919 = vld [vmem:[#allocation10 + $0xc] sm:$0xff]
        %v920 = vld [vmem:[#allocation10 + $0x14] sm:$0xf]
        %v921 = vld [vmem:[#allocation10 + $0x18] sm:$0xff]
        %v922 = vld [vmem:[#allocation10 + $0x20] sm:$0xf]
        %v923 = vld [vmem:[#allocation10 + $0x24] sm:$0xff]
        %v924 = vld [vmem:[#allocation10 + $0x2c] sm:$0xf]
        %v925 = vld [vmem:[#allocation10 + $0x30] sm:$0xff]
        %v926 = vld [vmem:[#allocation10 + $0x38] sm:$0xf]
        %v927 = vld [vmem:[#allocation10 + $0x3c] sm:$0xff]
        %v928 = vld [vmem:[#allocation10 + $0x44] sm:$0xf]
        %v929 = vld [vmem:[#allocation10 + $0x48] sm:$0xff]
        %v930 = vld [vmem:[#allocation10 + $0x50] sm:$0xf]
        %v931 = vld [vmem:[#allocation10 + $0x54] sm:$0xff]
        %v932 = vld [vmem:[#allocation10 + $0x5c] sm:$0xf]
        %v933 = vld [vmem:[#allocation10 + $0x60] sm:$0xff]
        %v934 = vld [vmem:[#allocation10 + $0x68] sm:$0xf]
        %v935 = vld [vmem:[#allocation10 + $0x6c] sm:$0xff]
        %v936 = vld [vmem:[#allocation10 + $0x74] sm:$0xf]
        %v937 = vld [vmem:[#allocation10 + $0x78] sm:$0xff]
        %v938 = vld [vmem:[#allocation10 + $0x80] sm:$0xf]
        %v939 = vld [vmem:[#allocation10 + $0x84] sm:$0xff]
        %v940 = vld [vmem:[#allocation10 + $0x8c] sm:$0xf]
        %v941 = vld [vmem:[#allocation10 + $0x90] sm:$0xff]
        %v942 = vld [vmem:[#allocation10 + $0x98] sm:$0xf]
        %v943 = vld [vmem:[#allocation10 + $0x9c] sm:$0xff]
        %v944 = vld [vmem:[#allocation10 + $0xa4] sm:$0xf]
        %v945 = vld [vmem:[#allocation10 + $0xa8] sm:$0xff]
        %v946 = vld [vmem:[#allocation10 + $0xb0] sm:$0xf]
        %v947 = vld [vmem:[#allocation10 + $0xb4] sm:$0xff]
        %v948 = vld [vmem:[#allocation10 + $0xbc] sm:$0xf]
        %v949 = vld [vmem:[#allocation11] sm:$0xf]
        %v950 = vld [vmem:[#allocation11 + $0x4] sm:$0xf]
        %v951 = vld [vmem:[#allocation11 + $0x8] sm:$0xf]
        %v952 = vld [vmem:[#allocation11 + $0xc] sm:$0xf]
        %v953 = vld [vmem:[#allocation11 + $0x10] sm:$0xf]
        %v954 = vld [vmem:[#allocation11 + $0x14] sm:$0xf]
        %v955 = vld [vmem:[#allocation11 + $0x18] sm:$0xf]
        %v956 = vld [vmem:[#allocation11 + $0x1c] sm:$0xf]
        %v957 = vld [vmem:[#allocation11 + $0x20] sm:$0xf]
        %v958 = vld [vmem:[#allocation11 + $0x24] sm:$0xf]
        %v959 = vld [vmem:[#allocation11 + $0x28] sm:$0xf]
        %v960 = vld [vmem:[#allocation11 + $0x2c] sm:$0xf]
        %v961 = vld [vmem:[#allocation11 + $0x30] sm:$0xf]
        %v962 = vld [vmem:[#allocation11 + $0x34] sm:$0xf]
        %v963 = vld [vmem:[#allocation11 + $0x38] sm:$0xf]
        %v964 = vld [vmem:[#allocation11 + $0x3c] sm:$0xf]
        %v965 = vpack.c.bf16 %v916, %v915
        %v998 = vunpack.c.l.b16 %v917
        %v999 = vunpack.c.h.b16 %v917
        %v1000 = vunpack.c.l.b16 %v918
        %v1001 = vunpack.c.l.b16 %v919
        %v1002 = vunpack.c.h.b16 %v919
        %v1003 = vunpack.c.l.b16 %v920
        %v1004 = vunpack.c.l.b16 %v921
        %v1005 = vunpack.c.h.b16 %v921
        %v1006 = vunpack.c.l.b16 %v922
        %v1007 = vunpack.c.l.b16 %v923
        %v1008 = vunpack.c.h.b16 %v923
        %v1009 = vunpack.c.l.b16 %v924
        %v1010 = vunpack.c.l.b16 %v925
        %v1011 = vunpack.c.h.b16 %v925
        %v1012 = vunpack.c.l.b16 %v926
        %v1013 = vunpack.c.l.b16 %v927
        %v1014 = vunpack.c.h.b16 %v927
        %v1015 = vunpack.c.l.b16 %v928
        %v1016 = vunpack.c.l.b16 %v929
        %v1017 = vunpack.c.h.b16 %v929
        %v1018 = vunpack.c.l.b16 %v930
        %v1019 = vunpack.c.l.b16 %v931
        %v1020 = vunpack.c.h.b16 %v931
        %v1021 = vunpack.c.l.b16 %v932
        %v1022 = vunpack.c.l.b16 %v933
        %v1023 = vunpack.c.h.b16 %v933
        %v1024 = vunpack.c.l.b16 %v934
        %v1025 = vunpack.c.l.b16 %v935
        %v1026 = vunpack.c.h.b16 %v935
        %v1027 = vunpack.c.l.b16 %v936
        %v1028 = vunpack.c.l.b16 %v937
        %v1029 = vunpack.c.h.b16 %v937
        %v1030 = vunpack.c.l.b16 %v938
        %v1031 = vunpack.c.l.b16 %v939
        %v1032 = vunpack.c.h.b16 %v939
        %v1033 = vunpack.c.l.b16 %v940
        %v1034 = vunpack.c.l.b16 %v941
        %v1035 = vunpack.c.h.b16 %v941
        %v1036 = vunpack.c.l.b16 %v942
        %v1037 = vunpack.c.l.b16 %v943
        %v1038 = vunpack.c.h.b16 %v943
        %v1039 = vunpack.c.l.b16 %v944
        %v1040 = vunpack.c.l.b16 %v945
        %v1041 = vunpack.c.h.b16 %v945
        %v1042 = vunpack.c.l.b16 %v946
        %v1043 = vunpack.c.l.b16 %v947
        %v1044 = vunpack.c.h.b16 %v947
        %v1045 = vunpack.c.l.b16 %v948
        %v1046 = vpack.c.b16 %v1001, %v998
        %v1047 = vpack.c.b16 %v1002, %v999
        %v1048 = vpack.c.b16 %v1003, %v1000
        %v1049 = vpack.c.b16 %v1007, %v1004
        %v1050 = vpack.c.b16 %v1008, %v1005
        %v1051 = vpack.c.b16 %v1009, %v1006
        %v1052 = vpack.c.b16 %v1013, %v1010
        %v1053 = vpack.c.b16 %v1014, %v1011
        %v1054 = vpack.c.b16 %v1015, %v1012
        %v1055 = vpack.c.b16 %v1019, %v1016
        %v1056 = vpack.c.b16 %v1020, %v1017
        %v1057 = vpack.c.b16 %v1021, %v1018
        %v1058 = vpack.c.b16 %v1025, %v1022
        %v1059 = vpack.c.b16 %v1026, %v1023
        %v1060 = vpack.c.b16 %v1027, %v1024
        %v1061 = vpack.c.b16 %v1031, %v1028
        %v1062 = vpack.c.b16 %v1032, %v1029
        %v1063 = vpack.c.b16 %v1033, %v1030
        %v1064 = vpack.c.b16 %v1037, %v1034
        %v1065 = vpack.c.b16 %v1038, %v1035
        %v1066 = vpack.c.b16 %v1039, %v1036
        %v1067 = vpack.c.b16 %v1043, %v1040
        %v1068 = vpack.c.b16 %v1044, %v1041
        %v1069 = vpack.c.b16 %v1045, %v1042
        %1094 = vmatprep.subr.bf16.mxu0 %v1068
        %1095 = vmatpush1.bf16.msra.mxu0 %v1067
        %1096 = vmatprep.subr.bf16.mxu0 %v1065
        %1097 = vmatpush1.bf16.msra.mxu0 %v1064
        %1098 = vmatprep.subr.bf16.mxu0 %v1062
        %1099 = vmatpush1.bf16.msra.mxu0 %v1061
        %1100 = vmatprep.subr.bf16.mxu0 %v1059
        %1101 = vmatpush1.bf16.msra.mxu0 %v1058
        %1102 = vmatprep.subr.bf16.mxu0 %v1056
        %1103 = vmatpush1.bf16.msra.mxu0 %v1055
        %1104 = vmatprep.subr.bf16.mxu0 %v1053
        %1105 = vmatpush1.bf16.msra.mxu0 %v1052
        %1106 = vmatprep.subr.bf16.mxu0 %v1050
        %1107 = vmatpush1.bf16.msra.mxu0 %v1049
        %1108 = vmatprep.subr.bf16.mxu0 %v1047
        %1109 = vmatpush1.bf16.msra.mxu0 %v1046
        %1110 = vmatprep.subr.bf16.mxu0 0
        %1111 = vmatpush2.bf16.msra.mxu0 0
        %1112 = vmatprep.subr.bf16.mxu0 0
        %1113 = vmatpush2.bf16.msra.mxu0 0
        %1114 = vmatprep.subr.bf16.mxu0 0
        %1115 = vmatpush2.bf16.msra.mxu0 0
        %1116 = vmatprep.subr.bf16.mxu0 0
        %1117 = vmatpush2.bf16.msra.mxu0 0
        %1118 = vmatprep.subr.bf16.mxu0 0
        %1119 = vmatpush2.bf16.msra.mxu0 0
        %1120 = vmatprep.subr.bf16.mxu0 0
        %1121 = vmatpush2.bf16.msra.mxu0 0
        %1122 = vmatprep.subr.bf16.mxu0 0
        %1123 = vmatpush2.bf16.msra.mxu0 0
        %1124 = vmatprep.subr.bf16.mxu0 0
        %1125 = vmatpush2.bf16.msra.mxu0 0
        %1126 = vmatprep.mubr.bf16.mxu0 0
        %1127 = vmatmul.mubr.bf16.gmra.mxu0 %v965
        %v1128 = vpop.f32.mrf.mxu0
        %v1129 = vadd.f32 0.0, %v1128
        %v1130 = vpop.f32.mrf.mxu0
        %v1131 = vadd.f32 0.0, %v1130
        %v1132 = vpop.f32.mrf.mxu0
        %v1133 = vadd.f32 0.0, %v1132
        %v1134 = vpop.f32.mrf.mxu0
        %v1135 = vadd.f32 0.0, %v1134
        %1136 = vdwg.mxu0
        %1137 = vmatprep.subr.bf16.mxu0 0
        %1138 = vmatpush1.bf16.msra.mxu0 %v1069
        %1139 = vmatprep.subr.bf16.mxu0 0
        %1140 = vmatpush1.bf16.msra.mxu0 %v1066
        %1141 = vmatprep.subr.bf16.mxu0 0
        %1142 = vmatpush1.bf16.msra.mxu0 %v1063
        %1143 = vmatprep.subr.bf16.mxu0 0
        %1144 = vmatpush1.bf16.msra.mxu0 %v1060
        %1145 = vmatprep.subr.bf16.mxu0 0
        %1146 = vmatpush1.bf16.msra.mxu0 %v1057
        %1147 = vmatprep.subr.bf16.mxu0 0
        %1148 = vmatpush1.bf16.msra.mxu0 %v1054
        %1149 = vmatprep.subr.bf16.mxu0 0
        %1150 = vmatpush1.bf16.msra.mxu0 %v1051
        %1151 = vmatprep.subr.bf16.mxu0 0
        %1152 = vmatpush1.bf16.msra.mxu0 %v1048
        %1153 = vmatprep.subr.bf16.mxu0 0
        %1154 = vmatpush2.bf16.msra.mxu0 0
        %1155 = vmatprep.subr.bf16.mxu0 0
        %1156 = vmatpush2.bf16.msra.mxu0 0
        %1157 = vmatprep.subr.bf16.mxu0 0
        %1158 = vmatpush2.bf16.msra.mxu0 0
        %1159 = vmatprep.subr.bf16.mxu0 0
        %1160 = vmatpush2.bf16.msra.mxu0 0
        %1161 = vmatprep.subr.bf16.mxu0 0
        %1162 = vmatpush2.bf16.msra.mxu0 0
        %1163 = vmatprep.subr.bf16.mxu0 0
        %1164 = vmatpush2.bf16.msra.mxu0 0
        %1165 = vmatprep.subr.bf16.mxu0 0
        %1166 = vmatpush2.bf16.msra.mxu0 0
        %1167 = vmatprep.subr.bf16.mxu0 0
        %1168 = vmatpush2.bf16.msra.mxu0 0
        %1169 = vmatprep.mubr.bf16.mxu0 0
        %1170 = vmatmul.mubr.bf16.gmra.mxu0 %v965
        %v1171 = vpop.f32.mrf.mxu0
        %v1172 = vadd.f32 0.0, %v1171
        %v1173 = vpop.f32.mrf.mxu0
        %v1174 = vpop.f32.mrf.mxu0
        %v1175 = vadd.f32 0.0, %v1174
        %v1176 = vpop.f32.mrf.mxu0
        %1177 = vdwg.mxu0
        %v1178 = vpack.c.bf16 %v1133, %v1129
        %v1179 = vpack.c.bf16 %v1135, %v1131
        %1180 = vmatprep.subr.bf16.mxu0 0
        %1181 = vmatpush1.bf16.xpose.msra.mxu0 0
        %1182 = vmatprep.subr.bf16.mxu0 0
        %1183 = vmatpush1.bf16.xpose.msra.mxu0 0
        %1184 = vmatprep.subr.bf16.mxu0 0
        %1185 = vmatpush1.bf16.xpose.msra.mxu0 0
        %1186 = vmatprep.subr.bf16.mxu0 0
        %1187 = vmatpush1.bf16.xpose.msra.mxu0 0
        %1188 = vmatprep.subr.bf16.mxu0 0
        %1189 = vmatpush1.bf16.xpose.msra.mxu0 0
        %1190 = vmatprep.subr.bf16.mxu0 0
        %1191 = vmatpush1.bf16.xpose.msra.mxu0 0
        %1192 = vmatprep.subr.bf16.mxu0 0
        %1193 = vmatpush1.bf16.xpose.msra.mxu0 0
        %1194 = vmatprep.subr.bf16.mxu0 0
        %1195 = vmatpush1.bf16.xpose.msra.mxu0 %v1179
        %1196 = vmatprep.subr.bf16.mxu0 0
        %1197 = vmatpush2.bf16.xpose.msra.mxu0 0
        %1198 = vmatprep.subr.bf16.mxu0 0
        %1199 = vmatpush2.bf16.xpose.msra.mxu0 0
        %1200 = vmatprep.subr.bf16.mxu0 0
        %1201 = vmatpush2.bf16.xpose.msra.mxu0 0
        %1202 = vmatprep.subr.bf16.mxu0 0
        %1203 = vmatpush2.bf16.xpose.msra.mxu0 0
        %1204 = vmatprep.subr.bf16.mxu0 0
        %1205 = vmatpush2.bf16.xpose.msra.mxu0 0
        %1206 = vmatprep.subr.bf16.mxu0 0
        %1207 = vmatpush2.bf16.xpose.msra.mxu0 0
        %1208 = vmatprep.subr.bf16.mxu0 0
        %1209 = vmatpush2.bf16.xpose.msra.mxu0 0
        %1210 = vmatprep.subr.bf16.mxu0 0
        %1211 = vmatpush2.bf16.xpose.msra.mxu0 0
        %1212 = vmatprep.mubr.bf16.mxu0 0
        %1213 = vmatmul.mubr.bf16.gmra.mxu0 %v1178
        %v1214 = vpop.f32.mrf.mxu0
        %v1215 = vadd.f32 0.0, %v1214
        %v1216 = vpop.f32.mrf.mxu0
        %v1217 = vpop.f32.mrf.mxu0
        %v1218 = vadd.f32 0.0, %v1217
        %v1219 = vpop.f32.mrf.mxu0
        %1220 = vdwg.mxu0
        %vm1221 = vcmask 130048
        %v1222 = vsel %vm1221, %v1215, -inf
        %1223 = vmax.xlane.f32.xlu0 %v1222
        %v1224 = vpop.xlane.xlu0 %1223
        %v1225 = vsel %vm1221, %v1218, -inf
        %1226 = vmax.xlane.f32.xlu0 %v1225
        %v1227 = vpop.xlane.xlu0 %1226
        %v1228 = vsub.f32 %v1215, %v1224
        %v1229 = vsub.f32 %v1218, %v1227
        %v1230 = vmul.f32 %v1228, 1.442695
        %v1231 = vpow.pop %v1230
        %v1232 = vmul.f32 %v1229, 1.442695
        %v1233 = vpow.pop %v1232
        %v1234 = vsel %vm1221, %v1231, 0.0
        %1235 = vadd.xlane.f32.xlu0 %v1234
        %v1236 = vpop.xlane.xlu0 %1235
        %v1237 = vsel %vm1221, %v1233, 0.0
        %1238 = vadd.xlane.f32.xlu0 %v1237
        %v1239 = vpop.xlane.xlu0 %1238
        %v1240 = vrcp.pop %v1236
        %v1241 = vrcp.pop %v1239
        %v1242 = vmul.f32 %v1231, %v1240
        %v1243 = vmul.f32 %v1233, %v1241
        %v1244 = vpack.c.bf16 %v1243, %v1242
        %v1245 = vpack.c.bf16 %v1175, %v1172
        %v1247 = vsel %vm1221, %v1244, 0
        %1249 = vmatprep.subr.bf16.mxu0 0
        %1250 = vmatpush1.bf16.msra.mxu0 0
        %1251 = vmatprep.subr.bf16.mxu0 0
        %1252 = vmatpush1.bf16.msra.mxu0 0
        %1253 = vmatprep.subr.bf16.mxu0 0
        %1254 = vmatpush1.bf16.msra.mxu0 0
        %1255 = vmatprep.subr.bf16.mxu0 0
        %1256 = vmatpush1.bf16.msra.mxu0 0
        %1257 = vmatprep.subr.bf16.mxu0 0
        %1258 = vmatpush1.bf16.msra.mxu0 0
        %1259 = vmatprep.subr.bf16.mxu0 0
        %1260 = vmatpush1.bf16.msra.mxu0 0
        %1261 = vmatprep.subr.bf16.mxu0 0
        %1262 = vmatpush1.bf16.msra.mxu0 0
        %1263 = vmatprep.subr.bf16.mxu0 0
        %1264 = vmatpush1.bf16.msra.mxu0 %v1245
        %1265 = vmatprep.subr.bf16.mxu0 0
        %1266 = vmatpush2.bf16.msra.mxu0 0
        %1267 = vmatprep.subr.bf16.mxu0 0
        %1268 = vmatpush2.bf16.msra.mxu0 0
        %1269 = vmatprep.subr.bf16.mxu0 0
        %1270 = vmatpush2.bf16.msra.mxu0 0
        %1271 = vmatprep.subr.bf16.mxu0 0
        %1272 = vmatpush2.bf16.msra.mxu0 0
        %1273 = vmatprep.subr.bf16.mxu0 0
        %1274 = vmatpush2.bf16.msra.mxu0 0
        %1275 = vmatprep.subr.bf16.mxu0 0
        %1276 = vmatpush2.bf16.msra.mxu0 0
        %1277 = vmatprep.subr.bf16.mxu0 0
        %1278 = vmatpush2.bf16.msra.mxu0 0
        %1279 = vmatprep.subr.bf16.mxu0 0
        %1280 = vmatpush2.bf16.msra.mxu0 0
        %1281 = vmatprep.mubr.bf16.mxu0 0
        %1282 = vmatmul.mubr.bf16.gmra.mxu0 %v1247
        %v1283 = vpop.f32.mrf.mxu0
        %v1284 = vadd.f32 0.0, %v1283
        %v1285 = vpop.f32.mrf.mxu0
        %v1286 = vpop.f32.mrf.mxu0
        %v1287 = vadd.f32 0.0, %v1286
        %v1288 = vpop.f32.mrf.mxu0
        %1289 = vdwg.mxu0
        %v1290 = vpack.c.bf16 %v1287, %v1284
        %v1307 = vunpack.c.l.b16 %v949
        %v1308 = vunpack.c.l.b16 %v950
        %v1309 = vunpack.c.l.b16 %v951
        %v1310 = vunpack.c.l.b16 %v952
        %v1311 = vunpack.c.l.b16 %v953
        %v1312 = vunpack.c.l.b16 %v954
        %v1313 = vunpack.c.l.b16 %v955
        %v1314 = vunpack.c.l.b16 %v956
        %v1315 = vunpack.c.l.b16 %v957
        %v1316 = vunpack.c.l.b16 %v958
        %v1317 = vunpack.c.l.b16 %v959
        %v1318 = vunpack.c.l.b16 %v960
        %v1319 = vunpack.c.l.b16 %v961
        %v1320 = vunpack.c.l.b16 %v962
        %v1321 = vunpack.c.l.b16 %v963
        %v1322 = vunpack.c.l.b16 %v964
        %v1323 = vpack.c.b16 %v1308, %v1307
        %v1324 = vpack.c.b16 %v1310, %v1309
        %v1325 = vpack.c.b16 %v1312, %v1311
        %v1326 = vpack.c.b16 %v1314, %v1313
        %v1327 = vpack.c.b16 %v1316, %v1315
        %v1328 = vpack.c.b16 %v1318, %v1317
        %v1329 = vpack.c.b16 %v1320, %v1319
        %v1330 = vpack.c.b16 %v1322, %v1321
        %1339 = vmatprep.subr.bf16.mxu0 0
        %1340 = vmatpush1.bf16.msra.mxu0 %v1330
        %1341 = vmatprep.subr.bf16.mxu0 0
        %1342 = vmatpush1.bf16.msra.mxu0 %v1329
        %1343 = vmatprep.subr.bf16.mxu0 0
        %1344 = vmatpush1.bf16.msra.mxu0 %v1328
        %1345 = vmatprep.subr.bf16.mxu0 0
        %1346 = vmatpush1.bf16.msra.mxu0 %v1327
        %1347 = vmatprep.subr.bf16.mxu0 0
        %1348 = vmatpush1.bf16.msra.mxu0 %v1326
        %1349 = vmatprep.subr.bf16.mxu0 0
        %1350 = vmatpush1.bf16.msra.mxu0 %v1325
        %1351 = vmatprep.subr.bf16.mxu0 0
        %1352 = vmatpush1.bf16.msra.mxu0 %v1324
        %1353 = vmatprep.subr.bf16.mxu0 0
        %1354 = vmatpush1.bf16.msra.mxu0 %v1323
        %1355 = vmatprep.subr.bf16.mxu0 0
        %1356 = vmatpush2.bf16.msra.mxu0 0
        %1357 = vmatprep.subr.bf16.mxu0 0
        %1358 = vmatpush2.bf16.msra.mxu0 0
        %1359 = vmatprep.subr.bf16.mxu0 0
        %1360 = vmatpush2.bf16.msra.mxu0 0
        %1361 = vmatprep.subr.bf16.mxu0 0
        %1362 = vmatpush2.bf16.msra.mxu0 0
        %1363 = vmatprep.subr.bf16.mxu0 0
        %1364 = vmatpush2.bf16.msra.mxu0 0
        %1365 = vmatprep.subr.bf16.mxu0 0
        %1366 = vmatpush2.bf16.msra.mxu0 0
        %1367 = vmatprep.subr.bf16.mxu0 0
        %1368 = vmatpush2.bf16.msra.mxu0 0
        %1369 = vmatprep.subr.bf16.mxu0 0
        %1370 = vmatpush2.bf16.msra.mxu0 0
        %1371 = vmatprep.mubr.bf16.mxu0 0
        %1372 = vmatmul.mubr.bf16.gmra.mxu0 %v1290
        %v1373 = vpop.f32.mrf.mxu0
        %v1374 = vadd.f32 0.0, %v1373
        %v1375 = vpop.f32.mrf.mxu0
        %v1376 = vpop.f32.mrf.mxu0
        %v1377 = vadd.f32 0.0, %v1376
        %v1378 = vpop.f32.mrf.mxu0
        %1379 = vdwg.mxu0
        %v1380 = vadd.f32 %v876, %v1374
        %v1381 = vadd.f32 %v879, %v1377
        %1382 = vadd.xlane.f32.xlu0 %v1380
        %v1383 = vpop.xlane.xlu0 %1382
        %1384 = vadd.xlane.f32.xlu0 %v1381
        %v1385 = vpop.xlane.xlu0 %1384
        %v1386 = vmul.f32 %v1383, %v886
        %v1387 = vmul.f32 %v1385, %v886
        %v1388 = vsub.f32 %v1380, %v1386
        %v1389 = vsub.f32 %v1381, %v1387
        %v1390 = vmul.f32 %v1388, %v1388
        %v1391 = vmul.f32 %v1389, %v1389
        %1392 = vadd.xlane.f32.xlu0 %v1390
        %v1393 = vpop.xlane.xlu0 %1392
        %1394 = vadd.xlane.f32.xlu0 %v1391
        %v1395 = vpop.xlane.xlu0 %1394
        %v1396 = vmul.f32 %v1393, %v886
        %v1397 = vmul.f32 %v1395, %v886
        %v1398 = vadd.f32 %v1396, 1e-05
        %v1399 = vadd.f32 %v1397, 1e-05
        %v1400 = vrsqrt.pop %v1398
        %v1401 = vrsqrt.pop %v1399
        %v1402 = vmul.f32 %v1388, %v1400
        %v1403 = vmul.f32 %v1389, %v1401
        %v1404 = vlaneseq
        %v1405 = vshrl.u32 %v1404, 7
        %v1406 = vsub.s32 3, %v1405
        %v1407 = vrot.slane %v764, %v1406
        %v1408 = vmul.f32 %v1402, %v1407
        %v1409 = vmul.f32 %v1403, %v1407
        %v1410 = vlaneseq
        %v1411 = vshrl.u32 %v1410, 7
        %v1412 = vsub.s32 4, %v1411
        %v1413 = vrot.slane %v764, %v1412
        %v1414 = vadd.f32 %v1408, %v1413
        %v1415 = vadd.f32 %v1409, %v1413
        %v1416 = vld [vmem:[#allocation13] sm:$0xff]
        %v1417 = vld [vmem:[#allocation13 + $0x8] sm:$0xff]
        %v1418 = vld [vmem:[#allocation13 + $0x10] sm:$0xff]
        %v1419 = vld [vmem:[#allocation13 + $0x18] sm:$0xff]
        %v1420 = vld [vmem:[#allocation13 + $0x20] sm:$0xff]
        %v1421 = vld [vmem:[#allocation13 + $0x28] sm:$0xff]
        %v1422 = vld [vmem:[#allocation13 + $0x30] sm:$0xff]
        %v1423 = vld [vmem:[#allocation13 + $0x38] sm:$0xff]
        %v1424 = vld [vmem:[#allocation13 + $0x40] sm:$0xff]
        %v1425 = vld [vmem:[#allocation13 + $0x48] sm:$0xff]
        %v1426 = vld [vmem:[#allocation13 + $0x50] sm:$0xff]
        %v1427 = vld [vmem:[#allocation13 + $0x58] sm:$0xff]
        %v1428 = vld [vmem:[#allocation13 + $0x60] sm:$0xff]
        %v1429 = vld [vmem:[#allocation13 + $0x68] sm:$0xff]
        %v1430 = vld [vmem:[#allocation13 + $0x70] sm:$0xff]
        %v1431 = vld [vmem:[#allocation13 + $0x78] sm:$0xff]
        %v1432 = vld [vmem:[#allocation14] sm:$0xf]
        %v1433 = vld [vmem:[#allocation14 + $0x4] sm:$0xf]
        %v1434 = vld [vmem:[#allocation14 + $0x8] sm:$0xf]
        %v1435 = vld [vmem:[#allocation14 + $0xc] sm:$0xf]
        %v1436 = vld [vmem:[#allocation14 + $0x10] sm:$0xf]
        %v1437 = vld [vmem:[#allocation14 + $0x14] sm:$0xf]
        %v1438 = vld [vmem:[#allocation14 + $0x18] sm:$0xf]
        %v1439 = vld [vmem:[#allocation14 + $0x1c] sm:$0xf]
        %v1440 = vld [vmem:[#allocation14 + $0x20] sm:$0xf]
        %v1441 = vld [vmem:[#allocation14 + $0x24] sm:$0xf]
        %v1442 = vld [vmem:[#allocation14 + $0x28] sm:$0xf]
        %v1443 = vld [vmem:[#allocation14 + $0x2c] sm:$0xf]
        %v1444 = vld [vmem:[#allocation14 + $0x30] sm:$0xf]
        %v1445 = vld [vmem:[#allocation14 + $0x34] sm:$0xf]
        %v1446 = vld [vmem:[#allocation14 + $0x38] sm:$0xf]
        %v1447 = vld [vmem:[#allocation14 + $0x3c] sm:$0xf]
        %v1448 = vld [vmem:[#allocation14 + $0x40] sm:$0xf]
        %v1449 = vld [vmem:[#allocation14 + $0x44] sm:$0xf]
        %v1450 = vld [vmem:[#allocation14 + $0x48] sm:$0xf]
        %v1451 = vld [vmem:[#allocation14 + $0x4c] sm:$0xf]
        %v1452 = vld [vmem:[#allocation14 + $0x50] sm:$0xf]
        %v1453 = vld [vmem:[#allocation14 + $0x54] sm:$0xf]
        %v1454 = vld [vmem:[#allocation14 + $0x58] sm:$0xf]
        %v1455 = vld [vmem:[#allocation14 + $0x5c] sm:$0xf]
        %v1456 = vld [vmem:[#allocation14 + $0x60] sm:$0xf]
        %v1457 = vld [vmem:[#allocation14 + $0x64] sm:$0xf]
        %v1458 = vld [vmem:[#allocation14 + $0x68] sm:$0xf]
        %v1459 = vld [vmem:[#allocation14 + $0x6c] sm:$0xf]
        %v1460 = vld [vmem:[#allocation14 + $0x70] sm:$0xf]
        %v1461 = vld [vmem:[#allocation14 + $0x74] sm:$0xf]
        %v1462 = vld [vmem:[#allocation14 + $0x78] sm:$0xf]
        %v1463 = vld [vmem:[#allocation14 + $0x7c] sm:$0xf]
        %v1464 = vpack.c.bf16 %v1415, %v1414
        %v1481 = vunpack.c.l.b16 %v1416
        %v1482 = vunpack.c.h.b16 %v1416
        %v1483 = vunpack.c.l.b16 %v1417
        %v1484 = vunpack.c.h.b16 %v1417
        %v1485 = vunpack.c.l.b16 %v1418
        %v1486 = vunpack.c.h.b16 %v1418
        %v1487 = vunpack.c.l.b16 %v1419
        %v1488 = vunpack.c.h.b16 %v1419
        %v1489 = vunpack.c.l.b16 %v1420
        %v1490 = vunpack.c.h.b16 %v1420
        %v1491 = vunpack.c.l.b16 %v1421
        %v1492 = vunpack.c.h.b16 %v1421
        %v1493 = vunpack.c.l.b16 %v1422
        %v1494 = vunpack.c.h.b16 %v1422
        %v1495 = vunpack.c.l.b16 %v1423
        %v1496 = vunpack.c.h.b16 %v1423
        %v1497 = vunpack.c.l.b16 %v1424
        %v1498 = vunpack.c.h.b16 %v1424
        %v1499 = vunpack.c.l.b16 %v1425
        %v1500 = vunpack.c.h.b16 %v1425
        %v1501 = vunpack.c.l.b16 %v1426
        %v1502 = vunpack.c.h.b16 %v1426
        %v1503 = vunpack.c.l.b16 %v1427
        %v1504 = vunpack.c.h.b16 %v1427
        %v1505 = vunpack.c.l.b16 %v1428
        %v1506 = vunpack.c.h.b16 %v1428
        %v1507 = vunpack.c.l.b16 %v1429
        %v1508 = vunpack.c.h.b16 %v1429
        %v1509 = vunpack.c.l.b16 %v1430
        %v1510 = vunpack.c.h.b16 %v1430
        %v1511 = vunpack.c.l.b16 %v1431
        %v1512 = vunpack.c.h.b16 %v1431
        %v1513 = vpack.c.b16 %v1483, %v1481
        %v1514 = vpack.c.b16 %v1484, %v1482
        %v1515 = vpack.c.b16 %v1487, %v1485
        %v1516 = vpack.c.b16 %v1488, %v1486
        %v1517 = vpack.c.b16 %v1491, %v1489
        %v1518 = vpack.c.b16 %v1492, %v1490
        %v1519 = vpack.c.b16 %v1495, %v1493
        %v1520 = vpack.c.b16 %v1496, %v1494
        %v1521 = vpack.c.b16 %v1499, %v1497
        %v1522 = vpack.c.b16 %v1500, %v1498
        %v1523 = vpack.c.b16 %v1503, %v1501
        %v1524 = vpack.c.b16 %v1504, %v1502
        %v1525 = vpack.c.b16 %v1507, %v1505
        %v1526 = vpack.c.b16 %v1508, %v1506
        %v1527 = vpack.c.b16 %v1511, %v1509
        %v1528 = vpack.c.b16 %v1512, %v1510
        %1545 = vmatprep.subr.bf16.mxu0 %v1528
        %1546 = vmatpush1.bf16.msra.mxu0 %v1527
        %1547 = vmatprep.subr.bf16.mxu0 %v1526
        %1548 = vmatpush1.bf16.msra.mxu0 %v1525
        %1549 = vmatprep.subr.bf16.mxu0 %v1524
        %1550 = vmatpush1.bf16.msra.mxu0 %v1523
        %1551 = vmatprep.subr.bf16.mxu0 %v1522
        %1552 = vmatpush1.bf16.msra.mxu0 %v1521
        %1553 = vmatprep.subr.bf16.mxu0 %v1520
        %1554 = vmatpush1.bf16.msra.mxu0 %v1519
        %1555 = vmatprep.subr.bf16.mxu0 %v1518
        %1556 = vmatpush1.bf16.msra.mxu0 %v1517
        %1557 = vmatprep.subr.bf16.mxu0 %v1516
        %1558 = vmatpush1.bf16.msra.mxu0 %v1515
        %1559 = vmatprep.subr.bf16.mxu0 %v1514
        %1560 = vmatpush1.bf16.msra.mxu0 %v1513
        %1561 = vmatprep.subr.bf16.mxu0 0
        %1562 = vmatpush2.bf16.msra.mxu0 0
        %1563 = vmatprep.subr.bf16.mxu0 0
        %1564 = vmatpush2.bf16.msra.mxu0 0
        %1565 = vmatprep.subr.bf16.mxu0 0
        %1566 = vmatpush2.bf16.msra.mxu0 0
        %1567 = vmatprep.subr.bf16.mxu0 0
        %1568 = vmatpush2.bf16.msra.mxu0 0
        %1569 = vmatprep.subr.bf16.mxu0 0
        %1570 = vmatpush2.bf16.msra.mxu0 0
        %1571 = vmatprep.subr.bf16.mxu0 0
        %1572 = vmatpush2.bf16.msra.mxu0 0
        %1573 = vmatprep.subr.bf16.mxu0 0
        %1574 = vmatpush2.bf16.msra.mxu0 0
        %1575 = vmatprep.subr.bf16.mxu0 0
        %1576 = vmatpush2.bf16.msra.mxu0 0
        %1577 = vmatprep.mubr.bf16.mxu0 0
        %1578 = vmatmul.mubr.bf16.gmra.mxu0 %v1464
        %v1579 = vpop.f32.mrf.mxu0
        %v1580 = vadd.f32 0.0, %v1579
        %v1581 = vpop.f32.mrf.mxu0
        %v1582 = vadd.f32 0.0, %v1581
        %v1583 = vpop.f32.mrf.mxu0
        %v1584 = vadd.f32 0.0, %v1583
        %v1585 = vpop.f32.mrf.mxu0
        %v1586 = vadd.f32 0.0, %v1585
        %1587 = vdwg.mxu0
        %v1588 = vmul.f32 %v1580, %v1580
        %v1589 = vmul.f32 %v1582, %v1582
        %v1590 = vmul.f32 %v1584, %v1584
        %v1591 = vmul.f32 %v1586, %v1586
        %v1592 = vmul.f32 %v1580, %v1588
        %v1593 = vmul.f32 %v1582, %v1589
        %v1594 = vmul.f32 %v1584, %v1590
        %v1595 = vmul.f32 %v1586, %v1591
        %v1596 = vmul.f32 %v1592, 0.044715
        %v1597 = vmul.f32 %v1593, 0.044715
        %v1598 = vmul.f32 %v1594, 0.044715
        %v1599 = vmul.f32 %v1595, 0.044715
        %v1600 = vadd.f32 %v1580, %v1596
        %v1601 = vadd.f32 %v1582, %v1597
        %v1602 = vadd.f32 %v1584, %v1598
        %v1603 = vadd.f32 %v1586, %v1599
        %v1604 = vmul.f32 %v1600, 0.7978846
        %v1605 = vmul.f32 %v1601, 0.7978846
        %v1606 = vmul.f32 %v1602, 0.7978846
        %v1607 = vmul.f32 %v1603, 0.7978846
        %v1608 = vtanh.pop %v1604
        %v1609 = vtanh.pop %v1605
        %v1610 = vtanh.pop %v1606
        %v1611 = vtanh.pop %v1607
        %v1612 = vadd.f32 %v1608, 1.0
        %v1613 = vadd.f32 %v1609, 1.0
        %v1614 = vadd.f32 %v1610, 1.0
        %v1615 = vadd.f32 %v1611, 1.0
        %v1616 = vmul.f32 %v1612, 0.5
        %v1617 = vmul.f32 %v1613, 0.5
        %v1618 = vmul.f32 %v1614, 0.5
        %v1619 = vmul.f32 %v1615, 0.5
        %v1620 = vmul.f32 %v1580, %v1616
        %v1621 = vmul.f32 %v1582, %v1617
        %v1622 = vmul.f32 %v1584, %v1618
        %v1623 = vmul.f32 %v1586, %v1619
        %v1624 = vpack.c.bf16 %v1622, %v1620
        %v1625 = vpack.c.bf16 %v1623, %v1621
        %v1658 = vunpack.c.l.b16 %v1432
        %v1659 = vunpack.c.l.b16 %v1433
        %v1660 = vunpack.c.l.b16 %v1434
        %v1661 = vunpack.c.l.b16 %v1435
        %v1662 = vunpack.c.l.b16 %v1436
        %v1663 = vunpack.c.l.b16 %v1437
        %v1664 = vunpack.c.l.b16 %v1438
        %v1665 = vunpack.c.l.b16 %v1439
        %v1666 = vunpack.c.l.b16 %v1440
        %v1667 = vunpack.c.l.b16 %v1441
        %v1668 = vunpack.c.l.b16 %v1442
        %v1669 = vunpack.c.l.b16 %v1443
        %v1670 = vunpack.c.l.b16 %v1444
        %v1671 = vunpack.c.l.b16 %v1445
        %v1672 = vunpack.c.l.b16 %v1446
        %v1673 = vunpack.c.l.b16 %v1447
        %v1674 = vunpack.c.l.b16 %v1448
        %v1675 = vunpack.c.l.b16 %v1449
        %v1676 = vunpack.c.l.b16 %v1450
        %v1677 = vunpack.c.l.b16 %v1451
        %v1678 = vunpack.c.l.b16 %v1452
        %v1679 = vunpack.c.l.b16 %v1453
        %v1680 = vunpack.c.l.b16 %v1454
        %v1681 = vunpack.c.l.b16 %v1455
        %v1682 = vunpack.c.l.b16 %v1456
        %v1683 = vunpack.c.l.b16 %v1457
        %v1684 = vunpack.c.l.b16 %v1458
        %v1685 = vunpack.c.l.b16 %v1459
        %v1686 = vunpack.c.l.b16 %v1460
        %v1687 = vunpack.c.l.b16 %v1461
        %v1688 = vunpack.c.l.b16 %v1462
        %v1689 = vunpack.c.l.b16 %v1463
        %v1690 = vpack.c.b16 %v1659, %v1658
        %v1691 = vpack.c.b16 %v1661, %v1660
        %v1692 = vpack.c.b16 %v1663, %v1662
        %v1693 = vpack.c.b16 %v1665, %v1664
        %v1694 = vpack.c.b16 %v1667, %v1666
        %v1695 = vpack.c.b16 %v1669, %v1668
        %v1696 = vpack.c.b16 %v1671, %v1670
        %v1697 = vpack.c.b16 %v1673, %v1672
        %v1698 = vpack.c.b16 %v1675, %v1674
        %v1699 = vpack.c.b16 %v1677, %v1676
        %v1700 = vpack.c.b16 %v1679, %v1678
        %v1701 = vpack.c.b16 %v1681, %v1680
        %v1702 = vpack.c.b16 %v1683, %v1682
        %v1703 = vpack.c.b16 %v1685, %v1684
        %v1704 = vpack.c.b16 %v1687, %v1686
        %v1705 = vpack.c.b16 %v1689, %v1688
        %1722 = vmatprep.subr.bf16.mxu0 0
        %1723 = vmatpush1.bf16.msra.mxu0 %v1697
        %1724 = vmatprep.subr.bf16.mxu0 0
        %1725 = vmatpush1.bf16.msra.mxu0 %v1696
        %1726 = vmatprep.subr.bf16.mxu0 0
        %1727 = vmatpush1.bf16.msra.mxu0 %v1695
        %1728 = vmatprep.subr.bf16.mxu0 0
        %1729 = vmatpush1.bf16.msra.mxu0 %v1694
        %1730 = vmatprep.subr.bf16.mxu0 0
        %1731 = vmatpush1.bf16.msra.mxu0 %v1693
        %1732 = vmatprep.subr.bf16.mxu0 0
        %1733 = vmatpush1.bf16.msra.mxu0 %v1692
        %1734 = vmatprep.subr.bf16.mxu0 0
        %1735 = vmatpush1.bf16.msra.mxu0 %v1691
        %1736 = vmatprep.subr.bf16.mxu0 0
        %1737 = vmatpush1.bf16.msra.mxu0 %v1690
        %1738 = vmatprep.subr.bf16.mxu0 0
        %1739 = vmatpush2.bf16.msra.mxu0 %v1705
        %1740 = vmatprep.subr.bf16.mxu0 0
        %1741 = vmatpush2.bf16.msra.mxu0 %v1704
        %1742 = vmatprep.subr.bf16.mxu0 0
        %1743 = vmatpush2.bf16.msra.mxu0 %v1703
        %1744 = vmatprep.subr.bf16.mxu0 0
        %1745 = vmatpush2.bf16.msra.mxu0 %v1702
        %1746 = vmatprep.subr.bf16.mxu0 0
        %1747 = vmatpush2.bf16.msra.mxu0 %v1701
        %1748 = vmatprep.subr.bf16.mxu0 0
        %1749 = vmatpush2.bf16.msra.mxu0 %v1700
        %1750 = vmatprep.subr.bf16.mxu0 0
        %1751 = vmatpush2.bf16.msra.mxu0 %v1699
        %1752 = vmatprep.subr.bf16.mxu0 0
        %1753 = vmatpush2.bf16.msra.mxu0 %v1698
        %1754 = vmatprep.mubr.bf16.mxu0 %v1625
        %1755 = vmatmul.mubr.bf16.gmra.mxu0 %v1624
        %v1756 = vpop.f32.mrf.mxu0
        %v1757 = vadd.f32 0.0, %v1756
        %v1758 = vpop.f32.mrf.mxu0
        %v1759 = vpop.f32.mrf.mxu0
        %v1760 = vadd.f32 0.0, %v1759
        %v1761 = vpop.f32.mrf.mxu0
        %1762 = vdwg.mxu0
        %v1763 = vadd.f32 %v1380, %v1757
        %v1764 = vadd.f32 %v1381, %v1760
        %1765 = vadd.xlane.f32.xlu0 %v1763
        %v1766 = vpop.xlane.xlu0 %1765
        %1767 = vadd.xlane.f32.xlu0 %v1764
        %v1768 = vpop.xlane.xlu0 %1767
        %v1769 = vmul.f32 %v1766, %v886
        %v1770 = vmul.f32 %v1768, %v886
        %v1771 = vsub.f32 %v1763, %v1769
        %v1772 = vsub.f32 %v1764, %v1770
        %v1773 = vmul.f32 %v1771, %v1771
        %v1774 = vmul.f32 %v1772, %v1772
        %1775 = vadd.xlane.f32.xlu0 %v1773
        %v1776 = vpop.xlane.xlu0 %1775
        %1777 = vadd.xlane.f32.xlu0 %v1774
        %v1778 = vpop.xlane.xlu0 %1777
        %v1779 = vmul.f32 %v1776, %v886
        %v1780 = vmul.f32 %v1778, %v886
        %v1781 = vadd.f32 %v1779, 1e-05
        %v1782 = vadd.f32 %v1780, 1e-05
        %v1783 = vrsqrt.pop %v1781
        %v1784 = vrsqrt.pop %v1782
        %v1785 = vmul.f32 %v1771, %v1783
        %v1786 = vmul.f32 %v1772, %v1784
        %v1787 = vlaneseq
        %v1788 = vshrl.u32 %v1787, 7
        %v1789 = vsub.s32 5, %v1788
        %v1790 = vrot.slane %v764, %v1789
        %v1791 = vmul.f32 %v1785, %v1790
        %v1792 = vmul.f32 %v1786, %v1790
        %v1793 = vlaneseq
        %v1794 = vshrl.u32 %v1793, 7
        %v1795 = vsub.s32 6, %v1794
        %v1796 = vrot.slane %v764, %v1795
        %v1797 = vadd.f32 %v1791, %v1796
        %v1798 = vadd.f32 %v1792, %v1796
        %v1799 = vadd.f32 %v1797, %v1798
        %v1800 = vrot.slane %v1799, 4
        %v1801 = vadd.f32 %v1799, %v1800
        %v1802 = vrot.slane %v1801, 2
        %v1803 = vadd.f32 %v1801, %v1802
        %v1804 = vrot.slane %v1803, 1
        %v1805 = vadd.f32 %v1803, %v1804
        %v1806 = vrcp.pop 16.0
        %v1807 = vmul.f32 %v1805, %v1806
        %v1808 = vpack.c.bf16 %v1807, %v1807
        %v1809 = vld [vmem:[#allocation16] sm:$0xf]
        %v1810 = vld [vmem:[#allocation16 + $0x4] sm:$0xf]
        %v1811 = vld [vmem:[#allocation16 + $0x8] sm:$0xf]
        %v1812 = vld [vmem:[#allocation16 + $0xc] sm:$0xf]
        %v1813 = vld [vmem:[#allocation16 + $0x10] sm:$0xf]
        %v1814 = vld [vmem:[#allocation16 + $0x14] sm:$0xf]
        %v1815 = vld [vmem:[#allocation16 + $0x18] sm:$0xf]
        %v1816 = vld [vmem:[#allocation16 + $0x1c] sm:$0xf]
        %v1817 = vld [vmem:[#allocation16 + $0x20] sm:$0xf]
        %v1818 = vld [vmem:[#allocation16 + $0x24] sm:$0xf]
        %v1819 = vld [vmem:[#allocation16 + $0x28] sm:$0xf]
        %v1820 = vld [vmem:[#allocation16 + $0x2c] sm:$0xf]
        %v1821 = vld [vmem:[#allocation16 + $0x30] sm:$0xf]
        %v1822 = vld [vmem:[#allocation16 + $0x34] sm:$0xf]
        %v1823 = vld [vmem:[#allocation16 + $0x38] sm:$0xf]
        %v1824 = vld [vmem:[#allocation16 + $0x3c] sm:$0xf]
        %v1841 = vunpack.c.l.b16 %v1809
        %v1842 = vunpack.c.l.b16 %v1810
        %v1843 = vunpack.c.l.b16 %v1811
        %v1844 = vunpack.c.l.b16 %v1812
        %v1845 = vunpack.c.l.b16 %v1813
        %v1846 = vunpack.c.l.b16 %v1814
        %v1847 = vunpack.c.l.b16 %v1815
        %v1848 = vunpack.c.l.b16 %v1816
        %v1849 = vunpack.c.l.b16 %v1817
        %v1850 = vunpack.c.l.b16 %v1818
        %v1851 = vunpack.c.l.b16 %v1819
        %v1852 = vunpack.c.l.b16 %v1820
        %v1853 = vunpack.c.l.b16 %v1821
        %v1854 = vunpack.c.l.b16 %v1822
        %v1855 = vunpack.c.l.b16 %v1823
        %v1856 = vunpack.c.l.b16 %v1824
        %v1857 = vpack.c.b16 %v1842, %v1841
        %v1858 = vpack.c.b16 %v1844, %v1843
        %v1859 = vpack.c.b16 %v1846, %v1845
        %v1860 = vpack.c.b16 %v1848, %v1847
        %v1861 = vpack.c.b16 %v1850, %v1849
        %v1862 = vpack.c.b16 %v1852, %v1851
        %v1863 = vpack.c.b16 %v1854, %v1853
        %v1864 = vpack.c.b16 %v1856, %v1855
        %1873 = vmatprep.subr.bf16.mxu0 0
        %1874 = vmatpush1.bf16.msra.mxu0 %v1864
        %1875 = vmatprep.subr.bf16.mxu0 0
        %1876 = vmatpush1.bf16.msra.mxu0 %v1863
        %1877 = vmatprep.subr.bf16.mxu0 0
        %1878 = vmatpush1.bf16.msra.mxu0 %v1862
        %1879 = vmatprep.subr.bf16.mxu0 0
        %1880 = vmatpush1.bf16.msra.mxu0 %v1861
        %1881 = vmatprep.subr.bf16.mxu0 0
        %1882 = vmatpush1.bf16.msra.mxu0 %v1860
        %1883 = vmatprep.subr.bf16.mxu0 0
        %1884 = vmatpush1.bf16.msra.mxu0 %v1859
        %1885 = vmatprep.subr.bf16.mxu0 0
        %1886 = vmatpush1.bf16.msra.mxu0 %v1858
        %1887 = vmatprep.subr.bf16.mxu0 0
        %1888 = vmatpush1.bf16.msra.mxu0 %v1857
        %1889 = vmatprep.subr.bf16.mxu0 0
        %1890 = vmatpush2.bf16.msra.mxu0 0
        %1891 = vmatprep.subr.bf16.mxu0 0
        %1892 = vmatpush2.bf16.msra.mxu0 0
        %1893 = vmatprep.subr.bf16.mxu0 0
        %1894 = vmatpush2.bf16.msra.mxu0 0
        %1895 = vmatprep.subr.bf16.mxu0 0
        %1896 = vmatpush2.bf16.msra.mxu0 0
        %1897 = vmatprep.subr.bf16.mxu0 0
        %1898 = vmatpush2.bf16.msra.mxu0 0
        %1899 = vmatprep.subr.bf16.mxu0 0
        %1900 = vmatpush2.bf16.msra.mxu0 0
        %1901 = vmatprep.subr.bf16.mxu0 0
        %1902 = vmatpush2.bf16.msra.mxu0 0
        %1903 = vmatprep.subr.bf16.mxu0 0
        %1904 = vmatpush2.bf16.msra.mxu0 0
        %1905 = vmatprep.mubr.bf16.mxu0 0
        %1906 = vmatmul.mubr.bf16.gmra.mxu0 %v1808
        %v1907 = vpop.f32.mrf.mxu0
        %v1908 = vadd.f32 0.0, %v1907
        %v1909 = vpop.f32.mrf.mxu0
        %v1910 = vpop.f32.mrf.mxu0
        %v1911 = vpop.f32.mrf.mxu0
        %1912 = vdwg.mxu0
        %v1913 = vld [vmem:[%s655] sm:$0xff]
        %v1914 = vlaneseq
        %v1915 = vshrl.u32 %v1914, 7
        %v1916 = vsub.s32 0, %v1915
        %v1917 = vrot.slane %v1908, %v1916
        %v1918 = vadd.f32 %v1913, %v1917
        %v1919 = vld [vmem:[%s762] sm:$0x1]
        %v1920 = vsub.f32 %v1919, 1.0
        %v1921 = vmul.f32 %v1920, 1e+09
        %v1922 = vld [vmem:[%s10] sm:$0xff]
        %1923 = vadd.xlane.f32.xlu0 %v1918
        %v1924 = vpop.xlane.xlu0 %1923
        %v1925 = vmul.f32 %v1924, %v886
        %v1926 = vsub.f32 %v1918, %v1925
        %v1927 = vmul.f32 %v1926, %v1926
        %1928 = vadd.xlane.f32.xlu0 %v1927
        %v1929 = vpop.xlane.xlu0 %1928
        %v1930 = vmul.f32 %v1929, %v886
        %v1931 = vadd.f32 %v1930, 1e-05
        %v1932 = vrsqrt.pop %v1931
        %v1933 = vmul.f32 %v1926, %v1932
        %v1934 = vlaneseq
        %v1935 = vshrl.u32 %v1934, 7
        %v1936 = vsub.s32 0, %v1935
        %v1937 = vrot.slane %v1922, %v1936
        %v1938 = vmul.f32 %v1933, %v1937
        %v1939 = vlaneseq
        %v1940 = vshrl.u32 %v1939, 7
        %v1941 = vsub.s32 1, %v1940
        %v1942 = vrot.slane %v1922, %v1941
        %v1943 = vadd.f32 %v1938, %v1942
        %v1944 = vld [vmem:[#allocation17] sm:$0xff]
        %v1945 = vld [vmem:[#allocation17 + $0x8] sm:$0xf]
        %v1946 = vld [vmem:[#allocation17 + $0xc] sm:$0xff]
        %v1947 = vld [vmem:[#allocation17 + $0x14] sm:$0xf]
        %v1948 = vld [vmem:[#allocation17 + $0x18] sm:$0xff]
        %v1949 = vld [vmem:[#allocation17 + $0x20] sm:$0xf]
        %v1950 = vld [vmem:[#allocation17 + $0x24] sm:$0xff]
        %v1951 = vld [vmem:[#allocation17 + $0x2c] sm:$0xf]
        %v1952 = vld [vmem:[#allocation17 + $0x30] sm:$0xff]
        %v1953 = vld [vmem:[#allocation17 + $0x38] sm:$0xf]
        %v1954 = vld [vmem:[#allocation17 + $0x3c] sm:$0xff]
        %v1955 = vld [vmem:[#allocation17 + $0x44] sm:$0xf]
        %v1956 = vld [vmem:[#allocation17 + $0x48] sm:$0xff]
        %v1957 = vld [vmem:[#allocation17 + $0x50] sm:$0xf]
        %v1958 = vld [vmem:[#allocation17 + $0x54] sm:$0xff]
        %v1959 = vld [vmem:[#allocation17 + $0x5c] sm:$0xf]
        %v1960 = vld [vmem:[#allocation17 + $0x60] sm:$0xff]
        %v1961 = vld [vmem:[#allocation17 + $0x68] sm:$0xf]
        %v1962 = vld [vmem:[#allocation17 + $0x6c] sm:$0xff]
        %v1963 = vld [vmem:[#allocation17 + $0x74] sm:$0xf]
        %v1964 = vld [vmem:[#allocation17 + $0x78] sm:$0xff]
        %v1965 = vld [vmem:[#allocation17 + $0x80] sm:$0xf]
        %v1966 = vld [vmem:[#allocation17 + $0x84] sm:$0xff]
        %v1967 = vld [vmem:[#allocation17 + $0x8c] sm:$0xf]
        %v1968 = vld [vmem:[#allocation17 + $0x90] sm:$0xff]
        %v1969 = vld [vmem:[#allocation17 + $0x98] sm:$0xf]
        %v1970 = vld [vmem:[#allocation17 + $0x9c] sm:$0xff]
        %v1971 = vld [vmem:[#allocation17 + $0xa4] sm:$0xf]
        %v1972 = vld [vmem:[#allocation17 + $0xa8] sm:$0xff]
        %v1973 = vld [vmem:[#allocation17 + $0xb0] sm:$0xf]
        %v1974 = vld [vmem:[#allocation17 + $0xb4] sm:$0xff]
        %v1975 = vld [vmem:[#allocation17 + $0xbc] sm:$0xf]
        %v1976 = vld [vmem:[#allocation19] sm:$0xf]
        %v1977 = vld [vmem:[#allocation19 + $0x4] sm:$0xf]
        %v1978 = vld [vmem:[#allocation19 + $0x8] sm:$0xf]
        %v1979 = vld [vmem:[#allocation19 + $0xc] sm:$0xf]
        %v1980 = vld [vmem:[#allocation19 + $0x10] sm:$0xf]
        %v1981 = vld [vmem:[#allocation19 + $0x14] sm:$0xf]
        %v1982 = vld [vmem:[#allocation19 + $0x18] sm:$0xf]
        %v1983 = vld [vmem:[#allocation19 + $0x1c] sm:$0xf]
        %v1984 = vld [vmem:[#allocation19 + $0x20] sm:$0xf]
        %v1985 = vld [vmem:[#allocation19 + $0x24] sm:$0xf]
        %v1986 = vld [vmem:[#allocation19 + $0x28] sm:$0xf]
        %v1987 = vld [vmem:[#allocation19 + $0x2c] sm:$0xf]
        %v1988 = vld [vmem:[#allocation19 + $0x30] sm:$0xf]
        %v1989 = vld [vmem:[#allocation19 + $0x34] sm:$0xf]
        %v1990 = vld [vmem:[#allocation19 + $0x38] sm:$0xf]
        %v1991 = vld [vmem:[#allocation19 + $0x3c] sm:$0xf]
        %v1992 = vpack.c.bf16 %v1943, %v1943
        %v2025 = vunpack.c.l.b16 %v1944
        %v2026 = vunpack.c.h.b16 %v1944
        %v2027 = vunpack.c.l.b16 %v1945
        %v2028 = vunpack.c.l.b16 %v1946
        %v2029 = vunpack.c.h.b16 %v1946
        %v2030 = vunpack.c.l.b16 %v1947
        %v2031 = vunpack.c.l.b16 %v1948
        %v2032 = vunpack.c.h.b16 %v1948
        %v2033 = vunpack.c.l.b16 %v1949
        %v2034 = vunpack.c.l.b16 %v1950
        %v2035 = vunpack.c.h.b16 %v1950
        %v2036 = vunpack.c.l.b16 %v1951
        %v2037 = vunpack.c.l.b16 %v1952
        %v2038 = vunpack.c.h.b16 %v1952
        %v2039 = vunpack.c.l.b16 %v1953
        %v2040 = vunpack.c.l.b16 %v1954
        %v2041 = vunpack.c.h.b16 %v1954
        %v2042 = vunpack.c.l.b16 %v1955
        %v2043 = vunpack.c.l.b16 %v1956
        %v2044 = vunpack.c.h.b16 %v1956
        %v2045 = vunpack.c.l.b16 %v1957
        %v2046 = vunpack.c.l.b16 %v1958
        %v2047 = vunpack.c.h.b16 %v1958
        %v2048 = vunpack.c.l.b16 %v1959
        %v2049 = vunpack.c.l.b16 %v1960
        %v2050 = vunpack.c.h.b16 %v1960
        %v2051 = vunpack.c.l.b16 %v1961
        %v2052 = vunpack.c.l.b16 %v1962
        %v2053 = vunpack.c.h.b16 %v1962
        %v2054 = vunpack.c.l.b16 %v1963
        %v2055 = vunpack.c.l.b16 %v1964
        %v2056 = vunpack.c.h.b16 %v1964
        %v2057 = vunpack.c.l.b16 %v1965
        %v2058 = vunpack.c.l.b16 %v1966
        %v2059 = vunpack.c.h.b16 %v1966
        %v2060 = vunpack.c.l.b16 %v1967
        %v2061 = vunpack.c.l.b16 %v1968
        %v2062 = vunpack.c.h.b16 %v1968
        %v2063 = vunpack.c.l.b16 %v1969
        %v2064 = vunpack.c.l.b16 %v1970
        %v2065 = vunpack.c.h.b16 %v1970
        %v2066 = vunpack.c.l.b16 %v1971
        %v2067 = vunpack.c.l.b16 %v1972
        %v2068 = vunpack.c.h.b16 %v1972
        %v2069 = vunpack.c.l.b16 %v1973
        %v2070 = vunpack.c.l.b16 %v1974
        %v2071 = vunpack.c.h.b16 %v1974
        %v2072 = vunpack.c.l.b16 %v1975
        %v2073 = vpack.c.b16 %v2028, %v2025
        %v2074 = vpack.c.b16 %v2029, %v2026
        %v2075 = vpack.c.b16 %v2030, %v2027
        %v2076 = vpack.c.b16 %v2034, %v2031
        %v2077 = vpack.c.b16 %v2035, %v2032
        %v2078 = vpack.c.b16 %v2036, %v2033
        %v2079 = vpack.c.b16 %v2040, %v2037
        %v2080 = vpack.c.b16 %v2041, %v2038
        %v2081 = vpack.c.b16 %v2042, %v2039
        %v2082 = vpack.c.b16 %v2046, %v2043
        %v2083 = vpack.c.b16 %v2047, %v2044
        %v2084 = vpack.c.b16 %v2048, %v2045
        %v2085 = vpack.c.b16 %v2052, %v2049
        %v2086 = vpack.c.b16 %v2053, %v2050
        %v2087 = vpack.c.b16 %v2054, %v2051
        %v2088 = vpack.c.b16 %v2058, %v2055
        %v2089 = vpack.c.b16 %v2059, %v2056
        %v2090 = vpack.c.b16 %v2060, %v2057
        %v2091 = vpack.c.b16 %v2064, %v2061
        %v2092 = vpack.c.b16 %v2065, %v2062
        %v2093 = vpack.c.b16 %v2066, %v2063
        %v2094 = vpack.c.b16 %v2070, %v2067
        %v2095 = vpack.c.b16 %v2071, %v2068
        %v2096 = vpack.c.b16 %v2072, %v2069
        %2121 = vmatprep.subr.bf16.mxu0 %v2095
        %2122 = vmatpush1.bf16.msra.mxu0 %v2094
        %2123 = vmatprep.subr.bf16.mxu0 %v2092
        %2124 = vmatpush1.bf16.msra.mxu0 %v2091
        %2125 = vmatprep.subr.bf16.mxu0 %v2089
        %2126 = vmatpush1.bf16.msra.mxu0 %v2088
        %2127 = vmatprep.subr.bf16.mxu0 %v2086
        %2128 = vmatpush1.bf16.msra.mxu0 %v2085
        %2129 = vmatprep.subr.bf16.mxu0 %v2083
        %2130 = vmatpush1.bf16.msra.mxu0 %v2082
        %2131 = vmatprep.subr.bf16.mxu0 %v2080
        %2132 = vmatpush1.bf16.msra.mxu0 %v2079
        %2133 = vmatprep.subr.bf16.mxu0 %v2077
        %2134 = vmatpush1.bf16.msra.mxu0 %v2076
        %2135 = vmatprep.subr.bf16.mxu0 %v2074
        %2136 = vmatpush1.bf16.msra.mxu0 %v2073
        %2137 = vmatprep.subr.bf16.mxu0 0
        %2138 = vmatpush2.bf16.msra.mxu0 0
        %2139 = vmatprep.subr.bf16.mxu0 0
        %2140 = vmatpush2.bf16.msra.mxu0 0
        %2141 = vmatprep.subr.bf16.mxu0 0
        %2142 = vmatpush2.bf16.msra.mxu0 0
        %2143 = vmatprep.subr.bf16.mxu0 0
        %2144 = vmatpush2.bf16.msra.mxu0 0
        %2145 = vmatprep.subr.bf16.mxu0 0
        %2146 = vmatpush2.bf16.msra.mxu0 0
        %2147 = vmatprep.subr.bf16.mxu0 0
        %2148 = vmatpush2.bf16.msra.mxu0 0
        %2149 = vmatprep.subr.bf16.mxu0 0
        %2150 = vmatpush2.bf16.msra.mxu0 0
        %2151 = vmatprep.subr.bf16.mxu0 0
        %2152 = vmatpush2.bf16.msra.mxu0 0
        %2153 = vmatprep.mubr.bf16.mxu0 0
        %2154 = vmatmul.mubr.bf16.gmra.mxu0 %v1992
        %v2155 = vpop.f32.mrf.mxu0
        %v2156 = vadd.f32 0.0, %v2155
        %v2157 = vpop.f32.mrf.mxu0
        %v2158 = vadd.f32 0.0, %v2157
        %v2159 = vpop.f32.mrf.mxu0
        %v2160 = vpop.f32.mrf.mxu0
        %2161 = vdwg.mxu0
        %2162 = vmatprep.subr.bf16.mxu0 0
        %2163 = vmatpush1.bf16.msra.mxu0 %v2096
        %2164 = vmatprep.subr.bf16.mxu0 0
        %2165 = vmatpush1.bf16.msra.mxu0 %v2093
        %2166 = vmatprep.subr.bf16.mxu0 0
        %2167 = vmatpush1.bf16.msra.mxu0 %v2090
        %2168 = vmatprep.subr.bf16.mxu0 0
        %2169 = vmatpush1.bf16.msra.mxu0 %v2087
        %2170 = vmatprep.subr.bf16.mxu0 0
        %2171 = vmatpush1.bf16.msra.mxu0 %v2084
        %2172 = vmatprep.subr.bf16.mxu0 0
        %2173 = vmatpush1.bf16.msra.mxu0 %v2081
        %2174 = vmatprep.subr.bf16.mxu0 0
        %2175 = vmatpush1.bf16.msra.mxu0 %v2078
        %2176 = vmatprep.subr.bf16.mxu0 0
        %2177 = vmatpush1.bf16.msra.mxu0 %v2075
        %2178 = vmatprep.subr.bf16.mxu0 0
        %2179 = vmatpush2.bf16.msra.mxu0 0
        %2180 = vmatprep.subr.bf16.mxu0 0
        %2181 = vmatpush2.bf16.msra.mxu0 0
        %2182 = vmatprep.subr.bf16.mxu0 0
        %2183 = vmatpush2.bf16.msra.mxu0 0
        %2184 = vmatprep.subr.bf16.mxu0 0
        %2185 = vmatpush2.bf16.msra.mxu0 0
        %2186 = vmatprep.subr.bf16.mxu0 0
        %2187 = vmatpush2.bf16.msra.mxu0 0
        %2188 = vmatprep.subr.bf16.mxu0 0
        %2189 = vmatpush2.bf16.msra.mxu0 0
        %2190 = vmatprep.subr.bf16.mxu0 0
        %2191 = vmatpush2.bf16.msra.mxu0 0
        %2192 = vmatprep.subr.bf16.mxu0 0
        %2193 = vmatpush2.bf16.msra.mxu0 0
        %2194 = vmatprep.mubr.bf16.mxu0 0
        %2195 = vmatmul.mubr.bf16.gmra.mxu0 %v1992
        %v2196 = vpop.f32.mrf.mxu0
        %v2197 = vadd.f32 0.0, %v2196
        %v2198 = vpop.f32.mrf.mxu0
        %v2199 = vpop.f32.mrf.mxu0
        %v2200 = vpop.f32.mrf.mxu0
        %2201 = vdwg.mxu0
        %v2202 = vpack.c.bf16 %v2156, %v2156
        %v2203 = vpack.c.bf16 %v2158, %v2158
        %v2205 = vlaneseq
        %v2206 = vshrl.u32 %v2205, 7
        %v2207 = vsub.s32 0, %v2206
        %v2208 = vrot.slane %v1921, %v2207
        %2210 = vmatprep.subr.bf16.mxu0 0
        %2211 = vmatpush1.bf16.xpose.msra.mxu0 0
        %2212 = vmatprep.subr.bf16.mxu0 0
        %2213 = vmatpush1.bf16.xpose.msra.mxu0 0
        %2214 = vmatprep.subr.bf16.mxu0 0
        %2215 = vmatpush1.bf16.xpose.msra.mxu0 0
        %2216 = vmatprep.subr.bf16.mxu0 0
        %2217 = vmatpush1.bf16.xpose.msra.mxu0 0
        %2218 = vmatprep.subr.bf16.mxu0 0
        %2219 = vmatpush1.bf16.xpose.msra.mxu0 0
        %2220 = vmatprep.subr.bf16.mxu0 0
        %2221 = vmatpush1.bf16.xpose.msra.mxu0 0
        %2222 = vmatprep.subr.bf16.mxu0 0
        %2223 = vmatpush1.bf16.xpose.msra.mxu0 0
        %2224 = vmatprep.subr.bf16.mxu0 0
        %2225 = vmatpush1.bf16.xpose.msra.mxu0 %v2203
        %2226 = vmatprep.subr.bf16.mxu0 0
        %2227 = vmatpush2.bf16.xpose.msra.mxu0 0
        %2228 = vmatprep.subr.bf16.mxu0 0
        %2229 = vmatpush2.bf16.xpose.msra.mxu0 0
        %2230 = vmatprep.subr.bf16.mxu0 0
        %2231 = vmatpush2.bf16.xpose.msra.mxu0 0
        %2232 = vmatprep.subr.bf16.mxu0 0
        %2233 = vmatpush2.bf16.xpose.msra.mxu0 0
        %2234 = vmatprep.subr.bf16.mxu0 0
        %2235 = vmatpush2.bf16.xpose.msra.mxu0 0
        %2236 = vmatprep.subr.bf16.mxu0 0
        %2237 = vmatpush2.bf16.xpose.msra.mxu0 0
        %2238 = vmatprep.subr.bf16.mxu0 0
        %2239 = vmatpush2.bf16.xpose.msra.mxu0 0
        %2240 = vmatprep.subr.bf16.mxu0 0
        %2241 = vmatpush2.bf16.xpose.msra.mxu0 0
        %2242 = vmatprep.mubr.bf16.mxu0 0
        %2243 = vmatmul.mubr.bf16.gmra.mxu0 %v2202
        %v2244 = vpop.f32.mrf.mxu0
        %v2245 = vadd.f32 %v2208, %v2244
        %v2246 = vpop.f32.mrf.mxu0
        %v2247 = vpop.f32.mrf.mxu0
        %v2248 = vpop.f32.mrf.mxu0
        %2249 = vdwg.mxu0
        %vm2250 = vcmask 64512
        %v2251 = vsel %vm2250, %v2245, -inf
        %2252 = vmax.xlane.f32.xlu0 %v2251
        %v2253 = vpop.xlane.xlu0 %2252
        %v2254 = vsub.f32 %v2245, %v2253
        %v2255 = vmul.f32 %v2254, 1.442695
        %v2256 = vpow.pop %v2255
        %v2257 = vsel %vm2250, %v2256, 0.0
        %2258 = vadd.xlane.f32.xlu0 %v2257
        %v2259 = vpop.xlane.xlu0 %2258
        %v2260 = vrcp.pop %v2259
        %v2261 = vmul.f32 %v2256, %v2260
        %v2262 = vpack.c.bf16 %v2261, %v2261
        %v2263 = vpack.c.bf16 %v2197, %v2197
        %v2265 = vsel %vm2250, %v2262, 0
        %vm2267 = vcmask 1043456
        %v2269 = vsel %vm2267, %v2263, 0
        %2271 = vmatprep.subr.bf16.mxu0 0
        %2272 = vmatpush1.bf16.msra.mxu0 0
        %2273 = vmatprep.subr.bf16.mxu0 0
        %2274 = vmatpush1.bf16.msra.mxu0 0
        %2275 = vmatprep.subr.bf16.mxu0 0
        %2276 = vmatpush1.bf16.msra.mxu0 0
        %2277 = vmatprep.subr.bf16.mxu0 0
        %2278 = vmatpush1.bf16.msra.mxu0 0
        %2279 = vmatprep.subr.bf16.mxu0 0
        %2280 = vmatpush1.bf16.msra.mxu0 0
        %2281 = vmatprep.subr.bf16.mxu0 0
        %2282 = vmatpush1.bf16.msra.mxu0 0
        %2283 = vmatprep.subr.bf16.mxu0 0
        %2284 = vmatpush1.bf16.msra.mxu0 0
        %2285 = vmatprep.subr.bf16.mxu0 0
        %2286 = vmatpush1.bf16.msra.mxu0 %v2269
        %2287 = vmatprep.subr.bf16.mxu0 0
        %2288 = vmatpush2.bf16.msra.mxu0 0
        %2289 = vmatprep.subr.bf16.mxu0 0
        %2290 = vmatpush2.bf16.msra.mxu0 0
        %2291 = vmatprep.subr.bf16.mxu0 0
        %2292 = vmatpush2.bf16.msra.mxu0 0
        %2293 = vmatprep.subr.bf16.mxu0 0
        %2294 = vmatpush2.bf16.msra.mxu0 0
        %2295 = vmatprep.subr.bf16.mxu0 0
        %2296 = vmatpush2.bf16.msra.mxu0 0
        %2297 = vmatprep.subr.bf16.mxu0 0
        %2298 = vmatpush2.bf16.msra.mxu0 0
        %2299 = vmatprep.subr.bf16.mxu0 0
        %2300 = vmatpush2.bf16.msra.mxu0 0
        %2301 = vmatprep.subr.bf16.mxu0 0
        %2302 = vmatpush2.bf16.msra.mxu0 0
        %2303 = vmatprep.mubr.bf16.mxu0 0
        %2304 = vmatmul.mubr.bf16.gmra.mxu0 %v2265
        %v2305 = vpop.f32.mrf.mxu0
        %v2306 = vadd.f32 0.0, %v2305
        %v2307 = vpop.f32.mrf.mxu0
        %v2308 = vpop.f32.mrf.mxu0
        %v2309 = vpop.f32.mrf.mxu0
        %2310 = vdwg.mxu0
        %v2311 = vpack.c.bf16 %v2306, %v2306
        %v2328 = vunpack.c.l.b16 %v1976
        %v2329 = vunpack.c.l.b16 %v1977
        %v2330 = vunpack.c.l.b16 %v1978
        %v2331 = vunpack.c.l.b16 %v1979
        %v2332 = vunpack.c.l.b16 %v1980
        %v2333 = vunpack.c.l.b16 %v1981
        %v2334 = vunpack.c.l.b16 %v1982
        %v2335 = vunpack.c.l.b16 %v1983
        %v2336 = vunpack.c.l.b16 %v1984
        %v2337 = vunpack.c.l.b16 %v1985
        %v2338 = vunpack.c.l.b16 %v1986
        %v2339 = vunpack.c.l.b16 %v1987
        %v2340 = vunpack.c.l.b16 %v1988
        %v2341 = vunpack.c.l.b16 %v1989
        %v2342 = vunpack.c.l.b16 %v1990
        %v2343 = vunpack.c.l.b16 %v1991
        %v2344 = vpack.c.b16 %v2329, %v2328
        %v2345 = vpack.c.b16 %v2331, %v2330
        %v2346 = vpack.c.b16 %v2333, %v2332
        %v2347 = vpack.c.b16 %v2335, %v2334
        %v2348 = vpack.c.b16 %v2337, %v2336
        %v2349 = vpack.c.b16 %v2339, %v2338
        %v2350 = vpack.c.b16 %v2341, %v2340
        %v2351 = vpack.c.b16 %v2343, %v2342
        %2360 = vmatprep.subr.bf16.mxu0 0
        %2361 = vmatpush1.bf16.msra.mxu0 %v2351
        %2362 = vmatprep.subr.bf16.mxu0 0
        %2363 = vmatpush1.bf16.msra.mxu0 %v2350
        %2364 = vmatprep.subr.bf16.mxu0 0
        %2365 = vmatpush1.bf16.msra.mxu0 %v2349
        %2366 = vmatprep.subr.bf16.mxu0 0
        %2367 = vmatpush1.bf16.msra.mxu0 %v2348
        %2368 = vmatprep.subr.bf16.mxu0 0
        %2369 = vmatpush1.bf16.msra.mxu0 %v2347
        %2370 = vmatprep.subr.bf16.mxu0 0
        %2371 = vmatpush1.bf16.msra.mxu0 %v2346
        %2372 = vmatprep.subr.bf16.mxu0 0
        %2373 = vmatpush1.bf16.msra.mxu0 %v2345
        %2374 = vmatprep.subr.bf16.mxu0 0
        %2375 = vmatpush1.bf16.msra.mxu0 %v2344
        %2376 = vmatprep.subr.bf16.mxu0 0
        %2377 = vmatpush2.bf16.msra.mxu0 0
        %2378 = vmatprep.subr.bf16.mxu0 0
        %2379 = vmatpush2.bf16.msra.mxu0 0
        %2380 = vmatprep.subr.bf16.mxu0 0
        %2381 = vmatpush2.bf16.msra.mxu0 0
        %2382 = vmatprep.subr.bf16.mxu0 0
        %2383 = vmatpush2.bf16.msra.mxu0 0
        %2384 = vmatprep.subr.bf16.mxu0 0
        %2385 = vmatpush2.bf16.msra.mxu0 0
        %2386 = vmatprep.subr.bf16.mxu0 0
        %2387 = vmatpush2.bf16.msra.mxu0 0
        %2388 = vmatprep.subr.bf16.mxu0 0
        %2389 = vmatpush2.bf16.msra.mxu0 0
        %2390 = vmatprep.subr.bf16.mxu0 0
        %2391 = vmatpush2.bf16.msra.mxu0 0
        %2392 = vmatprep.mubr.bf16.mxu0 0
        %2393 = vmatmul.mubr.bf16.gmra.mxu0 %v2311
        %v2394 = vpop.f32.mrf.mxu0
        %v2395 = vadd.f32 0.0, %v2394
        %v2396 = vpop.f32.mrf.mxu0
        %v2397 = vpop.f32.mrf.mxu0
        %v2398 = vpop.f32.mrf.mxu0
        %2399 = vdwg.mxu0
        %v2400 = vadd.f32 %v1918, %v2395
        %2401 = vadd.xlane.f32.xlu0 %v2400
        %v2402 = vpop.xlane.xlu0 %2401
        %v2403 = vmul.f32 %v2402, %v886
        %v2404 = vsub.f32 %v2400, %v2403
        %v2405 = vmul.f32 %v2404, %v2404
        %2406 = vadd.xlane.f32.xlu0 %v2405
        %v2407 = vpop.xlane.xlu0 %2406
        %v2408 = vmul.f32 %v2407, %v886
        %v2409 = vadd.f32 %v2408, 1e-05
        %v2410 = vrsqrt.pop %v2409
        %v2411 = vmul.f32 %v2404, %v2410
        %v2412 = vlaneseq
        %v2413 = vshrl.u32 %v2412, 7
        %v2414 = vsub.s32 2, %v2413
        %v2415 = vrot.slane %v1922, %v2414
        %v2416 = vmul.f32 %v2411, %v2415
        %v2417 = vlaneseq
        %v2418 = vshrl.u32 %v2417, 7
        %v2419 = vsub.s32 3, %v2418
        %v2420 = vrot.slane %v1922, %v2419
        %v2421 = vadd.f32 %v2416, %v2420
        %v2422 = vld [vmem:[#allocation20] sm:$0xff]
        %v2423 = vld [vmem:[#allocation20 + $0x8] sm:$0xff]
        %v2424 = vld [vmem:[#allocation20 + $0x10] sm:$0xff]
        %v2425 = vld [vmem:[#allocation20 + $0x18] sm:$0xff]
        %v2426 = vld [vmem:[#allocation20 + $0x20] sm:$0xff]
        %v2427 = vld [vmem:[#allocation20 + $0x28] sm:$0xff]
        %v2428 = vld [vmem:[#allocation20 + $0x30] sm:$0xff]
        %v2429 = vld [vmem:[#allocation20 + $0x38] sm:$0xff]
        %v2430 = vld [vmem:[#allocation20 + $0x40] sm:$0xff]
        %v2431 = vld [vmem:[#allocation20 + $0x48] sm:$0xff]
        %v2432 = vld [vmem:[#allocation20 + $0x50] sm:$0xff]
        %v2433 = vld [vmem:[#allocation20 + $0x58] sm:$0xff]
        %v2434 = vld [vmem:[#allocation20 + $0x60] sm:$0xff]
        %v2435 = vld [vmem:[#allocation20 + $0x68] sm:$0xff]
        %v2436 = vld [vmem:[#allocation20 + $0x70] sm:$0xff]
        %v2437 = vld [vmem:[#allocation20 + $0x78] sm:$0xff]
        %v2438 = vld [vmem:[#allocation22] sm:$0xf]
        %v2439 = vld [vmem:[#allocation22 + $0x4] sm:$0xf]
        %v2440 = vld [vmem:[#allocation22 + $0x8] sm:$0xf]
        %v2441 = vld [vmem:[#allocation22 + $0xc] sm:$0xf]
        %v2442 = vld [vmem:[#allocation22 + $0x10] sm:$0xf]
        %v2443 = vld [vmem:[#allocation22 + $0x14] sm:$0xf]
        %v2444 = vld [vmem:[#allocation22 + $0x18] sm:$0xf]
        %v2445 = vld [vmem:[#allocation22 + $0x1c] sm:$0xf]
        %v2446 = vld [vmem:[#allocation22 + $0x20] sm:$0xf]
        %v2447 = vld [vmem:[#allocation22 + $0x24] sm:$0xf]
        %v2448 = vld [vmem:[#allocation22 + $0x28] sm:$0xf]
        %v2449 = vld [vmem:[#allocation22 + $0x2c] sm:$0xf]
        %v2450 = vld [vmem:[#allocation22 + $0x30] sm:$0xf]
        %v2451 = vld [vmem:[#allocation22 + $0x34] sm:$0xf]
        %v2452 = vld [vmem:[#allocation22 + $0x38] sm:$0xf]
        %v2453 = vld [vmem:[#allocation22 + $0x3c] sm:$0xf]
        %v2454 = vld [vmem:[#allocation22 + $0x40] sm:$0xf]
        %v2455 = vld [vmem:[#allocation22 + $0x44] sm:$0xf]
        %v2456 = vld [vmem:[#allocation22 + $0x48] sm:$0xf]
        %v2457 = vld [vmem:[#allocation22 + $0x4c] sm:$0xf]
        %v2458 = vld [vmem:[#allocation22 + $0x50] sm:$0xf]
        %v2459 = vld [vmem:[#allocation22 + $0x54] sm:$0xf]
        %v2460 = vld [vmem:[#allocation22 + $0x58] sm:$0xf]
        %v2461 = vld [vmem:[#allocation22 + $0x5c] sm:$0xf]
        %v2462 = vld [vmem:[#allocation22 + $0x60] sm:$0xf]
        %v2463 = vld [vmem:[#allocation22 + $0x64] sm:$0xf]
        %v2464 = vld [vmem:[#allocation22 + $0x68] sm:$0xf]
        %v2465 = vld [vmem:[#allocation22 + $0x6c] sm:$0xf]
        %v2466 = vld [vmem:[#allocation22 + $0x70] sm:$0xf]
        %v2467 = vld [vmem:[#allocation22 + $0x74] sm:$0xf]
        %v2468 = vld [vmem:[#allocation22 + $0x78] sm:$0xf]
        %v2469 = vld [vmem:[#allocation22 + $0x7c] sm:$0xf]
        %v2470 = vpack.c.bf16 %v2421, %v2421
        %v2487 = vunpack.c.l.b16 %v2422
        %v2488 = vunpack.c.h.b16 %v2422
        %v2489 = vunpack.c.l.b16 %v2423
        %v2490 = vunpack.c.h.b16 %v2423
        %v2491 = vunpack.c.l.b16 %v2424
        %v2492 = vunpack.c.h.b16 %v2424
        %v2493 = vunpack.c.l.b16 %v2425
        %v2494 = vunpack.c.h.b16 %v2425
        %v2495 = vunpack.c.l.b16 %v2426
        %v2496 = vunpack.c.h.b16 %v2426
        %v2497 = vunpack.c.l.b16 %v2427
        %v2498 = vunpack.c.h.b16 %v2427
        %v2499 = vunpack.c.l.b16 %v2428
        %v2500 = vunpack.c.h.b16 %v2428
        %v2501 = vunpack.c.l.b16 %v2429
        %v2502 = vunpack.c.h.b16 %v2429
        %v2503 = vunpack.c.l.b16 %v2430
        %v2504 = vunpack.c.h.b16 %v2430
        %v2505 = vunpack.c.l.b16 %v2431
        %v2506 = vunpack.c.h.b16 %v2431
        %v2507 = vunpack.c.l.b16 %v2432
        %v2508 = vunpack.c.h.b16 %v2432
        %v2509 = vunpack.c.l.b16 %v2433
        %v2510 = vunpack.c.h.b16 %v2433
        %v2511 = vunpack.c.l.b16 %v2434
        %v2512 = vunpack.c.h.b16 %v2434
        %v2513 = vunpack.c.l.b16 %v2435
        %v2514 = vunpack.c.h.b16 %v2435
        %v2515 = vunpack.c.l.b16 %v2436
        %v2516 = vunpack.c.h.b16 %v2436
        %v2517 = vunpack.c.l.b16 %v2437
        %v2518 = vunpack.c.h.b16 %v2437
        %v2519 = vpack.c.b16 %v2489, %v2487
        %v2520 = vpack.c.b16 %v2490, %v2488
        %v2521 = vpack.c.b16 %v2493, %v2491
        %v2522 = vpack.c.b16 %v2494, %v2492
        %v2523 = vpack.c.b16 %v2497, %v2495
        %v2524 = vpack.c.b16 %v2498, %v2496
        %v2525 = vpack.c.b16 %v2501, %v2499
        %v2526 = vpack.c.b16 %v2502, %v2500
        %v2527 = vpack.c.b16 %v2505, %v2503
        %v2528 = vpack.c.b16 %v2506, %v2504
        %v2529 = vpack.c.b16 %v2509, %v2507
        %v2530 = vpack.c.b16 %v2510, %v2508
        %v2531 = vpack.c.b16 %v2513, %v2511
        %v2532 = vpack.c.b16 %v2514, %v2512
        %v2533 = vpack.c.b16 %v2517, %v2515
        %v2534 = vpack.c.b16 %v2518, %v2516
        %2551 = vmatprep.subr.bf16.mxu0 %v2534
        %2552 = vmatpush1.bf16.msra.mxu0 %v2533
        %2553 = vmatprep.subr.bf16.mxu0 %v2532
        %2554 = vmatpush1.bf16.msra.mxu0 %v2531
        %2555 = vmatprep.subr.bf16.mxu0 %v2530
        %2556 = vmatpush1.bf16.msra.mxu0 %v2529
        %2557 = vmatprep.subr.bf16.mxu0 %v2528
        %2558 = vmatpush1.bf16.msra.mxu0 %v2527
        %2559 = vmatprep.subr.bf16.mxu0 %v2526
        %2560 = vmatpush1.bf16.msra.mxu0 %v2525
        %2561 = vmatprep.subr.bf16.mxu0 %v2524
        %2562 = vmatpush1.bf16.msra.mxu0 %v2523
        %2563 = vmatprep.subr.bf16.mxu0 %v2522
        %2564 = vmatpush1.bf16.msra.mxu0 %v2521
        %2565 = vmatprep.subr.bf16.mxu0 %v2520
        %2566 = vmatpush1.bf16.msra.mxu0 %v2519
        %2567 = vmatprep.subr.bf16.mxu0 0
        %2568 = vmatpush2.bf16.msra.mxu0 0
        %2569 = vmatprep.subr.bf16.mxu0 0
        %2570 = vmatpush2.bf16.msra.mxu0 0
        %2571 = vmatprep.subr.bf16.mxu0 0
        %2572 = vmatpush2.bf16.msra.mxu0 0
        %2573 = vmatprep.subr.bf16.mxu0 0
        %2574 = vmatpush2.bf16.msra.mxu0 0
        %2575 = vmatprep.subr.bf16.mxu0 0
        %2576 = vmatpush2.bf16.msra.mxu0 0
        %2577 = vmatprep.subr.bf16.mxu0 0
        %2578 = vmatpush2.bf16.msra.mxu0 0
        %2579 = vmatprep.subr.bf16.mxu0 0
        %2580 = vmatpush2.bf16.msra.mxu0 0
        %2581 = vmatprep.subr.bf16.mxu0 0
        %2582 = vmatpush2.bf16.msra.mxu0 0
        %2583 = vmatprep.mubr.bf16.mxu0 0
        %2584 = vmatmul.mubr.bf16.gmra.mxu0 %v2470
        %v2585 = vpop.f32.mrf.mxu0
        %v2586 = vadd.f32 0.0, %v2585
        %v2587 = vpop.f32.mrf.mxu0
        %v2588 = vadd.f32 0.0, %v2587
        %v2589 = vpop.f32.mrf.mxu0
        %v2590 = vpop.f32.mrf.mxu0
        %2591 = vdwg.mxu0
        %v2592 = vmul.f32 %v2586, %v2586
        %v2593 = vmul.f32 %v2588, %v2588
        %v2594 = vmul.f32 %v2586, %v2592
        %v2595 = vmul.f32 %v2588, %v2593
        %v2596 = vmul.f32 %v2594, 0.044715
        %v2597 = vmul.f32 %v2595, 0.044715
        %v2598 = vadd.f32 %v2586, %v2596
        %v2599 = vadd.f32 %v2588, %v2597
        %v2600 = vmul.f32 %v2598, 0.7978846
        %v2601 = vmul.f32 %v2599, 0.7978846
        %v2602 = vtanh.pop %v2600
        %v2603 = vtanh.pop %v2601
        %v2604 = vadd.f32 %v2602, 1.0
        %v2605 = vadd.f32 %v2603, 1.0
        %v2606 = vmul.f32 %v2604, 0.5
        %v2607 = vmul.f32 %v2605, 0.5
        %v2608 = vmul.f32 %v2586, %v2606
        %v2609 = vmul.f32 %v2588, %v2607
        %v2610 = vpack.c.bf16 %v2608, %v2608
        %v2611 = vpack.c.bf16 %v2609, %v2609
        %v2644 = vunpack.c.l.b16 %v2438
        %v2645 = vunpack.c.l.b16 %v2439
        %v2646 = vunpack.c.l.b16 %v2440
        %v2647 = vunpack.c.l.b16 %v2441
        %v2648 = vunpack.c.l.b16 %v2442
        %v2649 = vunpack.c.l.b16 %v2443
        %v2650 = vunpack.c.l.b16 %v2444
        %v2651 = vunpack.c.l.b16 %v2445
        %v2652 = vunpack.c.l.b16 %v2446
        %v2653 = vunpack.c.l.b16 %v2447
        %v2654 = vunpack.c.l.b16 %v2448
        %v2655 = vunpack.c.l.b16 %v2449
        %v2656 = vunpack.c.l.b16 %v2450
        %v2657 = vunpack.c.l.b16 %v2451
        %v2658 = vunpack.c.l.b16 %v2452
        %v2659 = vunpack.c.l.b16 %v2453
        %v2660 = vunpack.c.l.b16 %v2454
        %v2661 = vunpack.c.l.b16 %v2455
        %v2662 = vunpack.c.l.b16 %v2456
        %v2663 = vunpack.c.l.b16 %v2457
        %v2664 = vunpack.c.l.b16 %v2458
        %v2665 = vunpack.c.l.b16 %v2459
        %v2666 = vunpack.c.l.b16 %v2460
        %v2667 = vunpack.c.l.b16 %v2461
        %v2668 = vunpack.c.l.b16 %v2462
        %v2669 = vunpack.c.l.b16 %v2463
        %v2670 = vunpack.c.l.b16 %v2464
        %v2671 = vunpack.c.l.b16 %v2465
        %v2672 = vunpack.c.l.b16 %v2466
        %v2673 = vunpack.c.l.b16 %v2467
        %v2674 = vunpack.c.l.b16 %v2468
        %v2675 = vunpack.c.l.b16 %v2469
        %v2676 = vpack.c.b16 %v2645, %v2644
        %v2677 = vpack.c.b16 %v2647, %v2646
        %v2678 = vpack.c.b16 %v2649, %v2648
        %v2679 = vpack.c.b16 %v2651, %v2650
        %v2680 = vpack.c.b16 %v2653, %v2652
        %v2681 = vpack.c.b16 %v2655, %v2654
        %v2682 = vpack.c.b16 %v2657, %v2656
        %v2683 = vpack.c.b16 %v2659, %v2658
        %v2684 = vpack.c.b16 %v2661, %v2660
        %v2685 = vpack.c.b16 %v2663, %v2662
        %v2686 = vpack.c.b16 %v2665, %v2664
        %v2687 = vpack.c.b16 %v2667, %v2666
        %v2688 = vpack.c.b16 %v2669, %v2668
        %v2689 = vpack.c.b16 %v2671, %v2670
        %v2690 = vpack.c.b16 %v2673, %v2672
        %v2691 = vpack.c.b16 %v2675, %v2674
        %2708 = vmatprep.subr.bf16.mxu0 0
        %2709 = vmatpush1.bf16.msra.mxu0 %v2683
        %2710 = vmatprep.subr.bf16.mxu0 0
        %2711 = vmatpush1.bf16.msra.mxu0 %v2682
        %2712 = vmatprep.subr.bf16.mxu0 0
        %2713 = vmatpush1.bf16.msra.mxu0 %v2681
        %2714 = vmatprep.subr.bf16.mxu0 0
        %2715 = vmatpush1.bf16.msra.mxu0 %v2680
        %2716 = vmatprep.subr.bf16.mxu0 0
        %2717 = vmatpush1.bf16.msra.mxu0 %v2679
        %2718 = vmatprep.subr.bf16.mxu0 0
        %2719 = vmatpush1.bf16.msra.mxu0 %v2678
        %2720 = vmatprep.subr.bf16.mxu0 0
        %2721 = vmatpush1.bf16.msra.mxu0 %v2677
        %2722 = vmatprep.subr.bf16.mxu0 0
        %2723 = vmatpush1.bf16.msra.mxu0 %v2676
        %2724 = vmatprep.subr.bf16.mxu0 0
        %2725 = vmatpush2.bf16.msra.mxu0 %v2691
        %2726 = vmatprep.subr.bf16.mxu0 0
        %2727 = vmatpush2.bf16.msra.mxu0 %v2690
        %2728 = vmatprep.subr.bf16.mxu0 0
        %2729 = vmatpush2.bf16.msra.mxu0 %v2689
        %2730 = vmatprep.subr.bf16.mxu0 0
        %2731 = vmatpush2.bf16.msra.mxu0 %v2688
        %2732 = vmatprep.subr.bf16.mxu0 0
        %2733 = vmatpush2.bf16.msra.mxu0 %v2687
        %2734 = vmatprep.subr.bf16.mxu0 0
        %2735 = vmatpush2.bf16.msra.mxu0 %v2686
        %2736 = vmatprep.subr.bf16.mxu0 0
        %2737 = vmatpush2.bf16.msra.mxu0 %v2685
        %2738 = vmatprep.subr.bf16.mxu0 0
        %2739 = vmatpush2.bf16.msra.mxu0 %v2684
        %2740 = vmatprep.mubr.bf16.mxu0 %v2611
        %2741 = vmatmul.mubr.bf16.gmra.mxu0 %v2610
        %v2742 = vpop.f32.mrf.mxu0
        %v2743 = vadd.f32 0.0, %v2742
        %v2744 = vpop.f32.mrf.mxu0
        %v2745 = vpop.f32.mrf.mxu0
        %v2746 = vpop.f32.mrf.mxu0
        %2747 = vdwg.mxu0
        %v2748 = vadd.f32 %v2400, %v2743
        %2749 = vadd.xlane.f32.xlu0 %v2748
        %v2750 = vpop.xlane.xlu0 %2749
        %v2751 = vmul.f32 %v2750, %v886
        %v2752 = vsub.f32 %v2748, %v2751
        %v2753 = vmul.f32 %v2752, %v2752
        %2754 = vadd.xlane.f32.xlu0 %v2753
        %v2755 = vpop.xlane.xlu0 %2754
        %v2756 = vmul.f32 %v2755, %v886
        %v2757 = vadd.f32 %v2756, 1e-05
        %v2758 = vrsqrt.pop %v2757
        %v2759 = vmul.f32 %v2752, %v2758
        %v2760 = vlaneseq
        %v2761 = vshrl.u32 %v2760, 7
        %v2762 = vsub.s32 4, %v2761
        %v2763 = vrot.slane %v1922, %v2762
        %v2764 = vmul.f32 %v2759, %v2763
        %v2765 = vlaneseq
        %v2766 = vshrl.u32 %v2765, 7
        %v2767 = vsub.s32 5, %v2766
        %v2768 = vrot.slane %v1922, %v2767
        %v2769 = vadd.f32 %v2764, %v2768
        %v2770 = vpack.c.bf16 %v2769, %v2769
        %v2771 = vld [vmem:[#allocation23] sm:$0xf]
        %v2772 = vld [vmem:[#allocation23 + $0x4] sm:$0xf]
        %v2773 = vld [vmem:[#allocation23 + $0x8] sm:$0xf]
        %v2774 = vld [vmem:[#allocation23 + $0xc] sm:$0xf]
        %v2775 = vld [vmem:[#allocation23 + $0x10] sm:$0xf]
        %v2776 = vld [vmem:[#allocation23 + $0x14] sm:$0xf]
        %v2777 = vld [vmem:[#allocation23 + $0x18] sm:$0xf]
        %v2778 = vld [vmem:[#allocation23 + $0x1c] sm:$0xf]
        %v2779 = vld [vmem:[#allocation23 + $0x20] sm:$0xf]
        %v2780 = vld [vmem:[#allocation23 + $0x24] sm:$0xf]
        %v2781 = vld [vmem:[#allocation23 + $0x28] sm:$0xf]
        %v2782 = vld [vmem:[#allocation23 + $0x2c] sm:$0xf]
        %v2783 = vld [vmem:[#allocation23 + $0x30] sm:$0xf]
        %v2784 = vld [vmem:[#allocation23 + $0x34] sm:$0xf]
        %v2785 = vld [vmem:[#allocation23 + $0x38] sm:$0xf]
        %v2786 = vld [vmem:[#allocation23 + $0x3c] sm:$0xf]
        %v2803 = vunpack.c.l.b16 %v2771
        %v2804 = vunpack.c.l.b16 %v2772
        %v2805 = vunpack.c.l.b16 %v2773
        %v2806 = vunpack.c.l.b16 %v2774
        %v2807 = vunpack.c.l.b16 %v2775
        %v2808 = vunpack.c.l.b16 %v2776
        %v2809 = vunpack.c.l.b16 %v2777
        %v2810 = vunpack.c.l.b16 %v2778
        %v2811 = vunpack.c.l.b16 %v2779
        %v2812 = vunpack.c.l.b16 %v2780
        %v2813 = vunpack.c.l.b16 %v2781
        %v2814 = vunpack.c.l.b16 %v2782
        %v2815 = vunpack.c.l.b16 %v2783
        %v2816 = vunpack.c.l.b16 %v2784
        %v2817 = vunpack.c.l.b16 %v2785
        %v2818 = vunpack.c.l.b16 %v2786
        %v2819 = vpack.c.b16 %v2804, %v2803
        %v2820 = vpack.c.b16 %v2806, %v2805
        %v2821 = vpack.c.b16 %v2808, %v2807
        %v2822 = vpack.c.b16 %v2810, %v2809
        %v2823 = vpack.c.b16 %v2812, %v2811
        %v2824 = vpack.c.b16 %v2814, %v2813
        %v2825 = vpack.c.b16 %v2816, %v2815
        %v2826 = vpack.c.b16 %v2818, %v2817
        %2835 = vmatprep.subr.bf16.mxu0 0
        %2836 = vmatpush1.bf16.msra.mxu0 %v2826
        %2837 = vmatprep.subr.bf16.mxu0 0
        %2838 = vmatpush1.bf16.msra.mxu0 %v2825
        %2839 = vmatprep.subr.bf16.mxu0 0
        %2840 = vmatpush1.bf16.msra.mxu0 %v2824
        %2841 = vmatprep.subr.bf16.mxu0 0
        %2842 = vmatpush1.bf16.msra.mxu0 %v2823
        %2843 = vmatprep.subr.bf16.mxu0 0
        %2844 = vmatpush1.bf16.msra.mxu0 %v2822
        %2845 = vmatprep.subr.bf16.mxu0 0
        %2846 = vmatpush1.bf16.msra.mxu0 %v2821
        %2847 = vmatprep.subr.bf16.mxu0 0
        %2848 = vmatpush1.bf16.msra.mxu0 %v2820
        %2849 = vmatprep.subr.bf16.mxu0 0
        %2850 = vmatpush1.bf16.msra.mxu0 %v2819
        %2851 = vmatprep.subr.bf16.mxu0 0
        %2852 = vmatpush2.bf16.msra.mxu0 0
        %2853 = vmatprep.subr.bf16.mxu0 0
        %2854 = vmatpush2.bf16.msra.mxu0 0
        %2855 = vmatprep.subr.bf16.mxu0 0
        %2856 = vmatpush2.bf16.msra.mxu0 0
        %2857 = vmatprep.subr.bf16.mxu0 0
        %2858 = vmatpush2.bf16.msra.mxu0 0
        %2859 = vmatprep.subr.bf16.mxu0 0
        %2860 = vmatpush2.bf16.msra.mxu0 0
        %2861 = vmatprep.subr.bf16.mxu0 0
        %2862 = vmatpush2.bf16.msra.mxu0 0
        %2863 = vmatprep.subr.bf16.mxu0 0
        %2864 = vmatpush2.bf16.msra.mxu0 0
        %2865 = vmatprep.subr.bf16.mxu0 0
        %2866 = vmatpush2.bf16.msra.mxu0 0
        %2867 = vmatprep.mubr.bf16.mxu0 0
        %2868 = vmatmul.mubr.bf16.gmra.mxu0 %v2770
        %v2869 = vpop.f32.mrf.mxu0
        %v2870 = vadd.f32 0.0, %v2869
        %v2871 = vpop.f32.mrf.mxu0
        %v2872 = vpop.f32.mrf.mxu0
        %v2873 = vpop.f32.mrf.mxu0
        %2874 = vdwg.mxu0
        %2875 = vst [vmem:[%s759] sm:$0xff] %v2870
        %s2876 = sand.u32 %s401, 1
        %s2877 = scalar_lea.sflag [#allocation4], %s2876
        %s2878 = sand.u32 %s401, 1
        %s2879 = smul.addr %s2878, 8
        %s2880 = scalar_lea.vmem [#allocation25], %s2879
        // Predicated region
        $region141: #{tpu_custom_call.1} parent=83 // pred_check
          %p2881 = pneg %p411
        $region142: #{tpu_custom_call.1} parent=83 // pred_check_branch
          %2883 = sbr.rel (%p2881) target = $region144
        $region143: #{tpu_custom_call.1} parent=83 // pred_region
          %s2885 = ssub.s32 128, 128
          %2886 = vsyncadd %s2877, %s2885
          %s2887 = smul.addr %s42, 128
          %s2888 = scalar_lea.hbm %s16, %s2887
          %s2890 = sshll.u32 %s2880, 4
          %s2891 = int_to_ptr.vmem [resolvable:$true] %s2890
          %2893 = dma.vmem_to_hbm [thread:$0]  %s2891, 128, %s2888, %s2877
        $region144: #{tpu_custom_call.1} parent=83 // pred_fallthru
          _
      $region84: #{tpu_custom_call.1} parent=5 // pred_fallthru
        _
      %p2894 = scmp.le.s32.totalorder 2, %s37
      // Predicated region
      $region145: #{tpu_custom_call.1} parent=5 // pred_check
        %p2895 = pneg %p2894
      $region146: #{tpu_custom_call.1} parent=5 // pred_check_branch
        %2897 = sbr.rel (%p2895) target = $region148
      $region147: #{tpu_custom_call.1} parent=5 // pred_region
        %s2898 = ssub.s32 %s37, 2
        // Predicated region
        $region149: #{tpu_custom_call.1} parent=147 // pred_check
          %p2899 = pneg %p417
        $region150: #{tpu_custom_call.1} parent=147 // pred_check_branch
          %2901 = sbr.rel (%p2899) target = $region152
        $region151: #{tpu_custom_call.1} parent=147 // pred_region
          %s2902 = sand.u32 %s402, 1
          %s2903 = scalar_lea.sflag [#allocation4], %s2902
          %s2904 = sand.u32 %s402, 1
          %s2905 = smul.addr %s2904, 8
          %s2906 = scalar_lea.vmem [#allocation25], %s2905
          %2907 = dma.done %s2903, 128
        $region152: #{tpu_custom_call.1} parent=147 // pred_fallthru
          _
      $region148: #{tpu_custom_call.1} parent=5 // pred_fallthru
        _
    $region6: #{tpu_custom_call.1} parent=1 // loop_footer
      %s41 = sadd.s32 1, %s37
    $region7: #{tpu_custom_call.1} parent=1 // loop_footer_branch
      %36 = sbr.rel target = $region3
    $region8: #{tpu_custom_call.1} parent=1 // loop_exit
      _
    %2908 = vsyncpa [#allocation3], 1
    %s2909 = scalar_lea.sflag [#allocation3], 1
    %2910 = vsyncpa %s2909, 1
    %2911 = vsyncpa [#allocation6], 1
    %s2912 = scalar_lea.sflag [#allocation6], 1
    %2913 = vsyncpa %s2912, 1
    %2914 = vsyncpa [#allocation9], 1
    %2915 = vsyncpa [#allocation12], 1
    %2916 = vsyncpa [#allocation15], 1
    %2917 = vsyncpa [#allocation18], 1
    %2918 = vsyncpa [#allocation21], 1
    %2919 = vsyncpa [#allocation24], 1
    %2920 = vsyncpa [#allocation4], 1
    %s2921 = scalar_lea.sflag [#allocation4], 1
    %2922 = vsyncpa %s2921, 1

</llo_original>
